<compile_context>
chip_gen: v5e
topology: v5e:2x2
jax: 0.10.0
libtpu: 0.0.40
codegen_flags: <defaults>
</compile_context>

<pallas_src>
import numpy as np

import jax
import jax.numpy as jnp
from jax import lax
from jax.experimental import pallas as pl
from jax.experimental.pallas import tpu as pltpu

_BN_EPS = 1e-5
_OUT_CHANNELS = 3

# (kind, activation) for the 6 layers, in execution order.
_LAYER_CFG = (
    ("conv", "relu"), ("conv", "relu"), ("conv", "relu"),        # Encoder2
    ("convT", "relu"), ("convT", "relu"), ("convT", "sigmoid"),  # Decoder2
)


# ---------------------------------------------------------------------------
# The fused kernel: whole autoencoder for one batch element, fully in VMEM.
# ---------------------------------------------------------------------------
def _ae_kernel(*refs):
    """refs = (x_ref, [S_ref, V_ref, b_ref] * 6, o_ref).

    x_ref/o_ref: (H, W*C) activations.  Per layer:
      S_ref: (3, Ho, Hin) f32 row-selection/scatter matrices (one per kernel row tap ki)
      V_ref: (3, Win*Cin, Wout*Cout) bf16 block-structured column/channel weights
             (column taps kj, stride/upsample geometry and BN scale folded in)
      b_ref: (1, Wout*Cout) f32 folded conv-bias + BN shift.
    """
    x_ref = refs[0]
    o_ref = refs[-1]
    wrefs = refs[1:-1]

    a = x_ref[...]                                        # (H, W*C) float32
    for li, (kind, act) in enumerate(_LAYER_CFG):
        s_ref, v_ref, b_ref = wrefs[3 * li], wrefs[3 * li + 1], wrefs[3 * li + 2]
        acc = None
        if kind == "conv":
            # Stride-2 conv: subsample rows first (halves the big matmul's work).
            for k in range(3):
                t = jnp.dot(s_ref[k], a, preferred_element_type=jnp.float32)
                t = jnp.dot(t.astype(jnp.bfloat16), v_ref[k],
                            preferred_element_type=jnp.float32)
                acc = t if acc is None else acc + t
        else:
            # Stride-2 convT: widen lanes first, then scatter/interleave output rows.
            a_bf = a.astype(jnp.bfloat16)
            for k in range(3):
                t = jnp.dot(a_bf, v_ref[k], preferred_element_type=jnp.float32)
                t = jnp.dot(s_ref[k], t, preferred_element_type=jnp.float32)
                acc = t if acc is None else acc + t
        y = acc + b_ref[...]                               # folded bias/BN (f32)
        if act == "relu":
            a = jnp.maximum(y, 0.0)
        else:                                              # sigmoid (exp -> EUP slot)
            a = 1.0 / (1.0 + jnp.exp(-y))
    o_ref[...] = a


# ---------------------------------------------------------------------------
# Forward wrapper: only NCHW<->(H, W*C) layout glue lives outside the kernel.
# ---------------------------------------------------------------------------
def autoencoder2_forward(x_nchw, params):
    B, C, H, W = x_nchw.shape
    xr = jnp.transpose(x_nchw, (0, 2, 3, 1)).reshape(B, H, W * C)   # (B, H, W*C)

    flat = [xr]
    in_specs = [pl.BlockSpec((None, H, W * C), lambda b: (b, 0, 0))]
    flops = 0
    bytes_acc = xr.size * 4
    rows, cols = H, W * C
    for (kind, _), p in zip(_LAYER_CFG, params):
        for arr in (p["S"], p["V"], p["b"]):
            flat.append(arr)
            in_specs.append(
                pl.BlockSpec(arr.shape, lambda b, nd=arr.ndim: (0,) * nd))
            bytes_acc += arr.size * arr.dtype.itemsize
        ho, n = p["S"].shape[1], p["V"].shape[2]
        if kind == "conv":
            flops += 3 * 2 * (ho * rows * cols + ho * cols * n)
        else:
            flops += 3 * 2 * (rows * cols * n + ho * rows * n)
        rows, cols = ho, n

    cost = pl.CostEstimate(flops=B * flops,
                           transcendentals=B * rows * cols,
                           bytes_accessed=bytes_acc + B * rows * cols * 4)

    out = pl.pallas_call(
        _ae_kernel,
        out_shape=jax.ShapeDtypeStruct((B, rows, cols), jnp.float32),
        grid=(B,),
        in_specs=in_specs,
        out_specs=pl.BlockSpec((None, rows, cols), lambda b: (b, 0, 0)),
        compiler_params=pltpu.CompilerParams(
            dimension_semantics=("parallel",)),            # batch across TCs on v7x
        cost_estimate=cost,
    )(*flat)

    w_out = cols // _OUT_CHANNELS
    return jnp.transpose(out.reshape(B, rows, w_out, _OUT_CHANNELS), (0, 3, 1, 2))


# ---------------------------------------------------------------------------
# Parameter preparation (host-side, once): build the structured matrices.
# ---------------------------------------------------------------------------
def _prep_conv(w, scale, bias_eff, H, W):
    """Conv2d(k=3, s=2, p=1): w is (Cout, Cin, 3, 3)."""
    Cout, Cin = w.shape[0], w.shape[1]
    Ho, Wo = H // 2, W // 2
    S = np.zeros((3, Ho, H), np.float32)
    V = np.zeros((3, W * Cin, Wo * Cout), np.float32)
    for ki in range(3):
        for oi in range(Ho):
            i = 2 * oi + ki - 1
            if 0 <= i < H:
                S[ki, oi, i] = 1.0
        for oj in range(Wo):
            for kj in range(3):
                j = 2 * oj + kj - 1
                if 0 <= j < W:
                    V[ki, j * Cin:(j + 1) * Cin, oj * Cout:(oj + 1) * Cout] = (
                        w[:, :, ki, kj].T * scale[None, :])
    b = np.tile(bias_eff, Wo).reshape(1, Wo * Cout).astype(np.float32)
    layer = {"S": jnp.asarray(S),
             "V": jnp.asarray(V, dtype=jnp.bfloat16),
             "b": jnp.asarray(b)}
    return layer, (Ho, Wo)


def _prep_convt(w, scale, bias_eff, H, W):
    """ConvTranspose2d(k=3, s=2, p=1, op=1): w is (Cin, Cout, 3, 3).

    Output row y gets input row i iff y == 2*i + ki - 1 (row-scatter matrix T);
    output col x gets input col j iff x == 2*j + kj - 1 (encoded in U).  The 2x
    up-sampling and even/odd interleaving are therefore built into T/U: no zero
    dilation of the data and no strided scatter are needed.
    """
    Cin, Cout = w.shape[0], w.shape[1]
    Ho, Wo = 2 * H, 2 * W
    T = np.zeros((3, Ho, H), np.float32)
    U = np.zeros((3, W * Cin, Wo * Cout), np.float32)
    for ki in range(3):
        for i in range(H):
            y = 2 * i + ki - 1
            if 0 <= y < Ho:
                T[ki, y, i] = 1.0
        for j in range(W):
            for kj in range(3):
                x = 2 * j + kj - 1
                if 0 <= x < Wo:
                    U[ki, j * Cin:(j + 1) * Cin, x * Cout:(x + 1) * Cout] = (
                        w[:, :, ki, kj] * scale[None, :])
    b = np.tile(bias_eff, Wo).reshape(1, Wo * Cout).astype(np.float32)
    layer = {"S": jnp.asarray(T),
             "V": jnp.asarray(U, dtype=jnp.bfloat16),
             "b": jnp.asarray(b)}
    return layer, (Ho, Wo)


def prepare_params(raw_params, height, width):
    """Fold conv bias + eval-mode BatchNorm and build per-layer structured mats."""
    params = []
    H, W = height, width
    for (kind, _), (w, b, gamma, beta, mean, var) in zip(_LAYER_CFG, raw_params):
        w = np.asarray(w, np.float32)
        b = np.asarray(b, np.float32)
        if gamma is None:                                   # final layer: no BN
            cout = w.shape[1] if kind == "convT" else w.shape[0]
            scale = np.ones((cout,), np.float32)
            bias_eff = b
        else:
            scale = np.asarray(gamma) / np.sqrt(np.asarray(var) + _BN_EPS)
            bias_eff = (b - np.asarray(mean)) * scale + np.asarray(beta)
        if kind == "conv":
            layer, (H, W) = _prep_conv(w, scale, bias_eff, H, W)
        else:
            layer, (H, W) = _prep_convt(w, scale, bias_eff, H, W)
        params.append(layer)
    return params


def init_raw_params(key):
    """PyTorch-like init; BatchNorm layers use fresh (eval-mode) running stats."""
    ks = jax.random.split(key, 12)

    def u(k, shape, fan_in):
        bound = 1.0 / (fan_in ** 0.5)
        return jax.random.uniform(k, shape, jnp.float32, -bound, bound)

    def bn_stats(c):
        return (jnp.ones((c,), jnp.float32), jnp.zeros((c,), jnp.float32),
                jnp.zeros((c,), jnp.float32), jnp.ones((c,), jnp.float32))

    raw = []
    for i, (cin, cout) in enumerate([(3, 16), (16, 32), (32, 64)]):        # Encoder2
        w = u(ks[2 * i], (cout, cin, 3, 3), cin * 9)
        b = u(ks[2 * i + 1], (cout,), cin * 9)
        raw.append((w, b) + bn_stats(cout))
    for j, (cin, cout) in enumerate([(64, 32), (32, 16), (16, 3)]):        # Decoder2
        i = 3 + j
        w = u(ks[2 * i], (cin, cout, 3, 3), cout * 9)
        b = u(ks[2 * i + 1], (cout,), cout * 9)
        raw.append((w, b) + (bn_stats(cout) if j < 2 else (None, None, None, None)))
    return raw


# ---------------------------------------------------------------------------
# Pure-XLA reference (f32), used only for the correctness check in __main__.
# ---------------------------------------------------------------------------
def _ref_forward(x_nchw, raw_params):
    y = x_nchw
    dn = ("NCHW", "OIHW", "NCHW")
    for (kind, act), (w, b, gamma, beta, mean, var) in zip(_LAYER_CFG, raw_params):
        if kind == "conv":
            y = lax.conv_general_dilated(y, w, (2, 2), ((1, 1), (1, 1)),
                                         dimension_numbers=dn)
        else:
            w_eq = jnp.transpose(w[:, :, ::-1, ::-1], (1, 0, 2, 3))
            y = lax.conv_general_dilated(y, w_eq, (1, 1), ((1, 2), (1, 2)),
                                         lhs_dilation=(2, 2), dimension_numbers=dn)
        y = y + b[None, :, None, None]
        if gamma is not None:
            y = ((y - mean[None, :, None, None])
                 / jnp.sqrt(var[None, :, None, None] + _BN_EPS)
                 * gamma[None, :, None, None] + beta[None, :, None, None])
        y = jnp.maximum(y, 0.0) if act == "relu" else jax.nn.sigmoid(y)
    return y


if __name__ == "__main__":
    key = jax.random.PRNGKey(0)
    kx, kp = jax.random.split(key)

    # CIFAR10-like input (NCHW): batch=2, 3 channels, 32x32.
    x = jax.random.uniform(kx, (2, 3, 32, 32), dtype=jnp.float32)
    raw = init_raw_params(kp)
    params = prepare_params(raw, 32, 32)

    fwd = jax.jit(autoencoder2_forward)
    out = jax.block_until_ready(fwd(x, params))

    # Sanity: reconstructs to the input shape, sigmoid output in [0, 1].
    assert out.shape == x.shape, out.shape
    assert bool(jnp.all(jnp.isfinite(out)))
    assert bool(jnp.all((out >= 0.0) & (out <= 1.0)))

    # Correctness vs a pure-XLA f32 reference (bf16 weight operands => loose tol).
    ref = _ref_forward(x, raw)
    err = float(jnp.max(jnp.abs(out - ref)))
    assert err < 2e-2, err

    print("KERNEL_OK")
</pallas_src>

<mosaic_0001>
module attributes {stable_mosaic.version = 11 : i64} {
  func.func @_ae_kernel(%arg0: i32, %arg1: memref<1x32x96xf32, #tpu.memory_space<vmem>>, %arg2: memref<3x16x32xf32, #tpu.memory_space<vmem>>, %arg3: memref<3x96x256xbf16, #tpu.memory_space<vmem>>, %arg4: memref<1x256xf32, #tpu.memory_space<vmem>>, %arg5: memref<3x8x16xf32, #tpu.memory_space<vmem>>, %arg6: memref<3x256x256xbf16, #tpu.memory_space<vmem>>, %arg7: memref<1x256xf32, #tpu.memory_space<vmem>>, %arg8: memref<3x4x8xf32, #tpu.memory_space<vmem>>, %arg9: memref<3x256x256xbf16, #tpu.memory_space<vmem>>, %arg10: memref<1x256xf32, #tpu.memory_space<vmem>>, %arg11: memref<3x8x4xf32, #tpu.memory_space<vmem>>, %arg12: memref<3x256x256xbf16, #tpu.memory_space<vmem>>, %arg13: memref<1x256xf32, #tpu.memory_space<vmem>>, %arg14: memref<3x16x8xf32, #tpu.memory_space<vmem>>, %arg15: memref<3x256x256xbf16, #tpu.memory_space<vmem>>, %arg16: memref<1x256xf32, #tpu.memory_space<vmem>>, %arg17: memref<3x32x16xf32, #tpu.memory_space<vmem>>, %arg18: memref<3x256x96xbf16, #tpu.memory_space<vmem>>, %arg19: memref<1x96xf32, #tpu.memory_space<vmem>>, %arg20: memref<1x32x96xf32, #tpu.memory_space<vmem>>) attributes {dimension_semantics = [#tpu.dimension_semantics<parallel>], iteration_bounds = array<i64: 2>, scalar_prefetch = 0 : i64, scratch_operands = 0 : i64, tpu.core_type = #tpu.core_type<tc>, window_params = [{transform_indices = @transform_0, window_bounds = array<i64: 1, 32, 96>}, {pipeline_mode = #tpu.pipeline_mode<synchronous>, transform_indices = @transform_1, window_bounds = array<i64: 3, 16, 32>}, {pipeline_mode = #tpu.pipeline_mode<synchronous>, transform_indices = @transform_2, window_bounds = array<i64: 3, 96, 256>}, {pipeline_mode = #tpu.pipeline_mode<synchronous>, transform_indices = @transform_3, window_bounds = array<i64: 1, 256>}, {pipeline_mode = #tpu.pipeline_mode<synchronous>, transform_indices = @transform_4, window_bounds = array<i64: 3, 8, 16>}, {pipeline_mode = #tpu.pipeline_mode<synchronous>, transform_indices = @transform_5, window_bounds = array<i64: 3, 256, 256>}, {pipeline_mode = #tpu.pipeline_mode<synchronous>, transform_indices = @transform_6, window_bounds = array<i64: 1, 256>}, {pipeline_mode = #tpu.pipeline_mode<synchronous>, transform_indices = @transform_7, window_bounds = array<i64: 3, 4, 8>}, {pipeline_mode = #tpu.pipeline_mode<synchronous>, transform_indices = @transform_8, window_bounds = array<i64: 3, 256, 256>}, {pipeline_mode = #tpu.pipeline_mode<synchronous>, transform_indices = @transform_9, window_bounds = array<i64: 1, 256>}, {pipeline_mode = #tpu.pipeline_mode<synchronous>, transform_indices = @transform_10, window_bounds = array<i64: 3, 8, 4>}, {pipeline_mode = #tpu.pipeline_mode<synchronous>, transform_indices = @transform_11, window_bounds = array<i64: 3, 256, 256>}, {pipeline_mode = #tpu.pipeline_mode<synchronous>, transform_indices = @transform_12, window_bounds = array<i64: 1, 256>}, {pipeline_mode = #tpu.pipeline_mode<synchronous>, transform_indices = @transform_13, window_bounds = array<i64: 3, 16, 8>}, {pipeline_mode = #tpu.pipeline_mode<synchronous>, transform_indices = @transform_14, window_bounds = array<i64: 3, 256, 256>}, {pipeline_mode = #tpu.pipeline_mode<synchronous>, transform_indices = @transform_15, window_bounds = array<i64: 1, 256>}, {pipeline_mode = #tpu.pipeline_mode<synchronous>, transform_indices = @transform_16, window_bounds = array<i64: 3, 32, 16>}, {pipeline_mode = #tpu.pipeline_mode<synchronous>, transform_indices = @transform_17, window_bounds = array<i64: 3, 256, 96>}, {pipeline_mode = #tpu.pipeline_mode<synchronous>, transform_indices = @transform_18, window_bounds = array<i64: 1, 96>}, {transform_indices = @transform_19, window_bounds = array<i64: 1, 32, 96>}]} {
    %c0 = arith.constant 0 : index
    %c0_0 = arith.constant 0 : index
    %c0_1 = arith.constant 0 : index
    %0 = vector.load %arg1[%c0, %c0_0, %c0_1] : memref<1x32x96xf32, #tpu.memory_space<vmem>>, vector<1x32x96xf32>
    %1 = vector.shape_cast %0 : vector<1x32x96xf32> to vector<32x96xf32>
    %c0_2 = arith.constant 0 : index
    %c0_3 = arith.constant 0 : index
    %c0_4 = arith.constant 0 : index
    %2 = vector.load %arg2[%c0_2, %c0_3, %c0_4] : memref<3x16x32xf32, #tpu.memory_space<vmem>>, vector<1x16x32xf32>
    %3 = vector.shape_cast %2 : vector<1x16x32xf32> to vector<16x32xf32>
    %cst = arith.constant dense<0.000000e+00> : vector<16x96xf32>
    %4 = tpu.matmul %3, %1, %cst {dimension_numbers = #tpu.dot_dimension_numbers<[1], [0], [0], [1], [0, 0, 1, 1], [], []>} : vector<16x32xf32>, vector<32x96xf32>, vector<16x96xf32> -> vector<16x96xf32>
    %5 = arith.truncf %4 : vector<16x96xf32> to vector<16x96xbf16>
    %c0_5 = arith.constant 0 : index
    %c0_6 = arith.constant 0 : index
    %c0_7 = arith.constant 0 : index
    %6 = vector.load %arg3[%c0_5, %c0_6, %c0_7] : memref<3x96x256xbf16, #tpu.memory_space<vmem>>, vector<1x96x256xbf16>
    %7 = vector.shape_cast %6 : vector<1x96x256xbf16> to vector<96x256xbf16>
    %cst_8 = arith.constant dense<0.000000e+00> : vector<16x256xf32>
    %8 = tpu.matmul %5, %7, %cst_8 {dimension_numbers = #tpu.dot_dimension_numbers<[1], [0], [0], [1], [0, 0, 1, 1], [], []>} : vector<16x96xbf16>, vector<96x256xbf16>, vector<16x256xf32> -> vector<16x256xf32>
    %c1 = arith.constant 1 : index
    %c0_9 = arith.constant 0 : index
    %c0_10 = arith.constant 0 : index
    %9 = vector.load %arg2[%c1, %c0_9, %c0_10] : memref<3x16x32xf32, #tpu.memory_space<vmem>>, vector<1x16x32xf32>
    %10 = vector.shape_cast %9 : vector<1x16x32xf32> to vector<16x32xf32>
    %cst_11 = arith.constant dense<0.000000e+00> : vector<16x96xf32>
    %11 = tpu.matmul %10, %1, %cst_11 {dimension_numbers = #tpu.dot_dimension_numbers<[1], [0], [0], [1], [0, 0, 1, 1], [], []>} : vector<16x32xf32>, vector<32x96xf32>, vector<16x96xf32> -> vector<16x96xf32>
    %12 = arith.truncf %11 : vector<16x96xf32> to vector<16x96xbf16>
    %c1_12 = arith.constant 1 : index
    %c0_13 = arith.constant 0 : index
    %c0_14 = arith.constant 0 : index
    %13 = vector.load %arg3[%c1_12, %c0_13, %c0_14] : memref<3x96x256xbf16, #tpu.memory_space<vmem>>, vector<1x96x256xbf16>
    %14 = vector.shape_cast %13 : vector<1x96x256xbf16> to vector<96x256xbf16>
    %cst_15 = arith.constant dense<0.000000e+00> : vector<16x256xf32>
    %15 = tpu.matmul %12, %14, %cst_15 {dimension_numbers = #tpu.dot_dimension_numbers<[1], [0], [0], [1], [0, 0, 1, 1], [], []>} : vector<16x96xbf16>, vector<96x256xbf16>, vector<16x256xf32> -> vector<16x256xf32>
    %16 = arith.addf %8, %15 : vector<16x256xf32>
    %c2 = arith.constant 2 : index
    %c0_16 = arith.constant 0 : index
    %c0_17 = arith.constant 0 : index
    %17 = vector.load %arg2[%c2, %c0_16, %c0_17] : memref<3x16x32xf32, #tpu.memory_space<vmem>>, vector<1x16x32xf32>
    %18 = vector.shape_cast %17 : vector<1x16x32xf32> to vector<16x32xf32>
    %cst_18 = arith.constant dense<0.000000e+00> : vector<16x96xf32>
    %19 = tpu.matmul %18, %1, %cst_18 {dimension_numbers = #tpu.dot_dimension_numbers<[1], [0], [0], [1], [0, 0, 1, 1], [], []>} : vector<16x32xf32>, vector<32x96xf32>, vector<16x96xf32> -> vector<16x96xf32>
    %20 = arith.truncf %19 : vector<16x96xf32> to vector<16x96xbf16>
    %c2_19 = arith.constant 2 : index
    %c0_20 = arith.constant 0 : index
    %c0_21 = arith.constant 0 : index
    %21 = vector.load %arg3[%c2_19, %c0_20, %c0_21] : memref<3x96x256xbf16, #tpu.memory_space<vmem>>, vector<1x96x256xbf16>
    %22 = vector.shape_cast %21 : vector<1x96x256xbf16> to vector<96x256xbf16>
    %cst_22 = arith.constant dense<0.000000e+00> : vector<16x256xf32>
    %23 = tpu.matmul %20, %22, %cst_22 {dimension_numbers = #tpu.dot_dimension_numbers<[1], [0], [0], [1], [0, 0, 1, 1], [], []>} : vector<16x96xbf16>, vector<96x256xbf16>, vector<16x256xf32> -> vector<16x256xf32>
    %24 = arith.addf %16, %23 : vector<16x256xf32>
    %c0_23 = arith.constant 0 : index
    %c0_24 = arith.constant 0 : index
    %25 = vector.load %arg4[%c0_23, %c0_24] : memref<1x256xf32, #tpu.memory_space<vmem>>, vector<1x256xf32>
    %26 = vector.broadcast %25 : vector<1x256xf32> to vector<16x256xf32>
    %27 = arith.addf %24, %26 : vector<16x256xf32>
    %cst_25 = arith.constant 0.000000e+00 : f32
    %28 = vector.broadcast %cst_25 : f32 to vector<16x256xf32>
    %29 = arith.maximumf %27, %28 : vector<16x256xf32>
    %c0_26 = arith.constant 0 : index
    %c0_27 = arith.constant 0 : index
    %c0_28 = arith.constant 0 : index
    %30 = vector.load %arg5[%c0_26, %c0_27, %c0_28] : memref<3x8x16xf32, #tpu.memory_space<vmem>>, vector<1x8x16xf32>
    %31 = vector.shape_cast %30 : vector<1x8x16xf32> to vector<8x16xf32>
    %cst_29 = arith.constant dense<0.000000e+00> : vector<8x256xf32>
    %32 = tpu.matmul %31, %29, %cst_29 {dimension_numbers = #tpu.dot_dimension_numbers<[1], [0], [0], [1], [0, 0, 1, 1], [], []>} : vector<8x16xf32>, vector<16x256xf32>, vector<8x256xf32> -> vector<8x256xf32>
    %33 = arith.truncf %32 : vector<8x256xf32> to vector<8x256xbf16>
    %c0_30 = arith.constant 0 : index
    %c0_31 = arith.constant 0 : index
    %c0_32 = arith.constant 0 : index
    %34 = vector.load %arg6[%c0_30, %c0_31, %c0_32] : memref<3x256x256xbf16, #tpu.memory_space<vmem>>, vector<1x256x256xbf16>
    %35 = vector.shape_cast %34 : vector<1x256x256xbf16> to vector<256x256xbf16>
    %cst_33 = arith.constant dense<0.000000e+00> : vector<8x256xf32>
    %36 = tpu.matmul %33, %35, %cst_33 {dimension_numbers = #tpu.dot_dimension_numbers<[1], [0], [0], [1], [0, 0, 1, 1], [], []>} : vector<8x256xbf16>, vector<256x256xbf16>, vector<8x256xf32> -> vector<8x256xf32>
    %c1_34 = arith.constant 1 : index
    %c0_35 = arith.constant 0 : index
    %c0_36 = arith.constant 0 : index
    %37 = vector.load %arg5[%c1_34, %c0_35, %c0_36] : memref<3x8x16xf32, #tpu.memory_space<vmem>>, vector<1x8x16xf32>
    %38 = vector.shape_cast %37 : vector<1x8x16xf32> to vector<8x16xf32>
    %cst_37 = arith.constant dense<0.000000e+00> : vector<8x256xf32>
    %39 = tpu.matmul %38, %29, %cst_37 {dimension_numbers = #tpu.dot_dimension_numbers<[1], [0], [0], [1], [0, 0, 1, 1], [], []>} : vector<8x16xf32>, vector<16x256xf32>, vector<8x256xf32> -> vector<8x256xf32>
    %40 = arith.truncf %39 : vector<8x256xf32> to vector<8x256xbf16>
    %c1_38 = arith.constant 1 : index
    %c0_39 = arith.constant 0 : index
    %c0_40 = arith.constant 0 : index
    %41 = vector.load %arg6[%c1_38, %c0_39, %c0_40] : memref<3x256x256xbf16, #tpu.memory_space<vmem>>, vector<1x256x256xbf16>
    %42 = vector.shape_cast %41 : vector<1x256x256xbf16> to vector<256x256xbf16>
    %cst_41 = arith.constant dense<0.000000e+00> : vector<8x256xf32>
    %43 = tpu.matmul %40, %42, %cst_41 {dimension_numbers = #tpu.dot_dimension_numbers<[1], [0], [0], [1], [0, 0, 1, 1], [], []>} : vector<8x256xbf16>, vector<256x256xbf16>, vector<8x256xf32> -> vector<8x256xf32>
    %44 = arith.addf %36, %43 : vector<8x256xf32>
    %c2_42 = arith.constant 2 : index
    %c0_43 = arith.constant 0 : index
    %c0_44 = arith.constant 0 : index
    %45 = vector.load %arg5[%c2_42, %c0_43, %c0_44] : memref<3x8x16xf32, #tpu.memory_space<vmem>>, vector<1x8x16xf32>
    %46 = vector.shape_cast %45 : vector<1x8x16xf32> to vector<8x16xf32>
    %cst_45 = arith.constant dense<0.000000e+00> : vector<8x256xf32>
    %47 = tpu.matmul %46, %29, %cst_45 {dimension_numbers = #tpu.dot_dimension_numbers<[1], [0], [0], [1], [0, 0, 1, 1], [], []>} : vector<8x16xf32>, vector<16x256xf32>, vector<8x256xf32> -> vector<8x256xf32>
    %48 = arith.truncf %47 : vector<8x256xf32> to vector<8x256xbf16>
    %c2_46 = arith.constant 2 : index
    %c0_47 = arith.constant 0 : index
    %c0_48 = arith.constant 0 : index
    %49 = vector.load %arg6[%c2_46, %c0_47, %c0_48] : memref<3x256x256xbf16, #tpu.memory_space<vmem>>, vector<1x256x256xbf16>
    %50 = vector.shape_cast %49 : vector<1x256x256xbf16> to vector<256x256xbf16>
    %cst_49 = arith.constant dense<0.000000e+00> : vector<8x256xf32>
    %51 = tpu.matmul %48, %50, %cst_49 {dimension_numbers = #tpu.dot_dimension_numbers<[1], [0], [0], [1], [0, 0, 1, 1], [], []>} : vector<8x256xbf16>, vector<256x256xbf16>, vector<8x256xf32> -> vector<8x256xf32>
    %52 = arith.addf %44, %51 : vector<8x256xf32>
    %c0_50 = arith.constant 0 : index
    %c0_51 = arith.constant 0 : index
    %53 = vector.load %arg7[%c0_50, %c0_51] : memref<1x256xf32, #tpu.memory_space<vmem>>, vector<1x256xf32>
    %54 = vector.broadcast %53 : vector<1x256xf32> to vector<8x256xf32>
    %55 = arith.addf %52, %54 : vector<8x256xf32>
    %cst_52 = arith.constant 0.000000e+00 : f32
    %56 = vector.broadcast %cst_52 : f32 to vector<8x256xf32>
    %57 = arith.maximumf %55, %56 : vector<8x256xf32>
    %c0_53 = arith.constant 0 : index
    %c0_54 = arith.constant 0 : index
    %c0_55 = arith.constant 0 : index
    %58 = vector.load %arg8[%c0_53, %c0_54, %c0_55] : memref<3x4x8xf32, #tpu.memory_space<vmem>>, vector<1x4x8xf32>
    %59 = vector.shape_cast %58 : vector<1x4x8xf32> to vector<4x8xf32>
    %cst_56 = arith.constant dense<0.000000e+00> : vector<4x256xf32>
    %60 = tpu.matmul %59, %57, %cst_56 {dimension_numbers = #tpu.dot_dimension_numbers<[1], [0], [0], [1], [0, 0, 1, 1], [], []>} : vector<4x8xf32>, vector<8x256xf32>, vector<4x256xf32> -> vector<4x256xf32>
    %61 = arith.truncf %60 : vector<4x256xf32> to vector<4x256xbf16>
    %c0_57 = arith.constant 0 : index
    %c0_58 = arith.constant 0 : index
    %c0_59 = arith.constant 0 : index
    %62 = vector.load %arg9[%c0_57, %c0_58, %c0_59] : memref<3x256x256xbf16, #tpu.memory_space<vmem>>, vector<1x256x256xbf16>
    %63 = vector.shape_cast %62 : vector<1x256x256xbf16> to vector<256x256xbf16>
    %cst_60 = arith.constant dense<0.000000e+00> : vector<4x256xf32>
    %64 = tpu.matmul %61, %63, %cst_60 {dimension_numbers = #tpu.dot_dimension_numbers<[1], [0], [0], [1], [0, 0, 1, 1], [], []>} : vector<4x256xbf16>, vector<256x256xbf16>, vector<4x256xf32> -> vector<4x256xf32>
    %c1_61 = arith.constant 1 : index
    %c0_62 = arith.constant 0 : index
    %c0_63 = arith.constant 0 : index
    %65 = vector.load %arg8[%c1_61, %c0_62, %c0_63] : memref<3x4x8xf32, #tpu.memory_space<vmem>>, vector<1x4x8xf32>
    %66 = vector.shape_cast %65 : vector<1x4x8xf32> to vector<4x8xf32>
    %cst_64 = arith.constant dense<0.000000e+00> : vector<4x256xf32>
    %67 = tpu.matmul %66, %57, %cst_64 {dimension_numbers = #tpu.dot_dimension_numbers<[1], [0], [0], [1], [0, 0, 1, 1], [], []>} : vector<4x8xf32>, vector<8x256xf32>, vector<4x256xf32> -> vector<4x256xf32>
    %68 = arith.truncf %67 : vector<4x256xf32> to vector<4x256xbf16>
    %c1_65 = arith.constant 1 : index
    %c0_66 = arith.constant 0 : index
    %c0_67 = arith.constant 0 : index
    %69 = vector.load %arg9[%c1_65, %c0_66, %c0_67] : memref<3x256x256xbf16, #tpu.memory_space<vmem>>, vector<1x256x256xbf16>
    %70 = vector.shape_cast %69 : vector<1x256x256xbf16> to vector<256x256xbf16>
    %cst_68 = arith.constant dense<0.000000e+00> : vector<4x256xf32>
    %71 = tpu.matmul %68, %70, %cst_68 {dimension_numbers = #tpu.dot_dimension_numbers<[1], [0], [0], [1], [0, 0, 1, 1], [], []>} : vector<4x256xbf16>, vector<256x256xbf16>, vector<4x256xf32> -> vector<4x256xf32>
    %72 = arith.addf %64, %71 : vector<4x256xf32>
    %c2_69 = arith.constant 2 : index
    %c0_70 = arith.constant 0 : index
    %c0_71 = arith.constant 0 : index
    %73 = vector.load %arg8[%c2_69, %c0_70, %c0_71] : memref<3x4x8xf32, #tpu.memory_space<vmem>>, vector<1x4x8xf32>
    %74 = vector.shape_cast %73 : vector<1x4x8xf32> to vector<4x8xf32>
    %cst_72 = arith.constant dense<0.000000e+00> : vector<4x256xf32>
    %75 = tpu.matmul %74, %57, %cst_72 {dimension_numbers = #tpu.dot_dimension_numbers<[1], [0], [0], [1], [0, 0, 1, 1], [], []>} : vector<4x8xf32>, vector<8x256xf32>, vector<4x256xf32> -> vector<4x256xf32>
    %76 = arith.truncf %75 : vector<4x256xf32> to vector<4x256xbf16>
    %c2_73 = arith.constant 2 : index
    %c0_74 = arith.constant 0 : index
    %c0_75 = arith.constant 0 : index
    %77 = vector.load %arg9[%c2_73, %c0_74, %c0_75] : memref<3x256x256xbf16, #tpu.memory_space<vmem>>, vector<1x256x256xbf16>
    %78 = vector.shape_cast %77 : vector<1x256x256xbf16> to vector<256x256xbf16>
    %cst_76 = arith.constant dense<0.000000e+00> : vector<4x256xf32>
    %79 = tpu.matmul %76, %78, %cst_76 {dimension_numbers = #tpu.dot_dimension_numbers<[1], [0], [0], [1], [0, 0, 1, 1], [], []>} : vector<4x256xbf16>, vector<256x256xbf16>, vector<4x256xf32> -> vector<4x256xf32>
    %80 = arith.addf %72, %79 : vector<4x256xf32>
    %c0_77 = arith.constant 0 : index
    %c0_78 = arith.constant 0 : index
    %81 = vector.load %arg10[%c0_77, %c0_78] : memref<1x256xf32, #tpu.memory_space<vmem>>, vector<1x256xf32>
    %82 = vector.broadcast %81 : vector<1x256xf32> to vector<4x256xf32>
    %83 = arith.addf %80, %82 : vector<4x256xf32>
    %cst_79 = arith.constant 0.000000e+00 : f32
    %84 = vector.broadcast %cst_79 : f32 to vector<4x256xf32>
    %85 = arith.maximumf %83, %84 : vector<4x256xf32>
    %86 = arith.truncf %85 : vector<4x256xf32> to vector<4x256xbf16>
    %c0_80 = arith.constant 0 : index
    %c0_81 = arith.constant 0 : index
    %c0_82 = arith.constant 0 : index
    %87 = vector.load %arg12[%c0_80, %c0_81, %c0_82] : memref<3x256x256xbf16, #tpu.memory_space<vmem>>, vector<1x256x256xbf16>
    %88 = vector.shape_cast %87 : vector<1x256x256xbf16> to vector<256x256xbf16>
    %cst_83 = arith.constant dense<0.000000e+00> : vector<4x256xf32>
    %89 = tpu.matmul %86, %88, %cst_83 {dimension_numbers = #tpu.dot_dimension_numbers<[1], [0], [0], [1], [0, 0, 1, 1], [], []>} : vector<4x256xbf16>, vector<256x256xbf16>, vector<4x256xf32> -> vector<4x256xf32>
    %c0_84 = arith.constant 0 : index
    %c0_85 = arith.constant 0 : index
    %c0_86 = arith.constant 0 : index
    %90 = vector.load %arg11[%c0_84, %c0_85, %c0_86] : memref<3x8x4xf32, #tpu.memory_space<vmem>>, vector<1x8x4xf32>
    %91 = vector.shape_cast %90 : vector<1x8x4xf32> to vector<8x4xf32>
    %cst_87 = arith.constant dense<0.000000e+00> : vector<8x256xf32>
    %92 = tpu.matmul %91, %89, %cst_87 {dimension_numbers = #tpu.dot_dimension_numbers<[1], [0], [0], [1], [0, 0, 1, 1], [], []>} : vector<8x4xf32>, vector<4x256xf32>, vector<8x256xf32> -> vector<8x256xf32>
    %c1_88 = arith.constant 1 : index
    %c0_89 = arith.constant 0 : index
    %c0_90 = arith.constant 0 : index
    %93 = vector.load %arg12[%c1_88, %c0_89, %c0_90] : memref<3x256x256xbf16, #tpu.memory_space<vmem>>, vector<1x256x256xbf16>
    %94 = vector.shape_cast %93 : vector<1x256x256xbf16> to vector<256x256xbf16>
    %cst_91 = arith.constant dense<0.000000e+00> : vector<4x256xf32>
    %95 = tpu.matmul %86, %94, %cst_91 {dimension_numbers = #tpu.dot_dimension_numbers<[1], [0], [0], [1], [0, 0, 1, 1], [], []>} : vector<4x256xbf16>, vector<256x256xbf16>, vector<4x256xf32> -> vector<4x256xf32>
    %c1_92 = arith.constant 1 : index
    %c0_93 = arith.constant 0 : index
    %c0_94 = arith.constant 0 : index
    %96 = vector.load %arg11[%c1_92, %c0_93, %c0_94] : memref<3x8x4xf32, #tpu.memory_space<vmem>>, vector<1x8x4xf32>
    %97 = vector.shape_cast %96 : vector<1x8x4xf32> to vector<8x4xf32>
    %cst_95 = arith.constant dense<0.000000e+00> : vector<8x256xf32>
    %98 = tpu.matmul %97, %95, %cst_95 {dimension_numbers = #tpu.dot_dimension_numbers<[1], [0], [0], [1], [0, 0, 1, 1], [], []>} : vector<8x4xf32>, vector<4x256xf32>, vector<8x256xf32> -> vector<8x256xf32>
    %99 = arith.addf %92, %98 : vector<8x256xf32>
    %c2_96 = arith.constant 2 : index
    %c0_97 = arith.constant 0 : index
    %c0_98 = arith.constant 0 : index
    %100 = vector.load %arg12[%c2_96, %c0_97, %c0_98] : memref<3x256x256xbf16, #tpu.memory_space<vmem>>, vector<1x256x256xbf16>
    %101 = vector.shape_cast %100 : vector<1x256x256xbf16> to vector<256x256xbf16>
    %cst_99 = arith.constant dense<0.000000e+00> : vector<4x256xf32>
    %102 = tpu.matmul %86, %101, %cst_99 {dimension_numbers = #tpu.dot_dimension_numbers<[1], [0], [0], [1], [0, 0, 1, 1], [], []>} : vector<4x256xbf16>, vector<256x256xbf16>, vector<4x256xf32> -> vector<4x256xf32>
    %c2_100 = arith.constant 2 : index
    %c0_101 = arith.constant 0 : index
    %c0_102 = arith.constant 0 : index
    %103 = vector.load %arg11[%c2_100, %c0_101, %c0_102] : memref<3x8x4xf32, #tpu.memory_space<vmem>>, vector<1x8x4xf32>
    %104 = vector.shape_cast %103 : vector<1x8x4xf32> to vector<8x4xf32>
    %cst_103 = arith.constant dense<0.000000e+00> : vector<8x256xf32>
    %105 = tpu.matmul %104, %102, %cst_103 {dimension_numbers = #tpu.dot_dimension_numbers<[1], [0], [0], [1], [0, 0, 1, 1], [], []>} : vector<8x4xf32>, vector<4x256xf32>, vector<8x256xf32> -> vector<8x256xf32>
    %106 = arith.addf %99, %105 : vector<8x256xf32>
    %c0_104 = arith.constant 0 : index
    %c0_105 = arith.constant 0 : index
    %107 = vector.load %arg13[%c0_104, %c0_105] : memref<1x256xf32, #tpu.memory_space<vmem>>, vector<1x256xf32>
    %108 = vector.broadcast %107 : vector<1x256xf32> to vector<8x256xf32>
    %109 = arith.addf %106, %108 : vector<8x256xf32>
    %cst_106 = arith.constant 0.000000e+00 : f32
    %110 = vector.broadcast %cst_106 : f32 to vector<8x256xf32>
    %111 = arith.maximumf %109, %110 : vector<8x256xf32>
    %112 = arith.truncf %111 : vector<8x256xf32> to vector<8x256xbf16>
    %c0_107 = arith.constant 0 : index
    %c0_108 = arith.constant 0 : index
    %c0_109 = arith.constant 0 : index
    %113 = vector.load %arg15[%c0_107, %c0_108, %c0_109] : memref<3x256x256xbf16, #tpu.memory_space<vmem>>, vector<1x256x256xbf16>
    %114 = vector.shape_cast %113 : vector<1x256x256xbf16> to vector<256x256xbf16>
    %cst_110 = arith.constant dense<0.000000e+00> : vector<8x256xf32>
    %115 = tpu.matmul %112, %114, %cst_110 {dimension_numbers = #tpu.dot_dimension_numbers<[1], [0], [0], [1], [0, 0, 1, 1], [], []>} : vector<8x256xbf16>, vector<256x256xbf16>, vector<8x256xf32> -> vector<8x256xf32>
    %c0_111 = arith.constant 0 : index
    %c0_112 = arith.constant 0 : index
    %c0_113 = arith.constant 0 : index
    %116 = vector.load %arg14[%c0_111, %c0_112, %c0_113] : memref<3x16x8xf32, #tpu.memory_space<vmem>>, vector<1x16x8xf32>
    %117 = vector.shape_cast %116 : vector<1x16x8xf32> to vector<16x8xf32>
    %cst_114 = arith.constant dense<0.000000e+00> : vector<16x256xf32>
    %118 = tpu.matmul %117, %115, %cst_114 {dimension_numbers = #tpu.dot_dimension_numbers<[1], [0], [0], [1], [0, 0, 1, 1], [], []>} : vector<16x8xf32>, vector<8x256xf32>, vector<16x256xf32> -> vector<16x256xf32>
    %c1_115 = arith.constant 1 : index
    %c0_116 = arith.constant 0 : index
    %c0_117 = arith.constant 0 : index
    %119 = vector.load %arg15[%c1_115, %c0_116, %c0_117] : memref<3x256x256xbf16, #tpu.memory_space<vmem>>, vector<1x256x256xbf16>
    %120 = vector.shape_cast %119 : vector<1x256x256xbf16> to vector<256x256xbf16>
    %cst_118 = arith.constant dense<0.000000e+00> : vector<8x256xf32>
    %121 = tpu.matmul %112, %120, %cst_118 {dimension_numbers = #tpu.dot_dimension_numbers<[1], [0], [0], [1], [0, 0, 1, 1], [], []>} : vector<8x256xbf16>, vector<256x256xbf16>, vector<8x256xf32> -> vector<8x256xf32>
    %c1_119 = arith.constant 1 : index
    %c0_120 = arith.constant 0 : index
    %c0_121 = arith.constant 0 : index
    %122 = vector.load %arg14[%c1_119, %c0_120, %c0_121] : memref<3x16x8xf32, #tpu.memory_space<vmem>>, vector<1x16x8xf32>
    %123 = vector.shape_cast %122 : vector<1x16x8xf32> to vector<16x8xf32>
    %cst_122 = arith.constant dense<0.000000e+00> : vector<16x256xf32>
    %124 = tpu.matmul %123, %121, %cst_122 {dimension_numbers = #tpu.dot_dimension_numbers<[1], [0], [0], [1], [0, 0, 1, 1], [], []>} : vector<16x8xf32>, vector<8x256xf32>, vector<16x256xf32> -> vector<16x256xf32>
    %125 = arith.addf %118, %124 : vector<16x256xf32>
    %c2_123 = arith.constant 2 : index
    %c0_124 = arith.constant 0 : index
    %c0_125 = arith.constant 0 : index
    %126 = vector.load %arg15[%c2_123, %c0_124, %c0_125] : memref<3x256x256xbf16, #tpu.memory_space<vmem>>, vector<1x256x256xbf16>
    %127 = vector.shape_cast %126 : vector<1x256x256xbf16> to vector<256x256xbf16>
    %cst_126 = arith.constant dense<0.000000e+00> : vector<8x256xf32>
    %128 = tpu.matmul %112, %127, %cst_126 {dimension_numbers = #tpu.dot_dimension_numbers<[1], [0], [0], [1], [0, 0, 1, 1], [], []>} : vector<8x256xbf16>, vector<256x256xbf16>, vector<8x256xf32> -> vector<8x256xf32>
    %c2_127 = arith.constant 2 : index
    %c0_128 = arith.constant 0 : index
    %c0_129 = arith.constant 0 : index
    %129 = vector.load %arg14[%c2_127, %c0_128, %c0_129] : memref<3x16x8xf32, #tpu.memory_space<vmem>>, vector<1x16x8xf32>
    %130 = vector.shape_cast %129 : vector<1x16x8xf32> to vector<16x8xf32>
    %cst_130 = arith.constant dense<0.000000e+00> : vector<16x256xf32>
    %131 = tpu.matmul %130, %128, %cst_130 {dimension_numbers = #tpu.dot_dimension_numbers<[1], [0], [0], [1], [0, 0, 1, 1], [], []>} : vector<16x8xf32>, vector<8x256xf32>, vector<16x256xf32> -> vector<16x256xf32>
    %132 = arith.addf %125, %131 : vector<16x256xf32>
    %c0_131 = arith.constant 0 : index
    %c0_132 = arith.constant 0 : index
    %133 = vector.load %arg16[%c0_131, %c0_132] : memref<1x256xf32, #tpu.memory_space<vmem>>, vector<1x256xf32>
    %134 = vector.broadcast %133 : vector<1x256xf32> to vector<16x256xf32>
    %135 = arith.addf %132, %134 : vector<16x256xf32>
    %cst_133 = arith.constant 0.000000e+00 : f32
    %136 = vector.broadcast %cst_133 : f32 to vector<16x256xf32>
    %137 = arith.maximumf %135, %136 : vector<16x256xf32>
    %138 = arith.truncf %137 : vector<16x256xf32> to vector<16x256xbf16>
    %c0_134 = arith.constant 0 : index
    %c0_135 = arith.constant 0 : index
    %c0_136 = arith.constant 0 : index
    %139 = vector.load %arg18[%c0_134, %c0_135, %c0_136] : memref<3x256x96xbf16, #tpu.memory_space<vmem>>, vector<1x256x96xbf16>
    %140 = vector.shape_cast %139 : vector<1x256x96xbf16> to vector<256x96xbf16>
    %cst_137 = arith.constant dense<0.000000e+00> : vector<16x96xf32>
    %141 = tpu.matmul %138, %140, %cst_137 {dimension_numbers = #tpu.dot_dimension_numbers<[1], [0], [0], [1], [0, 0, 1, 1], [], []>} : vector<16x256xbf16>, vector<256x96xbf16>, vector<16x96xf32> -> vector<16x96xf32>
    %c0_138 = arith.constant 0 : index
    %c0_139 = arith.constant 0 : index
    %c0_140 = arith.constant 0 : index
    %142 = vector.load %arg17[%c0_138, %c0_139, %c0_140] : memref<3x32x16xf32, #tpu.memory_space<vmem>>, vector<1x32x16xf32>
    %143 = vector.shape_cast %142 : vector<1x32x16xf32> to vector<32x16xf32>
    %cst_141 = arith.constant dense<0.000000e+00> : vector<32x96xf32>
    %144 = tpu.matmul %143, %141, %cst_141 {dimension_numbers = #tpu.dot_dimension_numbers<[1], [0], [0], [1], [0, 0, 1, 1], [], []>} : vector<32x16xf32>, vector<16x96xf32>, vector<32x96xf32> -> vector<32x96xf32>
    %c1_142 = arith.constant 1 : index
    %c0_143 = arith.constant 0 : index
    %c0_144 = arith.constant 0 : index
    %145 = vector.load %arg18[%c1_142, %c0_143, %c0_144] : memref<3x256x96xbf16, #tpu.memory_space<vmem>>, vector<1x256x96xbf16>
    %146 = vector.shape_cast %145 : vector<1x256x96xbf16> to vector<256x96xbf16>
    %cst_145 = arith.constant dense<0.000000e+00> : vector<16x96xf32>
    %147 = tpu.matmul %138, %146, %cst_145 {dimension_numbers = #tpu.dot_dimension_numbers<[1], [0], [0], [1], [0, 0, 1, 1], [], []>} : vector<16x256xbf16>, vector<256x96xbf16>, vector<16x96xf32> -> vector<16x96xf32>
    %c1_146 = arith.constant 1 : index
    %c0_147 = arith.constant 0 : index
    %c0_148 = arith.constant 0 : index
    %148 = vector.load %arg17[%c1_146, %c0_147, %c0_148] : memref<3x32x16xf32, #tpu.memory_space<vmem>>, vector<1x32x16xf32>
    %149 = vector.shape_cast %148 : vector<1x32x16xf32> to vector<32x16xf32>
    %cst_149 = arith.constant dense<0.000000e+00> : vector<32x96xf32>
    %150 = tpu.matmul %149, %147, %cst_149 {dimension_numbers = #tpu.dot_dimension_numbers<[1], [0], [0], [1], [0, 0, 1, 1], [], []>} : vector<32x16xf32>, vector<16x96xf32>, vector<32x96xf32> -> vector<32x96xf32>
    %151 = arith.addf %144, %150 : vector<32x96xf32>
    %c2_150 = arith.constant 2 : index
    %c0_151 = arith.constant 0 : index
    %c0_152 = arith.constant 0 : index
    %152 = vector.load %arg18[%c2_150, %c0_151, %c0_152] : memref<3x256x96xbf16, #tpu.memory_space<vmem>>, vector<1x256x96xbf16>
    %153 = vector.shape_cast %152 : vector<1x256x96xbf16> to vector<256x96xbf16>
    %cst_153 = arith.constant dense<0.000000e+00> : vector<16x96xf32>
    %154 = tpu.matmul %138, %153, %cst_153 {dimension_numbers = #tpu.dot_dimension_numbers<[1], [0], [0], [1], [0, 0, 1, 1], [], []>} : vector<16x256xbf16>, vector<256x96xbf16>, vector<16x96xf32> -> vector<16x96xf32>
    %c2_154 = arith.constant 2 : index
    %c0_155 = arith.constant 0 : index
    %c0_156 = arith.constant 0 : index
    %155 = vector.load %arg17[%c2_154, %c0_155, %c0_156] : memref<3x32x16xf32, #tpu.memory_space<vmem>>, vector<1x32x16xf32>
    %156 = vector.shape_cast %155 : vector<1x32x16xf32> to vector<32x16xf32>
    %cst_157 = arith.constant dense<0.000000e+00> : vector<32x96xf32>
    %157 = tpu.matmul %156, %154, %cst_157 {dimension_numbers = #tpu.dot_dimension_numbers<[1], [0], [0], [1], [0, 0, 1, 1], [], []>} : vector<32x16xf32>, vector<16x96xf32>, vector<32x96xf32> -> vector<32x96xf32>
    %158 = arith.addf %151, %157 : vector<32x96xf32>
    %c0_158 = arith.constant 0 : index
    %c0_159 = arith.constant 0 : index
    %159 = vector.load %arg19[%c0_158, %c0_159] : memref<1x96xf32, #tpu.memory_space<vmem>>, vector<1x96xf32>
    %160 = vector.broadcast %159 : vector<1x96xf32> to vector<32x96xf32>
    %161 = arith.addf %158, %160 : vector<32x96xf32>
    %cst_160 = arith.constant 0.000000e+00 : f32
    %162 = vector.broadcast %cst_160 : f32 to vector<32x96xf32>
    %163 = arith.subf %162, %161 : vector<32x96xf32>
    %164 = math.exp %163 : vector<32x96xf32>
    %cst_161 = arith.constant 1.000000e+00 : f32
    %165 = vector.broadcast %cst_161 : f32 to vector<32x96xf32>
    %166 = arith.addf %165, %164 : vector<32x96xf32>
    %cst_162 = arith.constant 1.000000e+00 : f32
    %167 = vector.broadcast %cst_162 : f32 to vector<32x96xf32>
    %168 = arith.divf %167, %166 : vector<32x96xf32>
    %c0_163 = arith.constant 0 : index
    %c0_164 = arith.constant 0 : index
    %c0_165 = arith.constant 0 : index
    %169 = vector.load %arg20[%c0_163, %c0_164, %c0_165] : memref<1x32x96xf32, #tpu.memory_space<vmem>>, vector<1x32x96xf32>
    %170 = vector.shape_cast %169 : vector<1x32x96xf32> to vector<32x96xf32>
    %171 = vector.shape_cast %168 : vector<32x96xf32> to vector<1x32x96xf32>
    tpu.vector_store %arg20[%c0_163, %c0_164, %c0_165], %171 {strides = array<i32>} : memref<1x32x96xf32, #tpu.memory_space<vmem>>, vector<1x32x96xf32>,
    return
  }
  func.func @transform_0(%arg0: i32) -> (i32, i32, i32) {
    %c0_i32 = arith.constant 0 : i32
    %c0_i32_0 = arith.constant 0 : i32
    %c0_i32_1 = arith.constant 0 : i32
    return %arg0, %c0_i32, %c0_i32_0 : i32, i32, i32
  }
  func.func @transform_1(%arg0: i32) -> (i32, i32, i32) {
    %c0_i32 = arith.constant 0 : i32
    %c0_i32_0 = arith.constant 0 : i32
    %c0_i32_1 = arith.constant 0 : i32
    %c0_i32_2 = arith.constant 0 : i32
    return %c0_i32, %c0_i32_0, %c0_i32_1 : i32, i32, i32
  }
  func.func @transform_2(%arg0: i32) -> (i32, i32, i32) {
    %c0_i32 = arith.constant 0 : i32
    %c0_i32_0 = arith.constant 0 : i32
    %c0_i32_1 = arith.constant 0 : i32
    %c0_i32_2 = arith.constant 0 : i32
    return %c0_i32, %c0_i32_0, %c0_i32_1 : i32, i32, i32
  }
  func.func @transform_3(%arg0: i32) -> (i32, i32) {
    %c0_i32 = arith.constant 0 : i32
    %c0_i32_0 = arith.constant 0 : i32
    %c0_i32_1 = arith.constant 0 : i32
    return %c0_i32, %c0_i32_0 : i32, i32
  }
  func.func @transform_4(%arg0: i32) -> (i32, i32, i32) {
    %c0_i32 = arith.constant 0 : i32
    %c0_i32_0 = arith.constant 0 : i32
    %c0_i32_1 = arith.constant 0 : i32
    %c0_i32_2 = arith.constant 0 : i32
    return %c0_i32, %c0_i32_0, %c0_i32_1 : i32, i32, i32
  }
  func.func @transform_5(%arg0: i32) -> (i32, i32, i32) {
    %c0_i32 = arith.constant 0 : i32
    %c0_i32_0 = arith.constant 0 : i32
    %c0_i32_1 = arith.constant 0 : i32
    %c0_i32_2 = arith.constant 0 : i32
    return %c0_i32, %c0_i32_0, %c0_i32_1 : i32, i32, i32
  }
  func.func @transform_6(%arg0: i32) -> (i32, i32) {
    %c0_i32 = arith.constant 0 : i32
    %c0_i32_0 = arith.constant 0 : i32
    %c0_i32_1 = arith.constant 0 : i32
    return %c0_i32, %c0_i32_0 : i32, i32
  }
  func.func @transform_7(%arg0: i32) -> (i32, i32, i32) {
    %c0_i32 = arith.constant 0 : i32
    %c0_i32_0 = arith.constant 0 : i32
    %c0_i32_1 = arith.constant 0 : i32
    %c0_i32_2 = arith.constant 0 : i32
    return %c0_i32, %c0_i32_0, %c0_i32_1 : i32, i32, i32
  }
  func.func @transform_8(%arg0: i32) -> (i32, i32, i32) {
    %c0_i32 = arith.constant 0 : i32
    %c0_i32_0 = arith.constant 0 : i32
    %c0_i32_1 = arith.constant 0 : i32
    %c0_i32_2 = arith.constant 0 : i32
    return %c0_i32, %c0_i32_0, %c0_i32_1 : i32, i32, i32
  }
  func.func @transform_9(%arg0: i32) -> (i32, i32) {
    %c0_i32 = arith.constant 0 : i32
    %c0_i32_0 = arith.constant 0 : i32
    %c0_i32_1 = arith.constant 0 : i32
    return %c0_i32, %c0_i32_0 : i32, i32
  }
  func.func @transform_10(%arg0: i32) -> (i32, i32, i32) {
    %c0_i32 = arith.constant 0 : i32
    %c0_i32_0 = arith.constant 0 : i32
    %c0_i32_1 = arith.constant 0 : i32
    %c0_i32_2 = arith.constant 0 : i32
    return %c0_i32, %c0_i32_0, %c0_i32_1 : i32, i32, i32
  }
  func.func @transform_11(%arg0: i32) -> (i32, i32, i32) {
    %c0_i32 = arith.constant 0 : i32
    %c0_i32_0 = arith.constant 0 : i32
    %c0_i32_1 = arith.constant 0 : i32
    %c0_i32_2 = arith.constant 0 : i32
    return %c0_i32, %c0_i32_0, %c0_i32_1 : i32, i32, i32
  }
  func.func @transform_12(%arg0: i32) -> (i32, i32) {
    %c0_i32 = arith.constant 0 : i32
    %c0_i32_0 = arith.constant 0 : i32
    %c0_i32_1 = arith.constant 0 : i32
    return %c0_i32, %c0_i32_0 : i32, i32
  }
  func.func @transform_13(%arg0: i32) -> (i32, i32, i32) {
    %c0_i32 = arith.constant 0 : i32
    %c0_i32_0 = arith.constant 0 : i32
    %c0_i32_1 = arith.constant 0 : i32
    %c0_i32_2 = arith.constant 0 : i32
    return %c0_i32, %c0_i32_0, %c0_i32_1 : i32, i32, i32
  }
  func.func @transform_14(%arg0: i32) -> (i32, i32, i32) {
    %c0_i32 = arith.constant 0 : i32
    %c0_i32_0 = arith.constant 0 : i32
    %c0_i32_1 = arith.constant 0 : i32
    %c0_i32_2 = arith.constant 0 : i32
    return %c0_i32, %c0_i32_0, %c0_i32_1 : i32, i32, i32
  }
  func.func @transform_15(%arg0: i32) -> (i32, i32) {
    %c0_i32 = arith.constant 0 : i32
    %c0_i32_0 = arith.constant 0 : i32
    %c0_i32_1 = arith.constant 0 : i32
    return %c0_i32, %c0_i32_0 : i32, i32
  }
  func.func @transform_16(%arg0: i32) -> (i32, i32, i32) {
    %c0_i32 = arith.constant 0 : i32
    %c0_i32_0 = arith.constant 0 : i32
    %c0_i32_1 = arith.constant 0 : i32
    %c0_i32_2 = arith.constant 0 : i32
    return %c0_i32, %c0_i32_0, %c0_i32_1 : i32, i32, i32
  }
  func.func @transform_17(%arg0: i32) -> (i32, i32, i32) {
    %c0_i32 = arith.constant 0 : i32
    %c0_i32_0 = arith.constant 0 : i32
    %c0_i32_1 = arith.constant 0 : i32
    %c0_i32_2 = arith.constant 0 : i32
    return %c0_i32, %c0_i32_0, %c0_i32_1 : i32, i32, i32
  }
  func.func @transform_18(%arg0: i32) -> (i32, i32) {
    %c0_i32 = arith.constant 0 : i32
    %c0_i32_0 = arith.constant 0 : i32
    %c0_i32_1 = arith.constant 0 : i32
    return %c0_i32, %c0_i32_0 : i32, i32
  }
  func.func @transform_19(%arg0: i32) -> (i32, i32, i32) {
    %c0_i32 = arith.constant 0 : i32
    %c0_i32_0 = arith.constant 0 : i32
    %c0_i32_1 = arith.constant 0 : i32
    return %arg0, %c0_i32, %c0_i32_0 : i32, i32, i32
  }
}

</mosaic_0001>

<llo_original>
// kernel: autoencoder2_forward.1
$region0: #{autoencoder2_forward.1}
  #allocation0 [shape = 'u32[]', space=smem, size = 0x4, offset = 0x4, fixed_abs, tag = 'smem constant byte address 0x4 - core index']
  #allocation1 [shape = 'u32[72,128]{1,0:T(1,128)}', space=vmem, size = 0x9000, scoped, tag = 'internal scratch']
  %s0 = inlined_call_operand.vmem [shape: f32[2,32,96], index: 0, kind: input, shape index: {}]
  %s1 = inlined_call_operand.hbm [shape: f32[3,16,32], index: 1, kind: input, shape index: {}]
  %s2 = inlined_call_operand.hbm [shape: bf16[3,96,256], index: 2, kind: input, shape index: {}]
  %s3 = inlined_call_operand.vmem [shape: f32[1,256], index: 3, kind: input, shape index: {}]
  %s4 = inlined_call_operand.vmem [shape: f32[3,8,16], index: 4, kind: input, shape index: {}]
  %s5 = inlined_call_operand.vmem [shape: bf16[3,256,256], index: 5, kind: input, shape index: {}]
  %s6 = inlined_call_operand.vmem [shape: f32[1,256], index: 6, kind: input, shape index: {}]
  %s7 = inlined_call_operand.hbm [shape: f32[3,4,8], index: 7, kind: input, shape index: {}]
  %s8 = inlined_call_operand.vmem [shape: bf16[3,256,256], index: 8, kind: input, shape index: {}]
  %s9 = inlined_call_operand.hbm [shape: f32[1,256], index: 9, kind: input, shape index: {}]
  %s10 = inlined_call_operand.vmem [shape: f32[3,8,4], index: 10, kind: input, shape index: {}]
  %s11 = inlined_call_operand.hbm [shape: bf16[3,256,256], index: 11, kind: input, shape index: {}]
  %s12 = inlined_call_operand.hbm [shape: f32[1,256], index: 12, kind: input, shape index: {}]
  %s13 = inlined_call_operand.vmem [shape: f32[3,16,8], index: 13, kind: input, shape index: {}]
  %s14 = inlined_call_operand.hbm [shape: bf16[3,256,256], index: 14, kind: input, shape index: {}]
  %s15 = inlined_call_operand.hbm [shape: f32[1,256], index: 15, kind: input, shape index: {}]
  %s16 = inlined_call_operand.vmem [shape: f32[3,32,16], index: 16, kind: input, shape index: {}]
  %s17 = inlined_call_operand.vmem [shape: bf16[3,256,96], index: 17, kind: input, shape index: {}]
  %s18 = inlined_call_operand.vmem [shape: f32[1,96], index: 18, kind: input, shape index: {}]
  %s19 = inlined_call_operand.vmem [shape: f32[2,32,96], index: 19, kind: output, shape index: {}]
  %s20 = sld [smem:[#allocation0]]
  $region141: #{autoencoder2_forward.1} parent=0
    _
  %s22 = ssub.s32 1, %s20
  %s23 = scalar_select 0, %s22, %s20
  $region1: #{autoencoder2_forward.1} parent=0
    #allocation2 [shape = 'u8[24576]{0}', space=vmem, size = 0x6000, scoped, tag = 'input window, operand 1, single buffered']
    #allocation3 [shape = 's32[2]{0}', space=sflag, size = 0x8, scoped, tag = 'scoped memory for autoencoder2_forward.1']
    #allocation4 [shape = 'u8[147456]{0}', space=vmem, size = 0x24000, scoped, tag = 'input window, operand 2, single buffered']
    #allocation5 [shape = 's32[1]{0}', space=sflag, size = 0x4, scoped, tag = 'scoped memory for autoencoder2_forward.1']
    #allocation6 [shape = 'u8[6144]{0}', space=vmem, size = 0x1800, scoped, tag = 'input window, operand 7, single buffered']
    #allocation7 [shape = 'u8[1024]{0}', space=vmem, size = 0x400, scoped, tag = 'input window, operand 9, single buffered']
    #allocation8 [shape = 's32[1]{0}', space=sflag, size = 0x4, scoped, tag = 'scoped memory for autoencoder2_forward.1']
    #allocation9 [shape = 'u8[393216]{0}', space=vmem, size = 0x60000, scoped, tag = 'input window, operand 11, single buffered']
    #allocation10 [shape = 'u8[1024]{0}', space=vmem, size = 0x400, scoped, tag = 'input window, operand 12, single buffered']
    #allocation11 [shape = 's32[1]{0}', space=sflag, size = 0x4, scoped, tag = 'scoped memory for autoencoder2_forward.1']
    #allocation12 [shape = 'u8[393216]{0}', space=vmem, size = 0x60000, scoped, tag = 'input window, operand 14, single buffered']
    #allocation13 [shape = 'u8[1024]{0}', space=vmem, size = 0x400, scoped, tag = 'input window, operand 15, single buffered']
    #allocation14 [shape = 's32[1]{0}', space=sflag, size = 0x4, scoped, tag = 'scoped memory for autoencoder2_forward.1']
    %24 = vsyncpa [#allocation3], 0
    %25 = vsyncpa [#allocation5], 0
    %26 = vsyncpa [#allocation8], 0
    %27 = vsyncpa [#allocation11], 0
    %28 = vsyncpa [#allocation14], 0
    loop: start=0, step=1, limit=4
    $region2: #{autoencoder2_forward.1} parent=1 // loop_pre_header
      _
    $region3: #{autoencoder2_forward.1} parent=1 // loop_header
      %s30 = sphi 0, %s34
      %p31 = scmp.ge.s32.totalorder %s30, 4
      %s40 = sphi 0, %s42
      %s43 = sphi 0, %s40
      %s44 = sphi 0, %s43
      %s60 = sphi 0, %s44
      %s64 = sphi 0, %s64
      %s66 = sphi 0, %s64
      %s67 = sphi 0, %s66
      %s81 = sphi 0, %s67
      %s85 = sphi 0, %s85
      %s87 = sphi 0, %s85
      %s88 = sphi 0, %s87
      %s102 = sphi 0, %s88
      %s106 = sphi 0, %s106
      %s108 = sphi 0, %s106
      %s109 = sphi 0, %s108
      %s123 = sphi 0, %s109
      %s127 = sphi 0, %s127
      %s129 = sphi 0, %s127
      %s130 = sphi 0, %s129
      %s144 = sphi 0, %s130
      %s148 = sphi 0, %s148
      %s150 = sphi 0, %s148
      %s151 = sphi 0, %s150
      %s165 = sphi 0, %s151
      %s169 = sphi 0, %s169
      %s171 = sphi 0, %s169
      %s172 = sphi 0, %s171
      %s186 = sphi 0, %s172
      %s190 = sphi 0, %s190
      %s192 = sphi 0, %s190
      %s193 = sphi 0, %s192
      %s207 = sphi 0, %s193
      %s211 = sphi 0, %s211
      %s213 = sphi 0, %s211
      %s214 = sphi 0, %s213
      %s228 = sphi 0, %s214
      %s232 = sphi 0, %s232
      %s234 = sphi 0, %s232
      %s235 = sphi 0, %s234
      %s249 = sphi 0, %s235
      %s253 = sphi 0, %s253
      %s255 = sphi 0, %s253
      %s256 = sphi 0, %s255
      %s270 = sphi 0, %s256
      %s274 = sphi 0, %s274
      %s276 = sphi 0, %s274
      %s277 = sphi 0, %s276
      %s291 = sphi 0, %s277
      %s295 = sphi 0, %s295
      %s297 = sphi 0, %s295
      %s298 = sphi 0, %s297
      %s312 = sphi 0, %s298
      %s316 = sphi 0, %s316
      %s318 = sphi 0, %s316
      %s319 = sphi 0, %s318
      %s333 = sphi 0, %s319
      %s337 = sphi 0, %s337
      %s339 = sphi 0, %s337
      %s340 = sphi 0, %s339
      %s354 = sphi 0, %s340
      %s358 = sphi 0, %s358
      %s360 = sphi 0, %s358
      %s361 = sphi 0, %s360
      %s375 = sphi 0, %s361
      %s379 = sphi 0, %s379
      %s381 = sphi 0, %s379
      %s382 = sphi 0, %s381
      %s396 = sphi 0, %s382
      %s400 = sphi 0, %s400
      %s402 = sphi 0, %s400
      %s403 = sphi 0, %s402
      %s417 = sphi 0, %s403
      %s421 = sphi 0, %s421
      %s423 = sphi 0, %s421
      %s424 = sphi 0, %s423
      %s438 = sphi 0, %s424
      %s444 = sphi 0, %s446
      %s447 = sphi 0, %s444
      %s448 = sphi 0, %s447
      %s464 = sphi 0, %s448
    $region4: #{autoencoder2_forward.1} parent=1 // loop_header_branch
      %33 = sbr.rel (%p31) target = $region8
    $region5: #{autoencoder2_forward.1} parent=1 // loop_body
      %s35 = ssub.s32 %s30, 1
      %s36 = ssub.s32 %s30, 2
      %s37 = sadd.s32 %s30, 1
      %s38 = ssub.s32 %s30, %s37
      %p39 = scmp.eq.s32.totalorder %s38, 0
      %s41 = sadd.s32 %s40, 1
      %s42 = scalar_select %p39, %s40, %s41
      %p45 = pneg %p39
      %p46 = scmp.eq.s32.totalorder %s30, 1
      %p47 = por %p45, %p46
      %p48 = scmp.ne.s32.totalorder %s40, %s43
      %p49 = scmp.eq.s32.totalorder %s30, 0
      %p50 = por %p48, %p49
      %p51 = scmp.ne.s32.totalorder %s40, %s43
      %p52 = scmp.eq.s32.totalorder %s35, 1
      %p53 = por %p51, %p52
      %p54 = scmp.ne.s32.totalorder %s43, %s44
      %p55 = scmp.eq.s32.totalorder %s35, 0
      %p56 = por %p54, %p55
      %p57 = scmp.ne.s32.totalorder %s43, %s44
      %p58 = scmp.eq.s32.totalorder %s36, 1
      %p59 = por %p57, %p58
      %p61 = scmp.ne.s32.totalorder %s44, %s60
      %p62 = scmp.eq.s32.totalorder %s36, 0
      %p63 = por %p61, %p62
      %s65 = sadd.s32 %s64, 1
      %p68 = scmp.eq.s32.totalorder %s30, 1
      %p69 = scmp.ne.s32.totalorder %s64, %s66
      %p70 = scmp.eq.s32.totalorder %s30, 0
      %p71 = por %p69, %p70
      %p72 = scmp.ne.s32.totalorder %s64, %s66
      %p73 = scmp.eq.s32.totalorder %s35, 1
      %p74 = por %p72, %p73
      %p75 = scmp.ne.s32.totalorder %s66, %s67
      %p76 = scmp.eq.s32.totalorder %s35, 0
      %p77 = por %p75, %p76
      %p78 = scmp.ne.s32.totalorder %s66, %s67
      %p79 = scmp.eq.s32.totalorder %s36, 1
      %p80 = por %p78, %p79
      %p82 = scmp.ne.s32.totalorder %s67, %s81
      %p83 = scmp.eq.s32.totalorder %s36, 0
      %p84 = por %p82, %p83
      %s86 = sadd.s32 %s85, 1
      %p89 = scmp.eq.s32.totalorder %s30, 1
      %p90 = scmp.ne.s32.totalorder %s85, %s87
      %p91 = scmp.eq.s32.totalorder %s30, 0
      %p92 = por %p90, %p91
      %p93 = scmp.ne.s32.totalorder %s85, %s87
      %p94 = scmp.eq.s32.totalorder %s35, 1
      %p95 = por %p93, %p94
      %p96 = scmp.ne.s32.totalorder %s87, %s88
      %p97 = scmp.eq.s32.totalorder %s35, 0
      %p98 = por %p96, %p97
      %p99 = scmp.ne.s32.totalorder %s87, %s88
      %p100 = scmp.eq.s32.totalorder %s36, 1
      %p101 = por %p99, %p100
      %p103 = scmp.ne.s32.totalorder %s88, %s102
      %p104 = scmp.eq.s32.totalorder %s36, 0
      %p105 = por %p103, %p104
      %s107 = sadd.s32 %s106, 1
      %p110 = scmp.eq.s32.totalorder %s30, 1
      %p111 = scmp.ne.s32.totalorder %s106, %s108
      %p112 = scmp.eq.s32.totalorder %s30, 0
      %p113 = por %p111, %p112
      %p114 = scmp.ne.s32.totalorder %s106, %s108
      %p115 = scmp.eq.s32.totalorder %s35, 1
      %p116 = por %p114, %p115
      %p117 = scmp.ne.s32.totalorder %s108, %s109
      %p118 = scmp.eq.s32.totalorder %s35, 0
      %p119 = por %p117, %p118
      %p120 = scmp.ne.s32.totalorder %s108, %s109
      %p121 = scmp.eq.s32.totalorder %s36, 1
      %p122 = por %p120, %p121
      %p124 = scmp.ne.s32.totalorder %s109, %s123
      %p125 = scmp.eq.s32.totalorder %s36, 0
      %p126 = por %p124, %p125
      %s128 = sadd.s32 %s127, 1
      %p131 = scmp.eq.s32.totalorder %s30, 1
      %p132 = scmp.ne.s32.totalorder %s127, %s129
      %p133 = scmp.eq.s32.totalorder %s30, 0
      %p134 = por %p132, %p133
      %p135 = scmp.ne.s32.totalorder %s127, %s129
      %p136 = scmp.eq.s32.totalorder %s35, 1
      %p137 = por %p135, %p136
      %p138 = scmp.ne.s32.totalorder %s129, %s130
      %p139 = scmp.eq.s32.totalorder %s35, 0
      %p140 = por %p138, %p139
      %p141 = scmp.ne.s32.totalorder %s129, %s130
      %p142 = scmp.eq.s32.totalorder %s36, 1
      %p143 = por %p141, %p142
      %p145 = scmp.ne.s32.totalorder %s130, %s144
      %p146 = scmp.eq.s32.totalorder %s36, 0
      %p147 = por %p145, %p146
      %s149 = sadd.s32 %s148, 1
      %p152 = scmp.eq.s32.totalorder %s30, 1
      %p153 = scmp.ne.s32.totalorder %s148, %s150
      %p154 = scmp.eq.s32.totalorder %s30, 0
      %p155 = por %p153, %p154
      %p156 = scmp.ne.s32.totalorder %s148, %s150
      %p157 = scmp.eq.s32.totalorder %s35, 1
      %p158 = por %p156, %p157
      %p159 = scmp.ne.s32.totalorder %s150, %s151
      %p160 = scmp.eq.s32.totalorder %s35, 0
      %p161 = por %p159, %p160
      %p162 = scmp.ne.s32.totalorder %s150, %s151
      %p163 = scmp.eq.s32.totalorder %s36, 1
      %p164 = por %p162, %p163
      %p166 = scmp.ne.s32.totalorder %s151, %s165
      %p167 = scmp.eq.s32.totalorder %s36, 0
      %p168 = por %p166, %p167
      %s170 = sadd.s32 %s169, 1
      %p173 = scmp.eq.s32.totalorder %s30, 1
      %p174 = scmp.ne.s32.totalorder %s169, %s171
      %p175 = scmp.eq.s32.totalorder %s30, 0
      %p176 = por %p174, %p175
      %p177 = scmp.ne.s32.totalorder %s169, %s171
      %p178 = scmp.eq.s32.totalorder %s35, 1
      %p179 = por %p177, %p178
      %p180 = scmp.ne.s32.totalorder %s171, %s172
      %p181 = scmp.eq.s32.totalorder %s35, 0
      %p182 = por %p180, %p181
      %p183 = scmp.ne.s32.totalorder %s171, %s172
      %p184 = scmp.eq.s32.totalorder %s36, 1
      %p185 = por %p183, %p184
      %p187 = scmp.ne.s32.totalorder %s172, %s186
      %p188 = scmp.eq.s32.totalorder %s36, 0
      %p189 = por %p187, %p188
      %s191 = sadd.s32 %s190, 1
      %p194 = scmp.eq.s32.totalorder %s30, 1
      %p195 = scmp.ne.s32.totalorder %s190, %s192
      %p196 = scmp.eq.s32.totalorder %s30, 0
      %p197 = por %p195, %p196
      %p198 = scmp.ne.s32.totalorder %s190, %s192
      %p199 = scmp.eq.s32.totalorder %s35, 1
      %p200 = por %p198, %p199
      %p201 = scmp.ne.s32.totalorder %s192, %s193
      %p202 = scmp.eq.s32.totalorder %s35, 0
      %p203 = por %p201, %p202
      %p204 = scmp.ne.s32.totalorder %s192, %s193
      %p205 = scmp.eq.s32.totalorder %s36, 1
      %p206 = por %p204, %p205
      %p208 = scmp.ne.s32.totalorder %s193, %s207
      %p209 = scmp.eq.s32.totalorder %s36, 0
      %p210 = por %p208, %p209
      %s212 = sadd.s32 %s211, 1
      %p215 = scmp.eq.s32.totalorder %s30, 1
      %p216 = scmp.ne.s32.totalorder %s211, %s213
      %p217 = scmp.eq.s32.totalorder %s30, 0
      %p218 = por %p216, %p217
      %p219 = scmp.ne.s32.totalorder %s211, %s213
      %p220 = scmp.eq.s32.totalorder %s35, 1
      %p221 = por %p219, %p220
      %p222 = scmp.ne.s32.totalorder %s213, %s214
      %p223 = scmp.eq.s32.totalorder %s35, 0
      %p224 = por %p222, %p223
      %p225 = scmp.ne.s32.totalorder %s213, %s214
      %p226 = scmp.eq.s32.totalorder %s36, 1
      %p227 = por %p225, %p226
      %p229 = scmp.ne.s32.totalorder %s214, %s228
      %p230 = scmp.eq.s32.totalorder %s36, 0
      %p231 = por %p229, %p230
      %s233 = sadd.s32 %s232, 1
      %p236 = scmp.eq.s32.totalorder %s30, 1
      %p237 = scmp.ne.s32.totalorder %s232, %s234
      %p238 = scmp.eq.s32.totalorder %s30, 0
      %p239 = por %p237, %p238
      %p240 = scmp.ne.s32.totalorder %s232, %s234
      %p241 = scmp.eq.s32.totalorder %s35, 1
      %p242 = por %p240, %p241
      %p243 = scmp.ne.s32.totalorder %s234, %s235
      %p244 = scmp.eq.s32.totalorder %s35, 0
      %p245 = por %p243, %p244
      %p246 = scmp.ne.s32.totalorder %s234, %s235
      %p247 = scmp.eq.s32.totalorder %s36, 1
      %p248 = por %p246, %p247
      %p250 = scmp.ne.s32.totalorder %s235, %s249
      %p251 = scmp.eq.s32.totalorder %s36, 0
      %p252 = por %p250, %p251
      %s254 = sadd.s32 %s253, 1
      %p257 = scmp.eq.s32.totalorder %s30, 1
      %p258 = scmp.ne.s32.totalorder %s253, %s255
      %p259 = scmp.eq.s32.totalorder %s30, 0
      %p260 = por %p258, %p259
      %p261 = scmp.ne.s32.totalorder %s253, %s255
      %p262 = scmp.eq.s32.totalorder %s35, 1
      %p263 = por %p261, %p262
      %p264 = scmp.ne.s32.totalorder %s255, %s256
      %p265 = scmp.eq.s32.totalorder %s35, 0
      %p266 = por %p264, %p265
      %p267 = scmp.ne.s32.totalorder %s255, %s256
      %p268 = scmp.eq.s32.totalorder %s36, 1
      %p269 = por %p267, %p268
      %p271 = scmp.ne.s32.totalorder %s256, %s270
      %p272 = scmp.eq.s32.totalorder %s36, 0
      %p273 = por %p271, %p272
      %s275 = sadd.s32 %s274, 1
      %p278 = scmp.eq.s32.totalorder %s30, 1
      %p279 = scmp.ne.s32.totalorder %s274, %s276
      %p280 = scmp.eq.s32.totalorder %s30, 0
      %p281 = por %p279, %p280
      %p282 = scmp.ne.s32.totalorder %s274, %s276
      %p283 = scmp.eq.s32.totalorder %s35, 1
      %p284 = por %p282, %p283
      %p285 = scmp.ne.s32.totalorder %s276, %s277
      %p286 = scmp.eq.s32.totalorder %s35, 0
      %p287 = por %p285, %p286
      %p288 = scmp.ne.s32.totalorder %s276, %s277
      %p289 = scmp.eq.s32.totalorder %s36, 1
      %p290 = por %p288, %p289
      %p292 = scmp.ne.s32.totalorder %s277, %s291
      %p293 = scmp.eq.s32.totalorder %s36, 0
      %p294 = por %p292, %p293
      %s296 = sadd.s32 %s295, 1
      %p299 = scmp.eq.s32.totalorder %s30, 1
      %p300 = scmp.ne.s32.totalorder %s295, %s297
      %p301 = scmp.eq.s32.totalorder %s30, 0
      %p302 = por %p300, %p301
      %p303 = scmp.ne.s32.totalorder %s295, %s297
      %p304 = scmp.eq.s32.totalorder %s35, 1
      %p305 = por %p303, %p304
      %p306 = scmp.ne.s32.totalorder %s297, %s298
      %p307 = scmp.eq.s32.totalorder %s35, 0
      %p308 = por %p306, %p307
      %p309 = scmp.ne.s32.totalorder %s297, %s298
      %p310 = scmp.eq.s32.totalorder %s36, 1
      %p311 = por %p309, %p310
      %p313 = scmp.ne.s32.totalorder %s298, %s312
      %p314 = scmp.eq.s32.totalorder %s36, 0
      %p315 = por %p313, %p314
      %s317 = sadd.s32 %s316, 1
      %p320 = scmp.eq.s32.totalorder %s30, 1
      %p321 = scmp.ne.s32.totalorder %s316, %s318
      %p322 = scmp.eq.s32.totalorder %s30, 0
      %p323 = por %p321, %p322
      %p324 = scmp.ne.s32.totalorder %s316, %s318
      %p325 = scmp.eq.s32.totalorder %s35, 1
      %p326 = por %p324, %p325
      %p327 = scmp.ne.s32.totalorder %s318, %s319
      %p328 = scmp.eq.s32.totalorder %s35, 0
      %p329 = por %p327, %p328
      %p330 = scmp.ne.s32.totalorder %s318, %s319
      %p331 = scmp.eq.s32.totalorder %s36, 1
      %p332 = por %p330, %p331
      %p334 = scmp.ne.s32.totalorder %s319, %s333
      %p335 = scmp.eq.s32.totalorder %s36, 0
      %p336 = por %p334, %p335
      %s338 = sadd.s32 %s337, 1
      %p341 = scmp.eq.s32.totalorder %s30, 1
      %p342 = scmp.ne.s32.totalorder %s337, %s339
      %p343 = scmp.eq.s32.totalorder %s30, 0
      %p344 = por %p342, %p343
      %p345 = scmp.ne.s32.totalorder %s337, %s339
      %p346 = scmp.eq.s32.totalorder %s35, 1
      %p347 = por %p345, %p346
      %p348 = scmp.ne.s32.totalorder %s339, %s340
      %p349 = scmp.eq.s32.totalorder %s35, 0
      %p350 = por %p348, %p349
      %p351 = scmp.ne.s32.totalorder %s339, %s340
      %p352 = scmp.eq.s32.totalorder %s36, 1
      %p353 = por %p351, %p352
      %p355 = scmp.ne.s32.totalorder %s340, %s354
      %p356 = scmp.eq.s32.totalorder %s36, 0
      %p357 = por %p355, %p356
      %s359 = sadd.s32 %s358, 1
      %p362 = scmp.eq.s32.totalorder %s30, 1
      %p363 = scmp.ne.s32.totalorder %s358, %s360
      %p364 = scmp.eq.s32.totalorder %s30, 0
      %p365 = por %p363, %p364
      %p366 = scmp.ne.s32.totalorder %s358, %s360
      %p367 = scmp.eq.s32.totalorder %s35, 1
      %p368 = por %p366, %p367
      %p369 = scmp.ne.s32.totalorder %s360, %s361
      %p370 = scmp.eq.s32.totalorder %s35, 0
      %p371 = por %p369, %p370
      %p372 = scmp.ne.s32.totalorder %s360, %s361
      %p373 = scmp.eq.s32.totalorder %s36, 1
      %p374 = por %p372, %p373
      %p376 = scmp.ne.s32.totalorder %s361, %s375
      %p377 = scmp.eq.s32.totalorder %s36, 0
      %p378 = por %p376, %p377
      %s380 = sadd.s32 %s379, 1
      %p383 = scmp.eq.s32.totalorder %s30, 1
      %p384 = scmp.ne.s32.totalorder %s379, %s381
      %p385 = scmp.eq.s32.totalorder %s30, 0
      %p386 = por %p384, %p385
      %p387 = scmp.ne.s32.totalorder %s379, %s381
      %p388 = scmp.eq.s32.totalorder %s35, 1
      %p389 = por %p387, %p388
      %p390 = scmp.ne.s32.totalorder %s381, %s382
      %p391 = scmp.eq.s32.totalorder %s35, 0
      %p392 = por %p390, %p391
      %p393 = scmp.ne.s32.totalorder %s381, %s382
      %p394 = scmp.eq.s32.totalorder %s36, 1
      %p395 = por %p393, %p394
      %p397 = scmp.ne.s32.totalorder %s382, %s396
      %p398 = scmp.eq.s32.totalorder %s36, 0
      %p399 = por %p397, %p398
      %s401 = sadd.s32 %s400, 1
      %p404 = scmp.eq.s32.totalorder %s30, 1
      %p405 = scmp.ne.s32.totalorder %s400, %s402
      %p406 = scmp.eq.s32.totalorder %s30, 0
      %p407 = por %p405, %p406
      %p408 = scmp.ne.s32.totalorder %s400, %s402
      %p409 = scmp.eq.s32.totalorder %s35, 1
      %p410 = por %p408, %p409
      %p411 = scmp.ne.s32.totalorder %s402, %s403
      %p412 = scmp.eq.s32.totalorder %s35, 0
      %p413 = por %p411, %p412
      %p414 = scmp.ne.s32.totalorder %s402, %s403
      %p415 = scmp.eq.s32.totalorder %s36, 1
      %p416 = por %p414, %p415
      %p418 = scmp.ne.s32.totalorder %s403, %s417
      %p419 = scmp.eq.s32.totalorder %s36, 0
      %p420 = por %p418, %p419
      %s422 = sadd.s32 %s421, 1
      %p425 = scmp.eq.s32.totalorder %s30, 1
      %p426 = scmp.ne.s32.totalorder %s421, %s423
      %p427 = scmp.eq.s32.totalorder %s30, 0
      %p428 = por %p426, %p427
      %p429 = scmp.ne.s32.totalorder %s421, %s423
      %p430 = scmp.eq.s32.totalorder %s35, 1
      %p431 = por %p429, %p430
      %p432 = scmp.ne.s32.totalorder %s423, %s424
      %p433 = scmp.eq.s32.totalorder %s35, 0
      %p434 = por %p432, %p433
      %p435 = scmp.ne.s32.totalorder %s423, %s424
      %p436 = scmp.eq.s32.totalorder %s36, 1
      %p437 = por %p435, %p436
      %p439 = scmp.ne.s32.totalorder %s424, %s438
      %p440 = scmp.eq.s32.totalorder %s36, 0
      %p441 = por %p439, %p440
      %s442 = ssub.s32 %s30, %s37
      %p443 = scmp.eq.s32.totalorder %s442, 0
      %s445 = sadd.s32 %s444, 1
      %s446 = scalar_select %p443, %s444, %s445
      %p449 = pneg %p443
      %p450 = scmp.eq.s32.totalorder %s30, 1
      %p451 = por %p449, %p450
      %p452 = scmp.ne.s32.totalorder %s444, %s447
      %p453 = scmp.eq.s32.totalorder %s30, 0
      %p454 = por %p452, %p453
      %p455 = scmp.ne.s32.totalorder %s444, %s447
      %p456 = scmp.eq.s32.totalorder %s35, 1
      %p457 = por %p455, %p456
      %p458 = scmp.ne.s32.totalorder %s447, %s448
      %p459 = scmp.eq.s32.totalorder %s35, 0
      %p460 = por %p458, %p459
      %p461 = scmp.ne.s32.totalorder %s447, %s448
      %p462 = scmp.eq.s32.totalorder %s36, 1
      %p463 = por %p461, %p462
      %p465 = scmp.ne.s32.totalorder %s448, %s464
      %p466 = scmp.eq.s32.totalorder %s36, 0
      %p467 = por %p465, %p466
      %p468 = scmp.le.s32.totalorder 1, %s30
      %p469 = scmp.lt.s32.totalorder %s30, 3
      %p470 = pnand %p468, %p469
      %p471 = pneg %p470
      // Predicated region
      $region9: #{autoencoder2_forward.1} parent=5 // pred_check
        _
      $region10: #{autoencoder2_forward.1} parent=5 // pred_check_branch
        %473 = sbr.rel (%p470) target = $region12
      $region11: #{autoencoder2_forward.1} parent=5 // pred_region
        %s474 = ssub.s32 %s30, 1
        // Predicated region
        $region13: #{autoencoder2_forward.1} parent=11 // pred_check
          %p475 = pneg %p77
        $region14: #{autoencoder2_forward.1} parent=11 // pred_check_branch
          %477 = sbr.rel (%p475) target = $region16
        $region15: #{autoencoder2_forward.1} parent=11 // pred_region
          %479 = vsyncadd [#allocation3], 0
          %s480 = sshll.u32 %s1, 4
          %s481 = int_to_ptr.hbm [resolvable:$true] %s480
          %s482 = sshll.u32 [#allocation2], 4
          %s483 = int_to_ptr.vmem [resolvable:$true] %s482
          %488 = dma.hbm_to_vmem [thread:$0]  %s481, 768, %s483, [#allocation3], 128, 128, 8
        $region16: #{autoencoder2_forward.1} parent=11 // pred_fallthru
          _
        // Predicated region
        $region17: #{autoencoder2_forward.1} parent=11 // pred_check
          %p489 = pneg %p98
        $region18: #{autoencoder2_forward.1} parent=11 // pred_check_branch
          %491 = sbr.rel (%p489) target = $region20
        $region19: #{autoencoder2_forward.1} parent=11 // pred_region
          %493 = vsyncadd [#allocation5], 0
          %s494 = sshll.u32 %s2, 4
          %s495 = int_to_ptr.hbm [resolvable:$true] %s494
          %s496 = sshll.u32 [#allocation4], 4
          %s497 = int_to_ptr.vmem [resolvable:$true] %s496
          %502 = dma.hbm_to_vmem [thread:$0]  %s495, 4608, %s497, [#allocation5], 128, 128, 8
        $region20: #{autoencoder2_forward.1} parent=11 // pred_fallthru
          _
        // Predicated region
        $region21: #{autoencoder2_forward.1} parent=11 // pred_check
          %p503 = pneg %p119
        $region22: #{autoencoder2_forward.1} parent=11 // pred_check_branch
          %505 = sbr.rel (%p503) target = $region24
        $region23: #{autoencoder2_forward.1} parent=11 // pred_region
          _
        $region24: #{autoencoder2_forward.1} parent=11 // pred_fallthru
          _
        // Predicated region
        $region25: #{autoencoder2_forward.1} parent=11 // pred_check
          %p506 = pneg %p140
        $region26: #{autoencoder2_forward.1} parent=11 // pred_check_branch
          %508 = sbr.rel (%p506) target = $region28
        $region27: #{autoencoder2_forward.1} parent=11 // pred_region
          _
        $region28: #{autoencoder2_forward.1} parent=11 // pred_fallthru
          _
        // Predicated region
        $region29: #{autoencoder2_forward.1} parent=11 // pred_check
          %p509 = pneg %p161
        $region30: #{autoencoder2_forward.1} parent=11 // pred_check_branch
          %511 = sbr.rel (%p509) target = $region32
        $region31: #{autoencoder2_forward.1} parent=11 // pred_region
          _
        $region32: #{autoencoder2_forward.1} parent=11 // pred_fallthru
          _
        // Predicated region
        $region33: #{autoencoder2_forward.1} parent=11 // pred_check
          %p512 = pneg %p182
        $region34: #{autoencoder2_forward.1} parent=11 // pred_check_branch
          %514 = sbr.rel (%p512) target = $region36
        $region35: #{autoencoder2_forward.1} parent=11 // pred_region
          _
        $region36: #{autoencoder2_forward.1} parent=11 // pred_fallthru
          _
        // Predicated region
        $region37: #{autoencoder2_forward.1} parent=11 // pred_check
          %p515 = pneg %p203
        $region38: #{autoencoder2_forward.1} parent=11 // pred_check_branch
          %517 = sbr.rel (%p515) target = $region40
        $region39: #{autoencoder2_forward.1} parent=11 // pred_region
          %519 = vsyncadd [#allocation5], 0
          %s520 = sshll.u32 %s7, 4
          %s521 = int_to_ptr.hbm [resolvable:$true] %s520
          %s522 = sshll.u32 [#allocation6], 4
          %s523 = int_to_ptr.vmem [resolvable:$true] %s522
          %528 = dma.hbm_to_vmem [thread:$0]  %s521, 192, %s523, [#allocation5], 64, 64, 4
        $region40: #{autoencoder2_forward.1} parent=11 // pred_fallthru
          _
        // Predicated region
        $region41: #{autoencoder2_forward.1} parent=11 // pred_check
          %p529 = pneg %p224
        $region42: #{autoencoder2_forward.1} parent=11 // pred_check_branch
          %531 = sbr.rel (%p529) target = $region44
        $region43: #{autoencoder2_forward.1} parent=11 // pred_region
          _
        $region44: #{autoencoder2_forward.1} parent=11 // pred_fallthru
          _
        // Predicated region
        $region45: #{autoencoder2_forward.1} parent=11 // pred_check
          %p532 = pneg %p245
        $region46: #{autoencoder2_forward.1} parent=11 // pred_check_branch
          %534 = sbr.rel (%p532) target = $region48
        $region47: #{autoencoder2_forward.1} parent=11 // pred_region
          %536 = vsyncadd [#allocation8], 0
          %s538 = sshll.u32 %s9, 4
          %s539 = int_to_ptr.hbm [resolvable:$true] %s538
          %s540 = sshll.u32 [#allocation7], 4
          %s541 = int_to_ptr.vmem [resolvable:$true] %s540
          %543 = dma.hbm_to_vmem [thread:$0]  %s539, 32, %s541, [#allocation8]
        $region48: #{autoencoder2_forward.1} parent=11 // pred_fallthru
          _
        // Predicated region
        $region49: #{autoencoder2_forward.1} parent=11 // pred_check
          %p544 = pneg %p266
        $region50: #{autoencoder2_forward.1} parent=11 // pred_check_branch
          %546 = sbr.rel (%p544) target = $region52
        $region51: #{autoencoder2_forward.1} parent=11 // pred_region
          _
        $region52: #{autoencoder2_forward.1} parent=11 // pred_fallthru
          _
        // Predicated region
        $region53: #{autoencoder2_forward.1} parent=11 // pred_check
          %p547 = pneg %p287
        $region54: #{autoencoder2_forward.1} parent=11 // pred_check_branch
          %549 = sbr.rel (%p547) target = $region56
        $region55: #{autoencoder2_forward.1} parent=11 // pred_region
          %551 = vsyncadd [#allocation8], 0
          %s552 = sshll.u32 %s11, 4
          %s553 = int_to_ptr.hbm [resolvable:$true] %s552
          %s554 = sshll.u32 [#allocation9], 4
          %s555 = int_to_ptr.vmem [resolvable:$true] %s554
          %560 = dma.hbm_to_vmem [thread:$0]  %s553, 12288, %s555, [#allocation8], 128, 128, 8
        $region56: #{autoencoder2_forward.1} parent=11 // pred_fallthru
          _
        // Predicated region
        $region57: #{autoencoder2_forward.1} parent=11 // pred_check
          %p561 = pneg %p308
        $region58: #{autoencoder2_forward.1} parent=11 // pred_check_branch
          %563 = sbr.rel (%p561) target = $region60
        $region59: #{autoencoder2_forward.1} parent=11 // pred_region
          %565 = vsyncadd [#allocation11], 0
          %s567 = sshll.u32 %s12, 4
          %s568 = int_to_ptr.hbm [resolvable:$true] %s567
          %s569 = sshll.u32 [#allocation10], 4
          %s570 = int_to_ptr.vmem [resolvable:$true] %s569
          %572 = dma.hbm_to_vmem [thread:$0]  %s568, 32, %s570, [#allocation11]
        $region60: #{autoencoder2_forward.1} parent=11 // pred_fallthru
          _
        // Predicated region
        $region61: #{autoencoder2_forward.1} parent=11 // pred_check
          %p573 = pneg %p329
        $region62: #{autoencoder2_forward.1} parent=11 // pred_check_branch
          %575 = sbr.rel (%p573) target = $region64
        $region63: #{autoencoder2_forward.1} parent=11 // pred_region
          _
        $region64: #{autoencoder2_forward.1} parent=11 // pred_fallthru
          _
        // Predicated region
        $region65: #{autoencoder2_forward.1} parent=11 // pred_check
          %p576 = pneg %p350
        $region66: #{autoencoder2_forward.1} parent=11 // pred_check_branch
          %578 = sbr.rel (%p576) target = $region68
        $region67: #{autoencoder2_forward.1} parent=11 // pred_region
          %580 = vsyncadd [#allocation11], 0
          %s581 = sshll.u32 %s14, 4
          %s582 = int_to_ptr.hbm [resolvable:$true] %s581
          %s583 = sshll.u32 [#allocation12], 4
          %s584 = int_to_ptr.vmem [resolvable:$true] %s583
          %589 = dma.hbm_to_vmem [thread:$0]  %s582, 12288, %s584, [#allocation11], 128, 128, 8
        $region68: #{autoencoder2_forward.1} parent=11 // pred_fallthru
          _
        // Predicated region
        $region69: #{autoencoder2_forward.1} parent=11 // pred_check
          %p590 = pneg %p371
        $region70: #{autoencoder2_forward.1} parent=11 // pred_check_branch
          %592 = sbr.rel (%p590) target = $region72
        $region71: #{autoencoder2_forward.1} parent=11 // pred_region
          %594 = vsyncadd [#allocation14], 0
          %s596 = sshll.u32 %s15, 4
          %s597 = int_to_ptr.hbm [resolvable:$true] %s596
          %s598 = sshll.u32 [#allocation13], 4
          %s599 = int_to_ptr.vmem [resolvable:$true] %s598
          %601 = dma.hbm_to_vmem [thread:$0]  %s597, 32, %s599, [#allocation14]
        $region72: #{autoencoder2_forward.1} parent=11 // pred_fallthru
          _
        // Predicated region
        $region73: #{autoencoder2_forward.1} parent=11 // pred_check
          %p602 = pneg %p392
        $region74: #{autoencoder2_forward.1} parent=11 // pred_check_branch
          %604 = sbr.rel (%p602) target = $region76
        $region75: #{autoencoder2_forward.1} parent=11 // pred_region
          _
        $region76: #{autoencoder2_forward.1} parent=11 // pred_fallthru
          _
        // Predicated region
        $region77: #{autoencoder2_forward.1} parent=11 // pred_check
          %p605 = pneg %p413
        $region78: #{autoencoder2_forward.1} parent=11 // pred_check_branch
          %607 = sbr.rel (%p605) target = $region80
        $region79: #{autoencoder2_forward.1} parent=11 // pred_region
          _
        $region80: #{autoencoder2_forward.1} parent=11 // pred_fallthru
          _
        // Predicated region
        $region81: #{autoencoder2_forward.1} parent=11 // pred_check
          %p608 = pneg %p434
        $region82: #{autoencoder2_forward.1} parent=11 // pred_check_branch
          %610 = sbr.rel (%p608) target = $region84
        $region83: #{autoencoder2_forward.1} parent=11 // pred_region
          _
        $region84: #{autoencoder2_forward.1} parent=11 // pred_fallthru
          _
      $region12: #{autoencoder2_forward.1} parent=5 // pred_fallthru
        _
      %p611 = scmp.lt.s32.totalorder %s30, 2
      // Predicated region
      $region85: #{autoencoder2_forward.1} parent=5 // pred_check
        %p612 = pneg %p611
      $region86: #{autoencoder2_forward.1} parent=5 // pred_check_branch
        %614 = sbr.rel (%p612) target = $region88
      $region87: #{autoencoder2_forward.1} parent=5 // pred_region
        // Predicated region
        $region89: #{autoencoder2_forward.1} parent=87 // pred_check
          %p615 = pneg %p50
        $region90: #{autoencoder2_forward.1} parent=87 // pred_check_branch
          %617 = sbr.rel (%p615) target = $region92
        $region91: #{autoencoder2_forward.1} parent=87 // pred_region
          %p618 = scmp.lt.s32.totalorder %s30, 1
          %s619 = scalar_select %p618, %s30, 1
          %s620 = smul.addr %s619, 4
          %s621 = smul.addr %s620, 8
          %s622 = scalar_lea.vmem %s0, %s621
        $region92: #{autoencoder2_forward.1} parent=87 // pred_fallthru
          _
      $region88: #{autoencoder2_forward.1} parent=5 // pred_fallthru
        _
      %p623 = scmp.le.s32.totalorder 1, %s30
      %p624 = scmp.lt.s32.totalorder %s30, 3
      %p625 = pnand %p623, %p624
      %p626 = pneg %p625
      // Predicated region
      $region93: #{autoencoder2_forward.1} parent=5 // pred_check
        _
      $region94: #{autoencoder2_forward.1} parent=5 // pred_check_branch
        %628 = sbr.rel (%p625) target = $region96
      $region95: #{autoencoder2_forward.1} parent=5 // pred_region
        %s629 = ssub.s32 %s30, 1
        // Predicated region
        $region97: #{autoencoder2_forward.1} parent=95 // pred_check
          %p630 = pneg %p77
        $region98: #{autoencoder2_forward.1} parent=95 // pred_check_branch
          %632 = sbr.rel (%p630) target = $region100
        $region99: #{autoencoder2_forward.1} parent=95 // pred_region
          %634 = dma.done [#allocation3], 768
        $region100: #{autoencoder2_forward.1} parent=95 // pred_fallthru
          _
        // Predicated region
        $region101: #{autoencoder2_forward.1} parent=95 // pred_check
          %p635 = pneg %p98
        $region102: #{autoencoder2_forward.1} parent=95 // pred_check_branch
          %637 = sbr.rel (%p635) target = $region104
        $region103: #{autoencoder2_forward.1} parent=95 // pred_region
          %639 = dma.done [#allocation5], 4608
        $region104: #{autoencoder2_forward.1} parent=95 // pred_fallthru
          _
        // Predicated region
        $region105: #{autoencoder2_forward.1} parent=95 // pred_check
          %p640 = pneg %p203
        $region106: #{autoencoder2_forward.1} parent=95 // pred_check_branch
          %642 = sbr.rel (%p640) target = $region108
        $region107: #{autoencoder2_forward.1} parent=95 // pred_region
          %644 = dma.done [#allocation5], 192
        $region108: #{autoencoder2_forward.1} parent=95 // pred_fallthru
          _
        // Predicated region
        $region109: #{autoencoder2_forward.1} parent=95 // pred_check
          %p645 = pneg %p245
        $region110: #{autoencoder2_forward.1} parent=95 // pred_check_branch
          %647 = sbr.rel (%p645) target = $region112
        $region111: #{autoencoder2_forward.1} parent=95 // pred_region
          %649 = dma.done [#allocation8], 32
        $region112: #{autoencoder2_forward.1} parent=95 // pred_fallthru
          _
        // Predicated region
        $region113: #{autoencoder2_forward.1} parent=95 // pred_check
          %p650 = pneg %p287
        $region114: #{autoencoder2_forward.1} parent=95 // pred_check_branch
          %652 = sbr.rel (%p650) target = $region116
        $region115: #{autoencoder2_forward.1} parent=95 // pred_region
          %654 = dma.done [#allocation8], 12288
        $region116: #{autoencoder2_forward.1} parent=95 // pred_fallthru
          _
        // Predicated region
        $region117: #{autoencoder2_forward.1} parent=95 // pred_check
          %p655 = pneg %p308
        $region118: #{autoencoder2_forward.1} parent=95 // pred_check_branch
          %657 = sbr.rel (%p655) target = $region120
        $region119: #{autoencoder2_forward.1} parent=95 // pred_region
          %659 = dma.done [#allocation11], 32
        $region120: #{autoencoder2_forward.1} parent=95 // pred_fallthru
          _
        // Predicated region
        $region121: #{autoencoder2_forward.1} parent=95 // pred_check
          %p660 = pneg %p350
        $region122: #{autoencoder2_forward.1} parent=95 // pred_check_branch
          %662 = sbr.rel (%p660) target = $region124
        $region123: #{autoencoder2_forward.1} parent=95 // pred_region
          %664 = dma.done [#allocation11], 12288
        $region124: #{autoencoder2_forward.1} parent=95 // pred_fallthru
          _
        // Predicated region
        $region125: #{autoencoder2_forward.1} parent=95 // pred_check
          %p665 = pneg %p371
        $region126: #{autoencoder2_forward.1} parent=95 // pred_check_branch
          %667 = sbr.rel (%p665) target = $region128
        $region127: #{autoencoder2_forward.1} parent=95 // pred_region
          %669 = dma.done [#allocation14], 32
        $region128: #{autoencoder2_forward.1} parent=95 // pred_fallthru
          _
        %p670 = scmp.lt.s32.totalorder %s35, 1
        %s671 = scalar_select %p670, %s35, 1
        %s672 = smul.addr %s671, 4
        %s673 = smul.addr %s672, 8
        %s674 = scalar_lea.vmem %s0, %s673
        %p675 = pneg %p56
        %p676 = pneg %p53
        %p677 = pneg %p77
        %p678 = pneg %p74
        %p679 = pneg %p98
        %p680 = pneg %p95
        %p681 = pneg %p119
        %p682 = pneg %p116
        %p683 = pneg %p140
        %p684 = pneg %p137
        %p685 = pneg %p161
        %p686 = pneg %p158
        %p687 = pneg %p182
        %p688 = pneg %p179
        %p689 = pneg %p203
        %p690 = pneg %p200
        %p691 = pneg %p224
        %p692 = pneg %p221
        %p693 = pneg %p245
        %p694 = pneg %p242
        %p695 = pneg %p266
        %p696 = pneg %p263
        %p697 = pneg %p287
        %p698 = pneg %p284
        %p699 = pneg %p308
        %p700 = pneg %p305
        %p701 = pneg %p329
        %p702 = pneg %p326
        %p703 = pneg %p350
        %p704 = pneg %p347
        %p705 = pneg %p371
        %p706 = pneg %p368
        %p707 = pneg %p392
        %p708 = pneg %p389
        %p709 = pneg %p413
        %p710 = pneg %p410
        %p711 = pneg %p434
        %p712 = pneg %p431
        %p713 = pneg %p460
        %p714 = pneg %p457
        %p715 = scmp.lt.s32.totalorder %s35, 1
        %s716 = scalar_select %p715, %s35, 1
        %s717 = smul.addr %s716, 4
        %s718 = smul.addr %s717, 8
        %s719 = scalar_lea.vmem %s19, %s718
        %p720 = scmp.lt.s32.totalorder %s35, 1
        %s721 = scalar_select %p720, %s35, 1
        %s722 = smul.addr %s721, 4
        %s723 = smul.addr %s722, 8
        %s724 = scalar_lea.vmem %s0, %s723
        %p725 = scmp.lt.s32.totalorder %s35, 1
        %s726 = scalar_select %p725, %s35, 1
        %s727 = smul.addr %s726, 4
        %s728 = smul.addr %s727, 8
        %s729 = scalar_lea.vmem %s19, %s728
        %v731 = vld [vmem:[%s724] sm:$0xff]
        %v732 = vld [vmem:[%s724 + $0x8] sm:$0xff]
        %v733 = vld [vmem:[%s724 + $0x10] sm:$0xff]
        %v734 = vld [vmem:[%s724 + $0x18] sm:$0xff]
        %v735 = vld [vmem:[#allocation2] sm:$0xff]
        %v736 = vld [vmem:[#allocation2 + $0x8] sm:$0xff]
        %vm737 = vcmask 261120
        %v739 = vsel %vm737, %v735, 0
        %v742 = vsel %vm737, %v736, 0
        %744 = vmatpush.msra.mxu0 0.0
        %745 = vmatpush.msra.mxu0 0.0
        %746 = vmatpush.msra.mxu0 0.0
        %747 = vmatpush.msra.mxu0 0.0
        %748 = vmatpush.msra.mxu0 0.0
        %749 = vmatpush.msra.mxu0 0.0
        %750 = vmatpush.msra.mxu0 0.0
        %751 = vmatpush.msra.mxu0 0.0
        %752 = vmatpush.msra.mxu0 0.0
        %753 = vmatpush.msra.mxu0 0.0
        %754 = vmatpush.msra.mxu0 0.0
        %755 = vmatpush.msra.mxu0 0.0
        %756 = vmatpush.msra.mxu0 %v734
        %757 = vmatpush.msra.mxu0 %v733
        %758 = vmatpush.msra.mxu0 %v732
        %759 = vmatpush.msra.mxu0 %v731
        %760 = vmatmul.f32.gmra.mxu0 %v739
        %v761 = vpop.f32.mrf.mxu0
        %v762 = vadd.f32 0.0, %v761
        %763 = vmatmul.f32.gmra.mxu0 %v742
        %v764 = vpop.f32.mrf.mxu0
        %v765 = vadd.f32 0.0, %v764
        %766 = vdwg.mxu0
        %v767 = vpack.c.bf16 %v765, %v762
        %v768 = vld [vmem:[#allocation4] sm:$0xff]
        %v769 = vld [vmem:[#allocation4 + $0x8] sm:$0xff]
        %v770 = vld [vmem:[#allocation4 + $0x10] sm:$0xff]
        %v771 = vld [vmem:[#allocation4 + $0x18] sm:$0xff]
        %v772 = vld [vmem:[#allocation4 + $0x20] sm:$0xff]
        %v773 = vld [vmem:[#allocation4 + $0x28] sm:$0xff]
        %v774 = vld [vmem:[#allocation4 + $0x30] sm:$0xff]
        %v775 = vld [vmem:[#allocation4 + $0x38] sm:$0xff]
        %v776 = vld [vmem:[#allocation4 + $0x40] sm:$0xff]
        %v777 = vld [vmem:[#allocation4 + $0x48] sm:$0xff]
        %v778 = vld [vmem:[#allocation4 + $0x50] sm:$0xff]
        %v779 = vld [vmem:[#allocation4 + $0x58] sm:$0xff]
        %s780 = scalar_lea.vmem [#allocation2], 16
        %v781 = vld [vmem:[%s780] sm:$0xff]
        %v782 = vld [vmem:[%s780 + $0x8] sm:$0xff]
        %v784 = vsel %vm737, %v781, 0
        %v787 = vsel %vm737, %v782, 0
        %789 = vmatpush.msra.mxu0 0.0
        %790 = vmatpush.msra.mxu0 0.0
        %791 = vmatpush.msra.mxu0 0.0
        %792 = vmatpush.msra.mxu0 0.0
        %793 = vmatpush.msra.mxu0 0.0
        %794 = vmatpush.msra.mxu0 0.0
        %795 = vmatpush.msra.mxu0 0.0
        %796 = vmatpush.msra.mxu0 0.0
        %797 = vmatpush.msra.mxu0 0.0
        %798 = vmatpush.msra.mxu0 0.0
        %799 = vmatpush.msra.mxu0 0.0
        %800 = vmatpush.msra.mxu0 0.0
        %801 = vmatpush.msra.mxu0 %v734
        %802 = vmatpush.msra.mxu0 %v733
        %803 = vmatpush.msra.mxu0 %v732
        %804 = vmatpush.msra.mxu0 %v731
        %805 = vmatmul.f32.gmra.mxu0 %v784
        %v806 = vpop.f32.mrf.mxu0
        %v807 = vadd.f32 0.0, %v806
        %808 = vmatmul.f32.gmra.mxu0 %v787
        %v809 = vpop.f32.mrf.mxu0
        %v810 = vadd.f32 0.0, %v809
        %811 = vdwg.mxu0
        %v812 = vpack.c.bf16 %v810, %v807
        %s813 = scalar_lea.vmem [#allocation4], 96
        %v814 = vld [vmem:[%s813] sm:$0xff]
        %v815 = vld [vmem:[%s813 + $0x8] sm:$0xff]
        %v816 = vld [vmem:[%s813 + $0x10] sm:$0xff]
        %v817 = vld [vmem:[%s813 + $0x18] sm:$0xff]
        %v818 = vld [vmem:[%s813 + $0x20] sm:$0xff]
        %v819 = vld [vmem:[%s813 + $0x28] sm:$0xff]
        %v820 = vld [vmem:[%s813 + $0x30] sm:$0xff]
        %v821 = vld [vmem:[%s813 + $0x38] sm:$0xff]
        %v822 = vld [vmem:[%s813 + $0x40] sm:$0xff]
        %v823 = vld [vmem:[%s813 + $0x48] sm:$0xff]
        %v824 = vld [vmem:[%s813 + $0x50] sm:$0xff]
        %v825 = vld [vmem:[%s813 + $0x58] sm:$0xff]
        %v838 = vunpack.c.l.b16 %v814
        %v839 = vunpack.c.h.b16 %v814
        %v840 = vunpack.c.l.b16 %v815
        %v841 = vunpack.c.h.b16 %v815
        %v842 = vunpack.c.l.b16 %v816
        %v843 = vunpack.c.h.b16 %v816
        %v844 = vunpack.c.l.b16 %v817
        %v845 = vunpack.c.h.b16 %v817
        %v846 = vunpack.c.l.b16 %v818
        %v847 = vunpack.c.h.b16 %v818
        %v848 = vunpack.c.l.b16 %v819
        %v849 = vunpack.c.h.b16 %v819
        %v850 = vunpack.c.l.b16 %v820
        %v851 = vunpack.c.h.b16 %v820
        %v852 = vunpack.c.l.b16 %v821
        %v853 = vunpack.c.h.b16 %v821
        %v854 = vunpack.c.l.b16 %v822
        %v855 = vunpack.c.h.b16 %v822
        %v856 = vunpack.c.l.b16 %v823
        %v857 = vunpack.c.h.b16 %v823
        %v858 = vunpack.c.l.b16 %v824
        %v859 = vunpack.c.h.b16 %v824
        %v860 = vunpack.c.l.b16 %v825
        %v861 = vunpack.c.h.b16 %v825
        %v862 = vpack.c.b16 %v840, %v838
        %v863 = vpack.c.b16 %v841, %v839
        %v864 = vpack.c.b16 %v844, %v842
        %v865 = vpack.c.b16 %v845, %v843
        %v866 = vpack.c.b16 %v848, %v846
        %v867 = vpack.c.b16 %v849, %v847
        %v868 = vpack.c.b16 %v852, %v850
        %v869 = vpack.c.b16 %v853, %v851
        %v870 = vpack.c.b16 %v856, %v854
        %v871 = vpack.c.b16 %v857, %v855
        %v872 = vpack.c.b16 %v860, %v858
        %v873 = vpack.c.b16 %v861, %v859
        %vm886 = vcmask 785408
        %v888 = vsel %vm886, %v812, 0
        %890 = vmatpush.bf16.msra.mxu0 0
        %891 = vmatpush.bf16.msra.mxu0 0
        %892 = vmatpush.bf16.msra.mxu0 %v872
        %893 = vmatpush.bf16.msra.mxu0 %v870
        %894 = vmatpush.bf16.msra.mxu0 %v868
        %895 = vmatpush.bf16.msra.mxu0 %v866
        %896 = vmatpush.bf16.msra.mxu0 %v864
        %897 = vmatpush.bf16.msra.mxu0 %v862
        %898 = vmatmul.bf16.gmra.mxu0 %v888
        %v899 = vpop.f32.mrf.mxu0
        %v900 = vadd.f32 0.0, %v899
        %v901 = vpop.f32.mrf.mxu0
        %v902 = vadd.f32 0.0, %v901
        %903 = vdwg.mxu0
        %904 = vmatpush.bf16.msra.mxu0 0
        %905 = vmatpush.bf16.msra.mxu0 0
        %906 = vmatpush.bf16.msra.mxu0 %v873
        %907 = vmatpush.bf16.msra.mxu0 %v871
        %908 = vmatpush.bf16.msra.mxu0 %v869
        %909 = vmatpush.bf16.msra.mxu0 %v867
        %910 = vmatpush.bf16.msra.mxu0 %v865
        %911 = vmatpush.bf16.msra.mxu0 %v863
        %912 = vmatmul.bf16.gmra.mxu0 %v888
        %v913 = vpop.f32.mrf.mxu0
        %v914 = vadd.f32 0.0, %v913
        %v915 = vpop.f32.mrf.mxu0
        %v916 = vadd.f32 0.0, %v915
        %917 = vdwg.mxu0
        %v930 = vunpack.c.l.b16 %v768
        %v931 = vunpack.c.h.b16 %v768
        %v932 = vunpack.c.l.b16 %v769
        %v933 = vunpack.c.h.b16 %v769
        %v934 = vunpack.c.l.b16 %v770
        %v935 = vunpack.c.h.b16 %v770
        %v936 = vunpack.c.l.b16 %v771
        %v937 = vunpack.c.h.b16 %v771
        %v938 = vunpack.c.l.b16 %v772
        %v939 = vunpack.c.h.b16 %v772
        %v940 = vunpack.c.l.b16 %v773
        %v941 = vunpack.c.h.b16 %v773
        %v942 = vunpack.c.l.b16 %v774
        %v943 = vunpack.c.h.b16 %v774
        %v944 = vunpack.c.l.b16 %v775
        %v945 = vunpack.c.h.b16 %v775
        %v946 = vunpack.c.l.b16 %v776
        %v947 = vunpack.c.h.b16 %v776
        %v948 = vunpack.c.l.b16 %v777
        %v949 = vunpack.c.h.b16 %v777
        %v950 = vunpack.c.l.b16 %v778
        %v951 = vunpack.c.h.b16 %v778
        %v952 = vunpack.c.l.b16 %v779
        %v953 = vunpack.c.h.b16 %v779
        %v954 = vpack.c.b16 %v932, %v930
        %v955 = vpack.c.b16 %v933, %v931
        %v956 = vpack.c.b16 %v936, %v934
        %v957 = vpack.c.b16 %v937, %v935
        %v958 = vpack.c.b16 %v940, %v938
        %v959 = vpack.c.b16 %v941, %v939
        %v960 = vpack.c.b16 %v944, %v942
        %v961 = vpack.c.b16 %v945, %v943
        %v962 = vpack.c.b16 %v948, %v946
        %v963 = vpack.c.b16 %v949, %v947
        %v964 = vpack.c.b16 %v952, %v950
        %v965 = vpack.c.b16 %v953, %v951
        %v979 = vsel %vm886, %v767, 0
        %981 = vmatpush.bf16.msra.mxu0 0
        %982 = vmatpush.bf16.msra.mxu0 0
        %983 = vmatpush.bf16.msra.mxu0 %v964
        %984 = vmatpush.bf16.msra.mxu0 %v962
        %985 = vmatpush.bf16.msra.mxu0 %v960
        %986 = vmatpush.bf16.msra.mxu0 %v958
        %987 = vmatpush.bf16.msra.mxu0 %v956
        %988 = vmatpush.bf16.msra.mxu0 %v954
        %989 = vmatmul.bf16.gmra.mxu0 %v979
        %v990 = vpop.f32.mrf.mxu0
        %v991 = vadd.f32 %v900, %v990
        %v992 = vpop.f32.mrf.mxu0
        %v993 = vadd.f32 %v902, %v992
        %994 = vdwg.mxu0
        %995 = vmatpush.bf16.msra.mxu0 0
        %996 = vmatpush.bf16.msra.mxu0 0
        %997 = vmatpush.bf16.msra.mxu0 %v965
        %998 = vmatpush.bf16.msra.mxu0 %v963
        %999 = vmatpush.bf16.msra.mxu0 %v961
        %1000 = vmatpush.bf16.msra.mxu0 %v959
        %1001 = vmatpush.bf16.msra.mxu0 %v957
        %1002 = vmatpush.bf16.msra.mxu0 %v955
        %1003 = vmatmul.bf16.gmra.mxu0 %v979
        %v1004 = vpop.f32.mrf.mxu0
        %v1005 = vadd.f32 %v914, %v1004
        %v1006 = vpop.f32.mrf.mxu0
        %v1007 = vadd.f32 %v916, %v1006
        %1008 = vdwg.mxu0
        %s1009 = scalar_lea.vmem [#allocation2], 32
        %v1010 = vld [vmem:[%s1009] sm:$0xff]
        %v1011 = vld [vmem:[%s1009 + $0x8] sm:$0xff]
        %v1013 = vsel %vm737, %v1010, 0
        %v1016 = vsel %vm737, %v1011, 0
        %1018 = vmatpush.msra.mxu0 0.0
        %1019 = vmatpush.msra.mxu0 0.0
        %1020 = vmatpush.msra.mxu0 0.0
        %1021 = vmatpush.msra.mxu0 0.0
        %1022 = vmatpush.msra.mxu0 0.0
        %1023 = vmatpush.msra.mxu0 0.0
        %1024 = vmatpush.msra.mxu0 0.0
        %1025 = vmatpush.msra.mxu0 0.0
        %1026 = vmatpush.msra.mxu0 0.0
        %1027 = vmatpush.msra.mxu0 0.0
        %1028 = vmatpush.msra.mxu0 0.0
        %1029 = vmatpush.msra.mxu0 0.0
        %1030 = vmatpush.msra.mxu0 %v734
        %1031 = vmatpush.msra.mxu0 %v733
        %1032 = vmatpush.msra.mxu0 %v732
        %1033 = vmatpush.msra.mxu0 %v731
        %1034 = vmatmul.f32.gmra.mxu0 %v1013
        %v1035 = vpop.f32.mrf.mxu0
        %v1036 = vadd.f32 0.0, %v1035
        %1037 = vmatmul.f32.gmra.mxu0 %v1016
        %v1038 = vpop.f32.mrf.mxu0
        %v1039 = vadd.f32 0.0, %v1038
        %1040 = vdwg.mxu0
        %v1041 = vpack.c.bf16 %v1039, %v1036
        %s1042 = scalar_lea.vmem [#allocation4], 192
        %v1043 = vld [vmem:[%s1042] sm:$0xff]
        %v1044 = vld [vmem:[%s1042 + $0x8] sm:$0xff]
        %v1045 = vld [vmem:[%s1042 + $0x10] sm:$0xff]
        %v1046 = vld [vmem:[%s1042 + $0x18] sm:$0xff]
        %v1047 = vld [vmem:[%s1042 + $0x20] sm:$0xff]
        %v1048 = vld [vmem:[%s1042 + $0x28] sm:$0xff]
        %v1049 = vld [vmem:[%s1042 + $0x30] sm:$0xff]
        %v1050 = vld [vmem:[%s1042 + $0x38] sm:$0xff]
        %v1051 = vld [vmem:[%s1042 + $0x40] sm:$0xff]
        %v1052 = vld [vmem:[%s1042 + $0x48] sm:$0xff]
        %v1053 = vld [vmem:[%s1042 + $0x50] sm:$0xff]
        %v1054 = vld [vmem:[%s1042 + $0x58] sm:$0xff]
        %v1067 = vunpack.c.l.b16 %v1043
        %v1068 = vunpack.c.h.b16 %v1043
        %v1069 = vunpack.c.l.b16 %v1044
        %v1070 = vunpack.c.h.b16 %v1044
        %v1071 = vunpack.c.l.b16 %v1045
        %v1072 = vunpack.c.h.b16 %v1045
        %v1073 = vunpack.c.l.b16 %v1046
        %v1074 = vunpack.c.h.b16 %v1046
        %v1075 = vunpack.c.l.b16 %v1047
        %v1076 = vunpack.c.h.b16 %v1047
        %v1077 = vunpack.c.l.b16 %v1048
        %v1078 = vunpack.c.h.b16 %v1048
        %v1079 = vunpack.c.l.b16 %v1049
        %v1080 = vunpack.c.h.b16 %v1049
        %v1081 = vunpack.c.l.b16 %v1050
        %v1082 = vunpack.c.h.b16 %v1050
        %v1083 = vunpack.c.l.b16 %v1051
        %v1084 = vunpack.c.h.b16 %v1051
        %v1085 = vunpack.c.l.b16 %v1052
        %v1086 = vunpack.c.h.b16 %v1052
        %v1087 = vunpack.c.l.b16 %v1053
        %v1088 = vunpack.c.h.b16 %v1053
        %v1089 = vunpack.c.l.b16 %v1054
        %v1090 = vunpack.c.h.b16 %v1054
        %v1091 = vpack.c.b16 %v1069, %v1067
        %v1092 = vpack.c.b16 %v1070, %v1068
        %v1093 = vpack.c.b16 %v1073, %v1071
        %v1094 = vpack.c.b16 %v1074, %v1072
        %v1095 = vpack.c.b16 %v1077, %v1075
        %v1096 = vpack.c.b16 %v1078, %v1076
        %v1097 = vpack.c.b16 %v1081, %v1079
        %v1098 = vpack.c.b16 %v1082, %v1080
        %v1099 = vpack.c.b16 %v1085, %v1083
        %v1100 = vpack.c.b16 %v1086, %v1084
        %v1101 = vpack.c.b16 %v1089, %v1087
        %v1102 = vpack.c.b16 %v1090, %v1088
        %v1116 = vsel %vm886, %v1041, 0
        %1118 = vmatpush.bf16.msra.mxu0 0
        %1119 = vmatpush.bf16.msra.mxu0 0
        %1120 = vmatpush.bf16.msra.mxu0 %v1101
        %1121 = vmatpush.bf16.msra.mxu0 %v1099
        %1122 = vmatpush.bf16.msra.mxu0 %v1097
        %1123 = vmatpush.bf16.msra.mxu0 %v1095
        %1124 = vmatpush.bf16.msra.mxu0 %v1093
        %1125 = vmatpush.bf16.msra.mxu0 %v1091
        %1126 = vmatmul.bf16.gmra.mxu0 %v1116
        %v1127 = vpop.f32.mrf.mxu0
        %v1128 = vadd.f32 0.0, %v1127
        %v1129 = vpop.f32.mrf.mxu0
        %v1130 = vadd.f32 0.0, %v1129
        %1131 = vdwg.mxu0
        %1132 = vmatpush.bf16.msra.mxu0 0
        %1133 = vmatpush.bf16.msra.mxu0 0
        %1134 = vmatpush.bf16.msra.mxu0 %v1102
        %1135 = vmatpush.bf16.msra.mxu0 %v1100
        %1136 = vmatpush.bf16.msra.mxu0 %v1098
        %1137 = vmatpush.bf16.msra.mxu0 %v1096
        %1138 = vmatpush.bf16.msra.mxu0 %v1094
        %1139 = vmatpush.bf16.msra.mxu0 %v1092
        %1140 = vmatmul.bf16.gmra.mxu0 %v1116
        %v1141 = vpop.f32.mrf.mxu0
        %v1142 = vadd.f32 0.0, %v1141
        %v1143 = vpop.f32.mrf.mxu0
        %v1144 = vadd.f32 0.0, %v1143
        %1145 = vdwg.mxu0
        %v1146 = vadd.f32 %v991, %v1128
        %v1147 = vadd.f32 %v1005, %v1142
        %v1148 = vadd.f32 %v993, %v1130
        %v1149 = vadd.f32 %v1007, %v1144
        %v1150 = vld [vmem:[%s3] sm:$0x3]
        %v1152 = vperm.slane %v1150, 0
        %v1153 = vperm.slane %v1150, 1
        %v1156 = vadd.f32 %v1146, %v1152
        %v1157 = vadd.f32 %v1147, %v1153
        %v1158 = vadd.f32 %v1148, %v1152
        %v1159 = vadd.f32 %v1149, %v1153
        %v1160 = vmax.f32 %v1156, 0.0
        %v1161 = vmax.f32 %v1157, 0.0
        %v1162 = vmax.f32 %v1158, 0.0
        %v1163 = vmax.f32 %v1159, 0.0
        %v1164 = vld [vmem:[%s4] sm:$0xff]
        %vm1165 = vcmask 130048
        %v1167 = vsel %vm1165, %v1164, 0
        %1169 = vmatpush.msra.mxu0 0.0
        %1170 = vmatpush.msra.mxu0 0.0
        %1171 = vmatpush.msra.mxu0 0.0
        %1172 = vmatpush.msra.mxu0 0.0
        %1173 = vmatpush.msra.mxu0 0.0
        %1174 = vmatpush.msra.mxu0 0.0
        %1175 = vmatpush.msra.mxu0 0.0
        %1176 = vmatpush.msra.mxu0 0.0
        %1177 = vmatpush.msra.mxu0 0.0
        %1178 = vmatpush.msra.mxu0 0.0
        %1179 = vmatpush.msra.mxu0 0.0
        %1180 = vmatpush.msra.mxu0 0.0
        %1181 = vmatpush.msra.mxu0 0.0
        %1182 = vmatpush.msra.mxu0 0.0
        %1183 = vmatpush.msra.mxu0 %v1162
        %1184 = vmatpush.msra.mxu0 %v1160
        %1185 = vmatmul.f32.gmra.mxu0 %v1167
        %v1186 = vpop.f32.mrf.mxu0
        %v1187 = vadd.f32 0.0, %v1186
        %1188 = vdwg.mxu0
        %1189 = vmatpush.msra.mxu0 0.0
        %1190 = vmatpush.msra.mxu0 0.0
        %1191 = vmatpush.msra.mxu0 0.0
        %1192 = vmatpush.msra.mxu0 0.0
        %1193 = vmatpush.msra.mxu0 0.0
        %1194 = vmatpush.msra.mxu0 0.0
        %1195 = vmatpush.msra.mxu0 0.0
        %1196 = vmatpush.msra.mxu0 0.0
        %1197 = vmatpush.msra.mxu0 0.0
        %1198 = vmatpush.msra.mxu0 0.0
        %1199 = vmatpush.msra.mxu0 0.0
        %1200 = vmatpush.msra.mxu0 0.0
        %1201 = vmatpush.msra.mxu0 0.0
        %1202 = vmatpush.msra.mxu0 0.0
        %1203 = vmatpush.msra.mxu0 %v1163
        %1204 = vmatpush.msra.mxu0 %v1161
        %1205 = vmatmul.f32.gmra.mxu0 %v1167
        %v1206 = vpop.f32.mrf.mxu0
        %v1207 = vadd.f32 0.0, %v1206
        %1208 = vdwg.mxu0
        %v1209 = vpack.c.bf16 %v1187, %v1187
        %v1210 = vpack.c.bf16 %v1207, %v1207
        %v1211 = vld [vmem:[%s5] sm:$0xff]
        %v1212 = vld [vmem:[%s5 + $0x8] sm:$0xff]
        %v1213 = vld [vmem:[%s5 + $0x10] sm:$0xff]
        %v1214 = vld [vmem:[%s5 + $0x18] sm:$0xff]
        %v1215 = vld [vmem:[%s5 + $0x20] sm:$0xff]
        %v1216 = vld [vmem:[%s5 + $0x28] sm:$0xff]
        %v1217 = vld [vmem:[%s5 + $0x30] sm:$0xff]
        %v1218 = vld [vmem:[%s5 + $0x38] sm:$0xff]
        %v1219 = vld [vmem:[%s5 + $0x40] sm:$0xff]
        %v1220 = vld [vmem:[%s5 + $0x48] sm:$0xff]
        %v1221 = vld [vmem:[%s5 + $0x50] sm:$0xff]
        %v1222 = vld [vmem:[%s5 + $0x58] sm:$0xff]
        %v1223 = vld [vmem:[%s5 + $0x60] sm:$0xff]
        %v1224 = vld [vmem:[%s5 + $0x68] sm:$0xff]
        %v1225 = vld [vmem:[%s5 + $0x70] sm:$0xff]
        %v1226 = vld [vmem:[%s5 + $0x78] sm:$0xff]
        %v1227 = vld [vmem:[%s5 + $0x80] sm:$0xff]
        %v1228 = vld [vmem:[%s5 + $0x88] sm:$0xff]
        %v1229 = vld [vmem:[%s5 + $0x90] sm:$0xff]
        %v1230 = vld [vmem:[%s5 + $0x98] sm:$0xff]
        %v1231 = vld [vmem:[%s5 + $0xa0] sm:$0xff]
        %v1232 = vld [vmem:[%s5 + $0xa8] sm:$0xff]
        %v1233 = vld [vmem:[%s5 + $0xb0] sm:$0xff]
        %v1234 = vld [vmem:[%s5 + $0xb8] sm:$0xff]
        %v1235 = vld [vmem:[%s5 + $0xc0] sm:$0xff]
        %v1236 = vld [vmem:[%s5 + $0xc8] sm:$0xff]
        %v1237 = vld [vmem:[%s5 + $0xd0] sm:$0xff]
        %v1238 = vld [vmem:[%s5 + $0xd8] sm:$0xff]
        %v1239 = vld [vmem:[%s5 + $0xe0] sm:$0xff]
        %v1240 = vld [vmem:[%s5 + $0xe8] sm:$0xff]
        %v1241 = vld [vmem:[%s5 + $0xf0] sm:$0xff]
        %v1242 = vld [vmem:[%s5 + $0xf8] sm:$0xff]
        %s1243 = scalar_lea.vmem %s4, 8
        %v1244 = vld [vmem:[%s1243] sm:$0xff]
        %v1246 = vsel %vm1165, %v1244, 0
        %1248 = vmatpush.msra.mxu0 0.0
        %1249 = vmatpush.msra.mxu0 0.0
        %1250 = vmatpush.msra.mxu0 0.0
        %1251 = vmatpush.msra.mxu0 0.0
        %1252 = vmatpush.msra.mxu0 0.0
        %1253 = vmatpush.msra.mxu0 0.0
        %1254 = vmatpush.msra.mxu0 0.0
        %1255 = vmatpush.msra.mxu0 0.0
        %1256 = vmatpush.msra.mxu0 0.0
        %1257 = vmatpush.msra.mxu0 0.0
        %1258 = vmatpush.msra.mxu0 0.0
        %1259 = vmatpush.msra.mxu0 0.0
        %1260 = vmatpush.msra.mxu0 0.0
        %1261 = vmatpush.msra.mxu0 0.0
        %1262 = vmatpush.msra.mxu0 %v1162
        %1263 = vmatpush.msra.mxu0 %v1160
        %1264 = vmatmul.f32.gmra.mxu0 %v1246
        %v1265 = vpop.f32.mrf.mxu0
        %v1266 = vadd.f32 0.0, %v1265
        %1267 = vdwg.mxu0
        %1268 = vmatpush.msra.mxu0 0.0
        %1269 = vmatpush.msra.mxu0 0.0
        %1270 = vmatpush.msra.mxu0 0.0
        %1271 = vmatpush.msra.mxu0 0.0
        %1272 = vmatpush.msra.mxu0 0.0
        %1273 = vmatpush.msra.mxu0 0.0
        %1274 = vmatpush.msra.mxu0 0.0
        %1275 = vmatpush.msra.mxu0 0.0
        %1276 = vmatpush.msra.mxu0 0.0
        %1277 = vmatpush.msra.mxu0 0.0
        %1278 = vmatpush.msra.mxu0 0.0
        %1279 = vmatpush.msra.mxu0 0.0
        %1280 = vmatpush.msra.mxu0 0.0
        %1281 = vmatpush.msra.mxu0 0.0
        %1282 = vmatpush.msra.mxu0 %v1163
        %1283 = vmatpush.msra.mxu0 %v1161
        %1284 = vmatmul.f32.gmra.mxu0 %v1246
        %v1285 = vpop.f32.mrf.mxu0
        %v1286 = vadd.f32 0.0, %v1285
        %1287 = vdwg.mxu0
        %v1288 = vpack.c.bf16 %v1266, %v1266
        %v1289 = vpack.c.bf16 %v1286, %v1286
        %s1290 = scalar_lea.vmem %s5, 256
        %v1291 = vld [vmem:[%s1290] sm:$0xff]
        %v1292 = vld [vmem:[%s1290 + $0x8] sm:$0xff]
        %v1293 = vld [vmem:[%s1290 + $0x10] sm:$0xff]
        %v1294 = vld [vmem:[%s1290 + $0x18] sm:$0xff]
        %v1295 = vld [vmem:[%s1290 + $0x20] sm:$0xff]
        %v1296 = vld [vmem:[%s1290 + $0x28] sm:$0xff]
        %v1297 = vld [vmem:[%s1290 + $0x30] sm:$0xff]
        %v1298 = vld [vmem:[%s1290 + $0x38] sm:$0xff]
        %v1299 = vld [vmem:[%s1290 + $0x40] sm:$0xff]
        %v1300 = vld [vmem:[%s1290 + $0x48] sm:$0xff]
        %v1301 = vld [vmem:[%s1290 + $0x50] sm:$0xff]
        %v1302 = vld [vmem:[%s1290 + $0x58] sm:$0xff]
        %v1303 = vld [vmem:[%s1290 + $0x60] sm:$0xff]
        %v1304 = vld [vmem:[%s1290 + $0x68] sm:$0xff]
        %v1305 = vld [vmem:[%s1290 + $0x70] sm:$0xff]
        %v1306 = vld [vmem:[%s1290 + $0x78] sm:$0xff]
        %v1307 = vld [vmem:[%s1290 + $0x80] sm:$0xff]
        %v1308 = vld [vmem:[%s1290 + $0x88] sm:$0xff]
        %v1309 = vld [vmem:[%s1290 + $0x90] sm:$0xff]
        %v1310 = vld [vmem:[%s1290 + $0x98] sm:$0xff]
        %v1311 = vld [vmem:[%s1290 + $0xa0] sm:$0xff]
        %v1312 = vld [vmem:[%s1290 + $0xa8] sm:$0xff]
        %v1313 = vld [vmem:[%s1290 + $0xb0] sm:$0xff]
        %v1314 = vld [vmem:[%s1290 + $0xb8] sm:$0xff]
        %v1315 = vld [vmem:[%s1290 + $0xc0] sm:$0xff]
        %v1316 = vld [vmem:[%s1290 + $0xc8] sm:$0xff]
        %v1317 = vld [vmem:[%s1290 + $0xd0] sm:$0xff]
        %v1318 = vld [vmem:[%s1290 + $0xd8] sm:$0xff]
        %v1319 = vld [vmem:[%s1290 + $0xe0] sm:$0xff]
        %v1320 = vld [vmem:[%s1290 + $0xe8] sm:$0xff]
        %v1321 = vld [vmem:[%s1290 + $0xf0] sm:$0xff]
        %v1322 = vld [vmem:[%s1290 + $0xf8] sm:$0xff]
        %v1355 = vunpack.c.l.b16 %v1291
        %v1356 = vunpack.c.h.b16 %v1291
        %v1357 = vunpack.c.l.b16 %v1292
        %v1358 = vunpack.c.h.b16 %v1292
        %v1359 = vunpack.c.l.b16 %v1293
        %v1360 = vunpack.c.h.b16 %v1293
        %v1361 = vunpack.c.l.b16 %v1294
        %v1362 = vunpack.c.h.b16 %v1294
        %v1363 = vunpack.c.l.b16 %v1295
        %v1364 = vunpack.c.h.b16 %v1295
        %v1365 = vunpack.c.l.b16 %v1296
        %v1366 = vunpack.c.h.b16 %v1296
        %v1367 = vunpack.c.l.b16 %v1297
        %v1368 = vunpack.c.h.b16 %v1297
        %v1369 = vunpack.c.l.b16 %v1298
        %v1370 = vunpack.c.h.b16 %v1298
        %v1371 = vunpack.c.l.b16 %v1299
        %v1372 = vunpack.c.h.b16 %v1299
        %v1373 = vunpack.c.l.b16 %v1300
        %v1374 = vunpack.c.h.b16 %v1300
        %v1375 = vunpack.c.l.b16 %v1301
        %v1376 = vunpack.c.h.b16 %v1301
        %v1377 = vunpack.c.l.b16 %v1302
        %v1378 = vunpack.c.h.b16 %v1302
        %v1379 = vunpack.c.l.b16 %v1303
        %v1380 = vunpack.c.h.b16 %v1303
        %v1381 = vunpack.c.l.b16 %v1304
        %v1382 = vunpack.c.h.b16 %v1304
        %v1383 = vunpack.c.l.b16 %v1305
        %v1384 = vunpack.c.h.b16 %v1305
        %v1385 = vunpack.c.l.b16 %v1306
        %v1386 = vunpack.c.h.b16 %v1306
        %v1387 = vunpack.c.l.b16 %v1307
        %v1388 = vunpack.c.h.b16 %v1307
        %v1389 = vunpack.c.l.b16 %v1308
        %v1390 = vunpack.c.h.b16 %v1308
        %v1391 = vunpack.c.l.b16 %v1309
        %v1392 = vunpack.c.h.b16 %v1309
        %v1393 = vunpack.c.l.b16 %v1310
        %v1394 = vunpack.c.h.b16 %v1310
        %v1395 = vunpack.c.l.b16 %v1311
        %v1396 = vunpack.c.h.b16 %v1311
        %v1397 = vunpack.c.l.b16 %v1312
        %v1398 = vunpack.c.h.b16 %v1312
        %v1399 = vunpack.c.l.b16 %v1313
        %v1400 = vunpack.c.h.b16 %v1313
        %v1401 = vunpack.c.l.b16 %v1314
        %v1402 = vunpack.c.h.b16 %v1314
        %v1403 = vunpack.c.l.b16 %v1315
        %v1404 = vunpack.c.h.b16 %v1315
        %v1405 = vunpack.c.l.b16 %v1316
        %v1406 = vunpack.c.h.b16 %v1316
        %v1407 = vunpack.c.l.b16 %v1317
        %v1408 = vunpack.c.h.b16 %v1317
        %v1409 = vunpack.c.l.b16 %v1318
        %v1410 = vunpack.c.h.b16 %v1318
        %v1411 = vunpack.c.l.b16 %v1319
        %v1412 = vunpack.c.h.b16 %v1319
        %v1413 = vunpack.c.l.b16 %v1320
        %v1414 = vunpack.c.h.b16 %v1320
        %v1415 = vunpack.c.l.b16 %v1321
        %v1416 = vunpack.c.h.b16 %v1321
        %v1417 = vunpack.c.l.b16 %v1322
        %v1418 = vunpack.c.h.b16 %v1322
        %v1419 = vpack.c.b16 %v1357, %v1355
        %v1420 = vpack.c.b16 %v1358, %v1356
        %v1421 = vpack.c.b16 %v1361, %v1359
        %v1422 = vpack.c.b16 %v1362, %v1360
        %v1423 = vpack.c.b16 %v1365, %v1363
        %v1424 = vpack.c.b16 %v1366, %v1364
        %v1425 = vpack.c.b16 %v1369, %v1367
        %v1426 = vpack.c.b16 %v1370, %v1368
        %v1427 = vpack.c.b16 %v1373, %v1371
        %v1428 = vpack.c.b16 %v1374, %v1372
        %v1429 = vpack.c.b16 %v1377, %v1375
        %v1430 = vpack.c.b16 %v1378, %v1376
        %v1431 = vpack.c.b16 %v1381, %v1379
        %v1432 = vpack.c.b16 %v1382, %v1380
        %v1433 = vpack.c.b16 %v1385, %v1383
        %v1434 = vpack.c.b16 %v1386, %v1384
        %v1435 = vpack.c.b16 %v1389, %v1387
        %v1436 = vpack.c.b16 %v1390, %v1388
        %v1437 = vpack.c.b16 %v1393, %v1391
        %v1438 = vpack.c.b16 %v1394, %v1392
        %v1439 = vpack.c.b16 %v1397, %v1395
        %v1440 = vpack.c.b16 %v1398, %v1396
        %v1441 = vpack.c.b16 %v1401, %v1399
        %v1442 = vpack.c.b16 %v1402, %v1400
        %v1443 = vpack.c.b16 %v1405, %v1403
        %v1444 = vpack.c.b16 %v1406, %v1404
        %v1445 = vpack.c.b16 %v1409, %v1407
        %v1446 = vpack.c.b16 %v1410, %v1408
        %v1447 = vpack.c.b16 %v1413, %v1411
        %v1448 = vpack.c.b16 %v1414, %v1412
        %v1449 = vpack.c.b16 %v1417, %v1415
        %v1450 = vpack.c.b16 %v1418, %v1416
        %1483 = vmatpush.bf16.msra.mxu0 %v1433
        %1484 = vmatpush.bf16.msra.mxu0 %v1431
        %1485 = vmatpush.bf16.msra.mxu0 %v1429
        %1486 = vmatpush.bf16.msra.mxu0 %v1427
        %1487 = vmatpush.bf16.msra.mxu0 %v1425
        %1488 = vmatpush.bf16.msra.mxu0 %v1423
        %1489 = vmatpush.bf16.msra.mxu0 %v1421
        %1490 = vmatpush.bf16.msra.mxu0 %v1419
        %1491 = vmatmul.bf16.gmra.mxu0 %v1288
        %v1492 = vpop.f32.mrf.mxu0
        %v1493 = vadd.f32 0.0, %v1492
        %v1494 = vpop.f32.mrf.mxu0
        %1495 = vdwg.mxu0
        %1496 = vmatpush.bf16.msra.mxu0 %v1449
        %1497 = vmatpush.bf16.msra.mxu0 %v1447
        %1498 = vmatpush.bf16.msra.mxu0 %v1445
        %1499 = vmatpush.bf16.msra.mxu0 %v1443
        %1500 = vmatpush.bf16.msra.mxu0 %v1441
        %1501 = vmatpush.bf16.msra.mxu0 %v1439
        %1502 = vmatpush.bf16.msra.mxu0 %v1437
        %1503 = vmatpush.bf16.msra.mxu0 %v1435
        %1504 = vmatmul.bf16.gmra.mxu0 %v1289
        %v1505 = vpop.f32.mrf.mxu0
        %v1506 = vadd.f32 %v1493, %v1505
        %v1507 = vpop.f32.mrf.mxu0
        %1508 = vdwg.mxu0
        %1509 = vmatpush.bf16.msra.mxu0 %v1434
        %1510 = vmatpush.bf16.msra.mxu0 %v1432
        %1511 = vmatpush.bf16.msra.mxu0 %v1430
        %1512 = vmatpush.bf16.msra.mxu0 %v1428
        %1513 = vmatpush.bf16.msra.mxu0 %v1426
        %1514 = vmatpush.bf16.msra.mxu0 %v1424
        %1515 = vmatpush.bf16.msra.mxu0 %v1422
        %1516 = vmatpush.bf16.msra.mxu0 %v1420
        %1517 = vmatmul.bf16.gmra.mxu0 %v1288
        %v1518 = vpop.f32.mrf.mxu0
        %v1519 = vadd.f32 0.0, %v1518
        %v1520 = vpop.f32.mrf.mxu0
        %1521 = vdwg.mxu0
        %1522 = vmatpush.bf16.msra.mxu0 %v1450
        %1523 = vmatpush.bf16.msra.mxu0 %v1448
        %1524 = vmatpush.bf16.msra.mxu0 %v1446
        %1525 = vmatpush.bf16.msra.mxu0 %v1444
        %1526 = vmatpush.bf16.msra.mxu0 %v1442
        %1527 = vmatpush.bf16.msra.mxu0 %v1440
        %1528 = vmatpush.bf16.msra.mxu0 %v1438
        %1529 = vmatpush.bf16.msra.mxu0 %v1436
        %1530 = vmatmul.bf16.gmra.mxu0 %v1289
        %v1531 = vpop.f32.mrf.mxu0
        %v1532 = vadd.f32 %v1519, %v1531
        %v1533 = vpop.f32.mrf.mxu0
        %1534 = vdwg.mxu0
        %v1567 = vunpack.c.l.b16 %v1211
        %v1568 = vunpack.c.h.b16 %v1211
        %v1569 = vunpack.c.l.b16 %v1212
        %v1570 = vunpack.c.h.b16 %v1212
        %v1571 = vunpack.c.l.b16 %v1213
        %v1572 = vunpack.c.h.b16 %v1213
        %v1573 = vunpack.c.l.b16 %v1214
        %v1574 = vunpack.c.h.b16 %v1214
        %v1575 = vunpack.c.l.b16 %v1215
        %v1576 = vunpack.c.h.b16 %v1215
        %v1577 = vunpack.c.l.b16 %v1216
        %v1578 = vunpack.c.h.b16 %v1216
        %v1579 = vunpack.c.l.b16 %v1217
        %v1580 = vunpack.c.h.b16 %v1217
        %v1581 = vunpack.c.l.b16 %v1218
        %v1582 = vunpack.c.h.b16 %v1218
        %v1583 = vunpack.c.l.b16 %v1219
        %v1584 = vunpack.c.h.b16 %v1219
        %v1585 = vunpack.c.l.b16 %v1220
        %v1586 = vunpack.c.h.b16 %v1220
        %v1587 = vunpack.c.l.b16 %v1221
        %v1588 = vunpack.c.h.b16 %v1221
        %v1589 = vunpack.c.l.b16 %v1222
        %v1590 = vunpack.c.h.b16 %v1222
        %v1591 = vunpack.c.l.b16 %v1223
        %v1592 = vunpack.c.h.b16 %v1223
        %v1593 = vunpack.c.l.b16 %v1224
        %v1594 = vunpack.c.h.b16 %v1224
        %v1595 = vunpack.c.l.b16 %v1225
        %v1596 = vunpack.c.h.b16 %v1225
        %v1597 = vunpack.c.l.b16 %v1226
        %v1598 = vunpack.c.h.b16 %v1226
        %v1599 = vunpack.c.l.b16 %v1227
        %v1600 = vunpack.c.h.b16 %v1227
        %v1601 = vunpack.c.l.b16 %v1228
        %v1602 = vunpack.c.h.b16 %v1228
        %v1603 = vunpack.c.l.b16 %v1229
        %v1604 = vunpack.c.h.b16 %v1229
        %v1605 = vunpack.c.l.b16 %v1230
        %v1606 = vunpack.c.h.b16 %v1230
        %v1607 = vunpack.c.l.b16 %v1231
        %v1608 = vunpack.c.h.b16 %v1231
        %v1609 = vunpack.c.l.b16 %v1232
        %v1610 = vunpack.c.h.b16 %v1232
        %v1611 = vunpack.c.l.b16 %v1233
        %v1612 = vunpack.c.h.b16 %v1233
        %v1613 = vunpack.c.l.b16 %v1234
        %v1614 = vunpack.c.h.b16 %v1234
        %v1615 = vunpack.c.l.b16 %v1235
        %v1616 = vunpack.c.h.b16 %v1235
        %v1617 = vunpack.c.l.b16 %v1236
        %v1618 = vunpack.c.h.b16 %v1236
        %v1619 = vunpack.c.l.b16 %v1237
        %v1620 = vunpack.c.h.b16 %v1237
        %v1621 = vunpack.c.l.b16 %v1238
        %v1622 = vunpack.c.h.b16 %v1238
        %v1623 = vunpack.c.l.b16 %v1239
        %v1624 = vunpack.c.h.b16 %v1239
        %v1625 = vunpack.c.l.b16 %v1240
        %v1626 = vunpack.c.h.b16 %v1240
        %v1627 = vunpack.c.l.b16 %v1241
        %v1628 = vunpack.c.h.b16 %v1241
        %v1629 = vunpack.c.l.b16 %v1242
        %v1630 = vunpack.c.h.b16 %v1242
        %v1631 = vpack.c.b16 %v1569, %v1567
        %v1632 = vpack.c.b16 %v1570, %v1568
        %v1633 = vpack.c.b16 %v1573, %v1571
        %v1634 = vpack.c.b16 %v1574, %v1572
        %v1635 = vpack.c.b16 %v1577, %v1575
        %v1636 = vpack.c.b16 %v1578, %v1576
        %v1637 = vpack.c.b16 %v1581, %v1579
        %v1638 = vpack.c.b16 %v1582, %v1580
        %v1639 = vpack.c.b16 %v1585, %v1583
        %v1640 = vpack.c.b16 %v1586, %v1584
        %v1641 = vpack.c.b16 %v1589, %v1587
        %v1642 = vpack.c.b16 %v1590, %v1588
        %v1643 = vpack.c.b16 %v1593, %v1591
        %v1644 = vpack.c.b16 %v1594, %v1592
        %v1645 = vpack.c.b16 %v1597, %v1595
        %v1646 = vpack.c.b16 %v1598, %v1596
        %v1647 = vpack.c.b16 %v1601, %v1599
        %v1648 = vpack.c.b16 %v1602, %v1600
        %v1649 = vpack.c.b16 %v1605, %v1603
        %v1650 = vpack.c.b16 %v1606, %v1604
        %v1651 = vpack.c.b16 %v1609, %v1607
        %v1652 = vpack.c.b16 %v1610, %v1608
        %v1653 = vpack.c.b16 %v1613, %v1611
        %v1654 = vpack.c.b16 %v1614, %v1612
        %v1655 = vpack.c.b16 %v1617, %v1615
        %v1656 = vpack.c.b16 %v1618, %v1616
        %v1657 = vpack.c.b16 %v1621, %v1619
        %v1658 = vpack.c.b16 %v1622, %v1620
        %v1659 = vpack.c.b16 %v1625, %v1623
        %v1660 = vpack.c.b16 %v1626, %v1624
        %v1661 = vpack.c.b16 %v1629, %v1627
        %v1662 = vpack.c.b16 %v1630, %v1628
        %1695 = vmatpush.bf16.msra.mxu0 %v1645
        %1696 = vmatpush.bf16.msra.mxu0 %v1643
        %1697 = vmatpush.bf16.msra.mxu0 %v1641
        %1698 = vmatpush.bf16.msra.mxu0 %v1639
        %1699 = vmatpush.bf16.msra.mxu0 %v1637
        %1700 = vmatpush.bf16.msra.mxu0 %v1635
        %1701 = vmatpush.bf16.msra.mxu0 %v1633
        %1702 = vmatpush.bf16.msra.mxu0 %v1631
        %1703 = vmatmul.bf16.gmra.mxu0 %v1209
        %v1704 = vpop.f32.mrf.mxu0
        %v1705 = vadd.f32 %v1506, %v1704
        %v1706 = vpop.f32.mrf.mxu0
        %1707 = vdwg.mxu0
        %1708 = vmatpush.bf16.msra.mxu0 %v1661
        %1709 = vmatpush.bf16.msra.mxu0 %v1659
        %1710 = vmatpush.bf16.msra.mxu0 %v1657
        %1711 = vmatpush.bf16.msra.mxu0 %v1655
        %1712 = vmatpush.bf16.msra.mxu0 %v1653
        %1713 = vmatpush.bf16.msra.mxu0 %v1651
        %1714 = vmatpush.bf16.msra.mxu0 %v1649
        %1715 = vmatpush.bf16.msra.mxu0 %v1647
        %1716 = vmatmul.bf16.gmra.mxu0 %v1210
        %v1717 = vpop.f32.mrf.mxu0
        %v1718 = vadd.f32 %v1705, %v1717
        %v1719 = vpop.f32.mrf.mxu0
        %1720 = vdwg.mxu0
        %1721 = vmatpush.bf16.msra.mxu0 %v1646
        %1722 = vmatpush.bf16.msra.mxu0 %v1644
        %1723 = vmatpush.bf16.msra.mxu0 %v1642
        %1724 = vmatpush.bf16.msra.mxu0 %v1640
        %1725 = vmatpush.bf16.msra.mxu0 %v1638
        %1726 = vmatpush.bf16.msra.mxu0 %v1636
        %1727 = vmatpush.bf16.msra.mxu0 %v1634
        %1728 = vmatpush.bf16.msra.mxu0 %v1632
        %1729 = vmatmul.bf16.gmra.mxu0 %v1209
        %v1730 = vpop.f32.mrf.mxu0
        %v1731 = vadd.f32 %v1532, %v1730
        %v1732 = vpop.f32.mrf.mxu0
        %1733 = vdwg.mxu0
        %1734 = vmatpush.bf16.msra.mxu0 %v1662
        %1735 = vmatpush.bf16.msra.mxu0 %v1660
        %1736 = vmatpush.bf16.msra.mxu0 %v1658
        %1737 = vmatpush.bf16.msra.mxu0 %v1656
        %1738 = vmatpush.bf16.msra.mxu0 %v1654
        %1739 = vmatpush.bf16.msra.mxu0 %v1652
        %1740 = vmatpush.bf16.msra.mxu0 %v1650
        %1741 = vmatpush.bf16.msra.mxu0 %v1648
        %1742 = vmatmul.bf16.gmra.mxu0 %v1210
        %v1743 = vpop.f32.mrf.mxu0
        %v1744 = vadd.f32 %v1731, %v1743
        %v1745 = vpop.f32.mrf.mxu0
        %1746 = vdwg.mxu0
        %s1747 = scalar_lea.vmem %s4, 16
        %v1748 = vld [vmem:[%s1747] sm:$0xff]
        %v1750 = vsel %vm1165, %v1748, 0
        %1752 = vmatpush.msra.mxu0 0.0
        %1753 = vmatpush.msra.mxu0 0.0
        %1754 = vmatpush.msra.mxu0 0.0
        %1755 = vmatpush.msra.mxu0 0.0
        %1756 = vmatpush.msra.mxu0 0.0
        %1757 = vmatpush.msra.mxu0 0.0
        %1758 = vmatpush.msra.mxu0 0.0
        %1759 = vmatpush.msra.mxu0 0.0
        %1760 = vmatpush.msra.mxu0 0.0
        %1761 = vmatpush.msra.mxu0 0.0
        %1762 = vmatpush.msra.mxu0 0.0
        %1763 = vmatpush.msra.mxu0 0.0
        %1764 = vmatpush.msra.mxu0 0.0
        %1765 = vmatpush.msra.mxu0 0.0
        %1766 = vmatpush.msra.mxu0 %v1162
        %1767 = vmatpush.msra.mxu0 %v1160
        %1768 = vmatmul.f32.gmra.mxu0 %v1750
        %v1769 = vpop.f32.mrf.mxu0
        %v1770 = vadd.f32 0.0, %v1769
        %1771 = vdwg.mxu0
        %1772 = vmatpush.msra.mxu0 0.0
        %1773 = vmatpush.msra.mxu0 0.0
        %1774 = vmatpush.msra.mxu0 0.0
        %1775 = vmatpush.msra.mxu0 0.0
        %1776 = vmatpush.msra.mxu0 0.0
        %1777 = vmatpush.msra.mxu0 0.0
        %1778 = vmatpush.msra.mxu0 0.0
        %1779 = vmatpush.msra.mxu0 0.0
        %1780 = vmatpush.msra.mxu0 0.0
        %1781 = vmatpush.msra.mxu0 0.0
        %1782 = vmatpush.msra.mxu0 0.0
        %1783 = vmatpush.msra.mxu0 0.0
        %1784 = vmatpush.msra.mxu0 0.0
        %1785 = vmatpush.msra.mxu0 0.0
        %1786 = vmatpush.msra.mxu0 %v1163
        %1787 = vmatpush.msra.mxu0 %v1161
        %1788 = vmatmul.f32.gmra.mxu0 %v1750
        %v1789 = vpop.f32.mrf.mxu0
        %v1790 = vadd.f32 0.0, %v1789
        %1791 = vdwg.mxu0
        %v1792 = vpack.c.bf16 %v1770, %v1770
        %v1793 = vpack.c.bf16 %v1790, %v1790
        %s1794 = scalar_lea.vmem %s5, 512
        %v1795 = vld [vmem:[%s1794] sm:$0xff]
        %v1796 = vld [vmem:[%s1794 + $0x8] sm:$0xff]
        %v1797 = vld [vmem:[%s1794 + $0x10] sm:$0xff]
        %v1798 = vld [vmem:[%s1794 + $0x18] sm:$0xff]
        %v1799 = vld [vmem:[%s1794 + $0x20] sm:$0xff]
        %v1800 = vld [vmem:[%s1794 + $0x28] sm:$0xff]
        %v1801 = vld [vmem:[%s1794 + $0x30] sm:$0xff]
        %v1802 = vld [vmem:[%s1794 + $0x38] sm:$0xff]
        %v1803 = vld [vmem:[%s1794 + $0x40] sm:$0xff]
        %v1804 = vld [vmem:[%s1794 + $0x48] sm:$0xff]
        %v1805 = vld [vmem:[%s1794 + $0x50] sm:$0xff]
        %v1806 = vld [vmem:[%s1794 + $0x58] sm:$0xff]
        %v1807 = vld [vmem:[%s1794 + $0x60] sm:$0xff]
        %v1808 = vld [vmem:[%s1794 + $0x68] sm:$0xff]
        %v1809 = vld [vmem:[%s1794 + $0x70] sm:$0xff]
        %v1810 = vld [vmem:[%s1794 + $0x78] sm:$0xff]
        %v1811 = vld [vmem:[%s1794 + $0x80] sm:$0xff]
        %v1812 = vld [vmem:[%s1794 + $0x88] sm:$0xff]
        %v1813 = vld [vmem:[%s1794 + $0x90] sm:$0xff]
        %v1814 = vld [vmem:[%s1794 + $0x98] sm:$0xff]
        %v1815 = vld [vmem:[%s1794 + $0xa0] sm:$0xff]
        %v1816 = vld [vmem:[%s1794 + $0xa8] sm:$0xff]
        %v1817 = vld [vmem:[%s1794 + $0xb0] sm:$0xff]
        %v1818 = vld [vmem:[%s1794 + $0xb8] sm:$0xff]
        %v1819 = vld [vmem:[%s1794 + $0xc0] sm:$0xff]
        %v1820 = vld [vmem:[%s1794 + $0xc8] sm:$0xff]
        %v1821 = vld [vmem:[%s1794 + $0xd0] sm:$0xff]
        %v1822 = vld [vmem:[%s1794 + $0xd8] sm:$0xff]
        %v1823 = vld [vmem:[%s1794 + $0xe0] sm:$0xff]
        %v1824 = vld [vmem:[%s1794 + $0xe8] sm:$0xff]
        %v1825 = vld [vmem:[%s1794 + $0xf0] sm:$0xff]
        %v1826 = vld [vmem:[%s1794 + $0xf8] sm:$0xff]
        %v1859 = vunpack.c.l.b16 %v1795
        %v1860 = vunpack.c.h.b16 %v1795
        %v1861 = vunpack.c.l.b16 %v1796
        %v1862 = vunpack.c.h.b16 %v1796
        %v1863 = vunpack.c.l.b16 %v1797
        %v1864 = vunpack.c.h.b16 %v1797
        %v1865 = vunpack.c.l.b16 %v1798
        %v1866 = vunpack.c.h.b16 %v1798
        %v1867 = vunpack.c.l.b16 %v1799
        %v1868 = vunpack.c.h.b16 %v1799
        %v1869 = vunpack.c.l.b16 %v1800
        %v1870 = vunpack.c.h.b16 %v1800
        %v1871 = vunpack.c.l.b16 %v1801
        %v1872 = vunpack.c.h.b16 %v1801
        %v1873 = vunpack.c.l.b16 %v1802
        %v1874 = vunpack.c.h.b16 %v1802
        %v1875 = vunpack.c.l.b16 %v1803
        %v1876 = vunpack.c.h.b16 %v1803
        %v1877 = vunpack.c.l.b16 %v1804
        %v1878 = vunpack.c.h.b16 %v1804
        %v1879 = vunpack.c.l.b16 %v1805
        %v1880 = vunpack.c.h.b16 %v1805
        %v1881 = vunpack.c.l.b16 %v1806
        %v1882 = vunpack.c.h.b16 %v1806
        %v1883 = vunpack.c.l.b16 %v1807
        %v1884 = vunpack.c.h.b16 %v1807
        %v1885 = vunpack.c.l.b16 %v1808
        %v1886 = vunpack.c.h.b16 %v1808
        %v1887 = vunpack.c.l.b16 %v1809
        %v1888 = vunpack.c.h.b16 %v1809
        %v1889 = vunpack.c.l.b16 %v1810
        %v1890 = vunpack.c.h.b16 %v1810
        %v1891 = vunpack.c.l.b16 %v1811
        %v1892 = vunpack.c.h.b16 %v1811
        %v1893 = vunpack.c.l.b16 %v1812
        %v1894 = vunpack.c.h.b16 %v1812
        %v1895 = vunpack.c.l.b16 %v1813
        %v1896 = vunpack.c.h.b16 %v1813
        %v1897 = vunpack.c.l.b16 %v1814
        %v1898 = vunpack.c.h.b16 %v1814
        %v1899 = vunpack.c.l.b16 %v1815
        %v1900 = vunpack.c.h.b16 %v1815
        %v1901 = vunpack.c.l.b16 %v1816
        %v1902 = vunpack.c.h.b16 %v1816
        %v1903 = vunpack.c.l.b16 %v1817
        %v1904 = vunpack.c.h.b16 %v1817
        %v1905 = vunpack.c.l.b16 %v1818
        %v1906 = vunpack.c.h.b16 %v1818
        %v1907 = vunpack.c.l.b16 %v1819
        %v1908 = vunpack.c.h.b16 %v1819
        %v1909 = vunpack.c.l.b16 %v1820
        %v1910 = vunpack.c.h.b16 %v1820
        %v1911 = vunpack.c.l.b16 %v1821
        %v1912 = vunpack.c.h.b16 %v1821
        %v1913 = vunpack.c.l.b16 %v1822
        %v1914 = vunpack.c.h.b16 %v1822
        %v1915 = vunpack.c.l.b16 %v1823
        %v1916 = vunpack.c.h.b16 %v1823
        %v1917 = vunpack.c.l.b16 %v1824
        %v1918 = vunpack.c.h.b16 %v1824
        %v1919 = vunpack.c.l.b16 %v1825
        %v1920 = vunpack.c.h.b16 %v1825
        %v1921 = vunpack.c.l.b16 %v1826
        %v1922 = vunpack.c.h.b16 %v1826
        %v1923 = vpack.c.b16 %v1861, %v1859
        %v1924 = vpack.c.b16 %v1862, %v1860
        %v1925 = vpack.c.b16 %v1865, %v1863
        %v1926 = vpack.c.b16 %v1866, %v1864
        %v1927 = vpack.c.b16 %v1869, %v1867
        %v1928 = vpack.c.b16 %v1870, %v1868
        %v1929 = vpack.c.b16 %v1873, %v1871
        %v1930 = vpack.c.b16 %v1874, %v1872
        %v1931 = vpack.c.b16 %v1877, %v1875
        %v1932 = vpack.c.b16 %v1878, %v1876
        %v1933 = vpack.c.b16 %v1881, %v1879
        %v1934 = vpack.c.b16 %v1882, %v1880
        %v1935 = vpack.c.b16 %v1885, %v1883
        %v1936 = vpack.c.b16 %v1886, %v1884
        %v1937 = vpack.c.b16 %v1889, %v1887
        %v1938 = vpack.c.b16 %v1890, %v1888
        %v1939 = vpack.c.b16 %v1893, %v1891
        %v1940 = vpack.c.b16 %v1894, %v1892
        %v1941 = vpack.c.b16 %v1897, %v1895
        %v1942 = vpack.c.b16 %v1898, %v1896
        %v1943 = vpack.c.b16 %v1901, %v1899
        %v1944 = vpack.c.b16 %v1902, %v1900
        %v1945 = vpack.c.b16 %v1905, %v1903
        %v1946 = vpack.c.b16 %v1906, %v1904
        %v1947 = vpack.c.b16 %v1909, %v1907
        %v1948 = vpack.c.b16 %v1910, %v1908
        %v1949 = vpack.c.b16 %v1913, %v1911
        %v1950 = vpack.c.b16 %v1914, %v1912
        %v1951 = vpack.c.b16 %v1917, %v1915
        %v1952 = vpack.c.b16 %v1918, %v1916
        %v1953 = vpack.c.b16 %v1921, %v1919
        %v1954 = vpack.c.b16 %v1922, %v1920
        %1987 = vmatpush.bf16.msra.mxu0 %v1937
        %1988 = vmatpush.bf16.msra.mxu0 %v1935
        %1989 = vmatpush.bf16.msra.mxu0 %v1933
        %1990 = vmatpush.bf16.msra.mxu0 %v1931
        %1991 = vmatpush.bf16.msra.mxu0 %v1929
        %1992 = vmatpush.bf16.msra.mxu0 %v1927
        %1993 = vmatpush.bf16.msra.mxu0 %v1925
        %1994 = vmatpush.bf16.msra.mxu0 %v1923
        %1995 = vmatmul.bf16.gmra.mxu0 %v1792
        %v1996 = vpop.f32.mrf.mxu0
        %v1997 = vadd.f32 0.0, %v1996
        %v1998 = vpop.f32.mrf.mxu0
        %1999 = vdwg.mxu0
        %2000 = vmatpush.bf16.msra.mxu0 %v1953
        %2001 = vmatpush.bf16.msra.mxu0 %v1951
        %2002 = vmatpush.bf16.msra.mxu0 %v1949
        %2003 = vmatpush.bf16.msra.mxu0 %v1947
        %2004 = vmatpush.bf16.msra.mxu0 %v1945
        %2005 = vmatpush.bf16.msra.mxu0 %v1943
        %2006 = vmatpush.bf16.msra.mxu0 %v1941
        %2007 = vmatpush.bf16.msra.mxu0 %v1939
        %2008 = vmatmul.bf16.gmra.mxu0 %v1793
        %v2009 = vpop.f32.mrf.mxu0
        %v2010 = vadd.f32 %v1997, %v2009
        %v2011 = vpop.f32.mrf.mxu0
        %2012 = vdwg.mxu0
        %2013 = vmatpush.bf16.msra.mxu0 %v1938
        %2014 = vmatpush.bf16.msra.mxu0 %v1936
        %2015 = vmatpush.bf16.msra.mxu0 %v1934
        %2016 = vmatpush.bf16.msra.mxu0 %v1932
        %2017 = vmatpush.bf16.msra.mxu0 %v1930
        %2018 = vmatpush.bf16.msra.mxu0 %v1928
        %2019 = vmatpush.bf16.msra.mxu0 %v1926
        %2020 = vmatpush.bf16.msra.mxu0 %v1924
        %2021 = vmatmul.bf16.gmra.mxu0 %v1792
        %v2022 = vpop.f32.mrf.mxu0
        %v2023 = vadd.f32 0.0, %v2022
        %v2024 = vpop.f32.mrf.mxu0
        %2025 = vdwg.mxu0
        %2026 = vmatpush.bf16.msra.mxu0 %v1954
        %2027 = vmatpush.bf16.msra.mxu0 %v1952
        %2028 = vmatpush.bf16.msra.mxu0 %v1950
        %2029 = vmatpush.bf16.msra.mxu0 %v1948
        %2030 = vmatpush.bf16.msra.mxu0 %v1946
        %2031 = vmatpush.bf16.msra.mxu0 %v1944
        %2032 = vmatpush.bf16.msra.mxu0 %v1942
        %2033 = vmatpush.bf16.msra.mxu0 %v1940
        %2034 = vmatmul.bf16.gmra.mxu0 %v1793
        %v2035 = vpop.f32.mrf.mxu0
        %v2036 = vadd.f32 %v2023, %v2035
        %v2037 = vpop.f32.mrf.mxu0
        %2038 = vdwg.mxu0
        %v2039 = vadd.f32 %v1718, %v2010
        %v2040 = vadd.f32 %v1744, %v2036
        %v2041 = vld [vmem:[%s6] sm:$0x3]
        %v2043 = vperm.slane %v2041, 0
        %v2044 = vperm.slane %v2041, 1
        %v2047 = vadd.f32 %v2039, %v2043
        %v2048 = vadd.f32 %v2040, %v2044
        %v2049 = vmax.f32 %v2047, 0.0
        %v2050 = vmax.f32 %v2048, 0.0
        %v2051 = vld [vmem:[#allocation6] sm:$0xf]
        %vm2052 = vcmask 64512
        %v2054 = vsel %vm2052, %v2051, 0
        %2056 = vmatpush.msra.mxu0 0.0
        %2057 = vmatpush.msra.mxu0 0.0
        %2058 = vmatpush.msra.mxu0 0.0
        %2059 = vmatpush.msra.mxu0 0.0
        %2060 = vmatpush.msra.mxu0 0.0
        %2061 = vmatpush.msra.mxu0 0.0
        %2062 = vmatpush.msra.mxu0 0.0
        %2063 = vmatpush.msra.mxu0 0.0
        %2064 = vmatpush.msra.mxu0 0.0
        %2065 = vmatpush.msra.mxu0 0.0
        %2066 = vmatpush.msra.mxu0 0.0
        %2067 = vmatpush.msra.mxu0 0.0
        %2068 = vmatpush.msra.mxu0 0.0
        %2069 = vmatpush.msra.mxu0 0.0
        %2070 = vmatpush.msra.mxu0 0.0
        %2071 = vmatpush.msra.mxu0 %v2049
        %2072 = vmatmul.f32.gmra.mxu0 %v2054
        %v2073 = vpop.f32.mrf.mxu0
        %v2074 = vadd.f32 0.0, %v2073
        %2075 = vdwg.mxu0
        %2076 = vmatpush.msra.mxu0 0.0
        %2077 = vmatpush.msra.mxu0 0.0
        %2078 = vmatpush.msra.mxu0 0.0
        %2079 = vmatpush.msra.mxu0 0.0
        %2080 = vmatpush.msra.mxu0 0.0
        %2081 = vmatpush.msra.mxu0 0.0
        %2082 = vmatpush.msra.mxu0 0.0
        %2083 = vmatpush.msra.mxu0 0.0
        %2084 = vmatpush.msra.mxu0 0.0
        %2085 = vmatpush.msra.mxu0 0.0
        %2086 = vmatpush.msra.mxu0 0.0
        %2087 = vmatpush.msra.mxu0 0.0
        %2088 = vmatpush.msra.mxu0 0.0
        %2089 = vmatpush.msra.mxu0 0.0
        %2090 = vmatpush.msra.mxu0 0.0
        %2091 = vmatpush.msra.mxu0 %v2050
        %2092 = vmatmul.f32.gmra.mxu0 %v2054
        %v2093 = vpop.f32.mrf.mxu0
        %v2094 = vadd.f32 0.0, %v2093
        %2095 = vdwg.mxu0
        %v2096 = vpack.c.bf16 %v2074, %v2074
        %v2097 = vpack.c.bf16 %v2094, %v2094
        %v2098 = vld [vmem:[%s8] sm:$0xff]
        %v2099 = vld [vmem:[%s8 + $0x8] sm:$0xff]
        %v2100 = vld [vmem:[%s8 + $0x10] sm:$0xff]
        %v2101 = vld [vmem:[%s8 + $0x18] sm:$0xff]
        %v2102 = vld [vmem:[%s8 + $0x20] sm:$0xff]
        %v2103 = vld [vmem:[%s8 + $0x28] sm:$0xff]
        %v2104 = vld [vmem:[%s8 + $0x30] sm:$0xff]
        %v2105 = vld [vmem:[%s8 + $0x38] sm:$0xff]
        %v2106 = vld [vmem:[%s8 + $0x40] sm:$0xff]
        %v2107 = vld [vmem:[%s8 + $0x48] sm:$0xff]
        %v2108 = vld [vmem:[%s8 + $0x50] sm:$0xff]
        %v2109 = vld [vmem:[%s8 + $0x58] sm:$0xff]
        %v2110 = vld [vmem:[%s8 + $0x60] sm:$0xff]
        %v2111 = vld [vmem:[%s8 + $0x68] sm:$0xff]
        %v2112 = vld [vmem:[%s8 + $0x70] sm:$0xff]
        %v2113 = vld [vmem:[%s8 + $0x78] sm:$0xff]
        %v2114 = vld [vmem:[%s8 + $0x80] sm:$0xff]
        %v2115 = vld [vmem:[%s8 + $0x88] sm:$0xff]
        %v2116 = vld [vmem:[%s8 + $0x90] sm:$0xff]
        %v2117 = vld [vmem:[%s8 + $0x98] sm:$0xff]
        %v2118 = vld [vmem:[%s8 + $0xa0] sm:$0xff]
        %v2119 = vld [vmem:[%s8 + $0xa8] sm:$0xff]
        %v2120 = vld [vmem:[%s8 + $0xb0] sm:$0xff]
        %v2121 = vld [vmem:[%s8 + $0xb8] sm:$0xff]
        %v2122 = vld [vmem:[%s8 + $0xc0] sm:$0xff]
        %v2123 = vld [vmem:[%s8 + $0xc8] sm:$0xff]
        %v2124 = vld [vmem:[%s8 + $0xd0] sm:$0xff]
        %v2125 = vld [vmem:[%s8 + $0xd8] sm:$0xff]
        %v2126 = vld [vmem:[%s8 + $0xe0] sm:$0xff]
        %v2127 = vld [vmem:[%s8 + $0xe8] sm:$0xff]
        %v2128 = vld [vmem:[%s8 + $0xf0] sm:$0xff]
        %v2129 = vld [vmem:[%s8 + $0xf8] sm:$0xff]
        %s2130 = scalar_lea.vmem [#allocation6], 4
        %v2131 = vld [vmem:[%s2130] sm:$0xf]
        %v2133 = vsel %vm2052, %v2131, 0
        %2135 = vmatpush.msra.mxu0 0.0
        %2136 = vmatpush.msra.mxu0 0.0
        %2137 = vmatpush.msra.mxu0 0.0
        %2138 = vmatpush.msra.mxu0 0.0
        %2139 = vmatpush.msra.mxu0 0.0
        %2140 = vmatpush.msra.mxu0 0.0
        %2141 = vmatpush.msra.mxu0 0.0
        %2142 = vmatpush.msra.mxu0 0.0
        %2143 = vmatpush.msra.mxu0 0.0
        %2144 = vmatpush.msra.mxu0 0.0
        %2145 = vmatpush.msra.mxu0 0.0
        %2146 = vmatpush.msra.mxu0 0.0
        %2147 = vmatpush.msra.mxu0 0.0
        %2148 = vmatpush.msra.mxu0 0.0
        %2149 = vmatpush.msra.mxu0 0.0
        %2150 = vmatpush.msra.mxu0 %v2049
        %2151 = vmatmul.f32.gmra.mxu0 %v2133
        %v2152 = vpop.f32.mrf.mxu0
        %v2153 = vadd.f32 0.0, %v2152
        %2154 = vdwg.mxu0
        %2155 = vmatpush.msra.mxu0 0.0
        %2156 = vmatpush.msra.mxu0 0.0
        %2157 = vmatpush.msra.mxu0 0.0
        %2158 = vmatpush.msra.mxu0 0.0
        %2159 = vmatpush.msra.mxu0 0.0
        %2160 = vmatpush.msra.mxu0 0.0
        %2161 = vmatpush.msra.mxu0 0.0
        %2162 = vmatpush.msra.mxu0 0.0
        %2163 = vmatpush.msra.mxu0 0.0
        %2164 = vmatpush.msra.mxu0 0.0
        %2165 = vmatpush.msra.mxu0 0.0
        %2166 = vmatpush.msra.mxu0 0.0
        %2167 = vmatpush.msra.mxu0 0.0
        %2168 = vmatpush.msra.mxu0 0.0
        %2169 = vmatpush.msra.mxu0 0.0
        %2170 = vmatpush.msra.mxu0 %v2050
        %2171 = vmatmul.f32.gmra.mxu0 %v2133
        %v2172 = vpop.f32.mrf.mxu0
        %v2173 = vadd.f32 0.0, %v2172
        %2174 = vdwg.mxu0
        %v2175 = vpack.c.bf16 %v2153, %v2153
        %v2176 = vpack.c.bf16 %v2173, %v2173
        %s2177 = scalar_lea.vmem %s8, 256
        %v2178 = vld [vmem:[%s2177] sm:$0xff]
        %v2179 = vld [vmem:[%s2177 + $0x8] sm:$0xff]
        %v2180 = vld [vmem:[%s2177 + $0x10] sm:$0xff]
        %v2181 = vld [vmem:[%s2177 + $0x18] sm:$0xff]
        %v2182 = vld [vmem:[%s2177 + $0x20] sm:$0xff]
        %v2183 = vld [vmem:[%s2177 + $0x28] sm:$0xff]
        %v2184 = vld [vmem:[%s2177 + $0x30] sm:$0xff]
        %v2185 = vld [vmem:[%s2177 + $0x38] sm:$0xff]
        %v2186 = vld [vmem:[%s2177 + $0x40] sm:$0xff]
        %v2187 = vld [vmem:[%s2177 + $0x48] sm:$0xff]
        %v2188 = vld [vmem:[%s2177 + $0x50] sm:$0xff]
        %v2189 = vld [vmem:[%s2177 + $0x58] sm:$0xff]
        %v2190 = vld [vmem:[%s2177 + $0x60] sm:$0xff]
        %v2191 = vld [vmem:[%s2177 + $0x68] sm:$0xff]
        %v2192 = vld [vmem:[%s2177 + $0x70] sm:$0xff]
        %v2193 = vld [vmem:[%s2177 + $0x78] sm:$0xff]
        %v2194 = vld [vmem:[%s2177 + $0x80] sm:$0xff]
        %v2195 = vld [vmem:[%s2177 + $0x88] sm:$0xff]
        %v2196 = vld [vmem:[%s2177 + $0x90] sm:$0xff]
        %v2197 = vld [vmem:[%s2177 + $0x98] sm:$0xff]
        %v2198 = vld [vmem:[%s2177 + $0xa0] sm:$0xff]
        %v2199 = vld [vmem:[%s2177 + $0xa8] sm:$0xff]
        %v2200 = vld [vmem:[%s2177 + $0xb0] sm:$0xff]
        %v2201 = vld [vmem:[%s2177 + $0xb8] sm:$0xff]
        %v2202 = vld [vmem:[%s2177 + $0xc0] sm:$0xff]
        %v2203 = vld [vmem:[%s2177 + $0xc8] sm:$0xff]
        %v2204 = vld [vmem:[%s2177 + $0xd0] sm:$0xff]
        %v2205 = vld [vmem:[%s2177 + $0xd8] sm:$0xff]
        %v2206 = vld [vmem:[%s2177 + $0xe0] sm:$0xff]
        %v2207 = vld [vmem:[%s2177 + $0xe8] sm:$0xff]
        %v2208 = vld [vmem:[%s2177 + $0xf0] sm:$0xff]
        %v2209 = vld [vmem:[%s2177 + $0xf8] sm:$0xff]
        %v2242 = vunpack.c.l.b16 %v2178
        %v2243 = vunpack.c.h.b16 %v2178
        %v2244 = vunpack.c.l.b16 %v2179
        %v2245 = vunpack.c.h.b16 %v2179
        %v2246 = vunpack.c.l.b16 %v2180
        %v2247 = vunpack.c.h.b16 %v2180
        %v2248 = vunpack.c.l.b16 %v2181
        %v2249 = vunpack.c.h.b16 %v2181
        %v2250 = vunpack.c.l.b16 %v2182
        %v2251 = vunpack.c.h.b16 %v2182
        %v2252 = vunpack.c.l.b16 %v2183
        %v2253 = vunpack.c.h.b16 %v2183
        %v2254 = vunpack.c.l.b16 %v2184
        %v2255 = vunpack.c.h.b16 %v2184
        %v2256 = vunpack.c.l.b16 %v2185
        %v2257 = vunpack.c.h.b16 %v2185
        %v2258 = vunpack.c.l.b16 %v2186
        %v2259 = vunpack.c.h.b16 %v2186
        %v2260 = vunpack.c.l.b16 %v2187
        %v2261 = vunpack.c.h.b16 %v2187
        %v2262 = vunpack.c.l.b16 %v2188
        %v2263 = vunpack.c.h.b16 %v2188
        %v2264 = vunpack.c.l.b16 %v2189
        %v2265 = vunpack.c.h.b16 %v2189
        %v2266 = vunpack.c.l.b16 %v2190
        %v2267 = vunpack.c.h.b16 %v2190
        %v2268 = vunpack.c.l.b16 %v2191
        %v2269 = vunpack.c.h.b16 %v2191
        %v2270 = vunpack.c.l.b16 %v2192
        %v2271 = vunpack.c.h.b16 %v2192
        %v2272 = vunpack.c.l.b16 %v2193
        %v2273 = vunpack.c.h.b16 %v2193
        %v2274 = vunpack.c.l.b16 %v2194
        %v2275 = vunpack.c.h.b16 %v2194
        %v2276 = vunpack.c.l.b16 %v2195
        %v2277 = vunpack.c.h.b16 %v2195
        %v2278 = vunpack.c.l.b16 %v2196
        %v2279 = vunpack.c.h.b16 %v2196
        %v2280 = vunpack.c.l.b16 %v2197
        %v2281 = vunpack.c.h.b16 %v2197
        %v2282 = vunpack.c.l.b16 %v2198
        %v2283 = vunpack.c.h.b16 %v2198
        %v2284 = vunpack.c.l.b16 %v2199
        %v2285 = vunpack.c.h.b16 %v2199
        %v2286 = vunpack.c.l.b16 %v2200
        %v2287 = vunpack.c.h.b16 %v2200
        %v2288 = vunpack.c.l.b16 %v2201
        %v2289 = vunpack.c.h.b16 %v2201
        %v2290 = vunpack.c.l.b16 %v2202
        %v2291 = vunpack.c.h.b16 %v2202
        %v2292 = vunpack.c.l.b16 %v2203
        %v2293 = vunpack.c.h.b16 %v2203
        %v2294 = vunpack.c.l.b16 %v2204
        %v2295 = vunpack.c.h.b16 %v2204
        %v2296 = vunpack.c.l.b16 %v2205
        %v2297 = vunpack.c.h.b16 %v2205
        %v2298 = vunpack.c.l.b16 %v2206
        %v2299 = vunpack.c.h.b16 %v2206
        %v2300 = vunpack.c.l.b16 %v2207
        %v2301 = vunpack.c.h.b16 %v2207
        %v2302 = vunpack.c.l.b16 %v2208
        %v2303 = vunpack.c.h.b16 %v2208
        %v2304 = vunpack.c.l.b16 %v2209
        %v2305 = vunpack.c.h.b16 %v2209
        %v2306 = vpack.c.b16 %v2244, %v2242
        %v2307 = vpack.c.b16 %v2245, %v2243
        %v2308 = vpack.c.b16 %v2248, %v2246
        %v2309 = vpack.c.b16 %v2249, %v2247
        %v2310 = vpack.c.b16 %v2252, %v2250
        %v2311 = vpack.c.b16 %v2253, %v2251
        %v2312 = vpack.c.b16 %v2256, %v2254
        %v2313 = vpack.c.b16 %v2257, %v2255
        %v2314 = vpack.c.b16 %v2260, %v2258
        %v2315 = vpack.c.b16 %v2261, %v2259
        %v2316 = vpack.c.b16 %v2264, %v2262
        %v2317 = vpack.c.b16 %v2265, %v2263
        %v2318 = vpack.c.b16 %v2268, %v2266
        %v2319 = vpack.c.b16 %v2269, %v2267
        %v2320 = vpack.c.b16 %v2272, %v2270
        %v2321 = vpack.c.b16 %v2273, %v2271
        %v2322 = vpack.c.b16 %v2276, %v2274
        %v2323 = vpack.c.b16 %v2277, %v2275
        %v2324 = vpack.c.b16 %v2280, %v2278
        %v2325 = vpack.c.b16 %v2281, %v2279
        %v2326 = vpack.c.b16 %v2284, %v2282
        %v2327 = vpack.c.b16 %v2285, %v2283
        %v2328 = vpack.c.b16 %v2288, %v2286
        %v2329 = vpack.c.b16 %v2289, %v2287
        %v2330 = vpack.c.b16 %v2292, %v2290
        %v2331 = vpack.c.b16 %v2293, %v2291
        %v2332 = vpack.c.b16 %v2296, %v2294
        %v2333 = vpack.c.b16 %v2297, %v2295
        %v2334 = vpack.c.b16 %v2300, %v2298
        %v2335 = vpack.c.b16 %v2301, %v2299
        %v2336 = vpack.c.b16 %v2304, %v2302
        %v2337 = vpack.c.b16 %v2305, %v2303
        %2370 = vmatpush.bf16.msra.mxu0 %v2320
        %2371 = vmatpush.bf16.msra.mxu0 %v2318
        %2372 = vmatpush.bf16.msra.mxu0 %v2316
        %2373 = vmatpush.bf16.msra.mxu0 %v2314
        %2374 = vmatpush.bf16.msra.mxu0 %v2312
        %2375 = vmatpush.bf16.msra.mxu0 %v2310
        %2376 = vmatpush.bf16.msra.mxu0 %v2308
        %2377 = vmatpush.bf16.msra.mxu0 %v2306
        %2378 = vmatmul.bf16.gmra.mxu0 %v2175
        %v2379 = vpop.f32.mrf.mxu0
        %v2380 = vadd.f32 0.0, %v2379
        %v2381 = vpop.f32.mrf.mxu0
        %2382 = vdwg.mxu0
        %2383 = vmatpush.bf16.msra.mxu0 %v2336
        %2384 = vmatpush.bf16.msra.mxu0 %v2334
        %2385 = vmatpush.bf16.msra.mxu0 %v2332
        %2386 = vmatpush.bf16.msra.mxu0 %v2330
        %2387 = vmatpush.bf16.msra.mxu0 %v2328
        %2388 = vmatpush.bf16.msra.mxu0 %v2326
        %2389 = vmatpush.bf16.msra.mxu0 %v2324
        %2390 = vmatpush.bf16.msra.mxu0 %v2322
        %2391 = vmatmul.bf16.gmra.mxu0 %v2176
        %v2392 = vpop.f32.mrf.mxu0
        %v2393 = vadd.f32 %v2380, %v2392
        %v2394 = vpop.f32.mrf.mxu0
        %2395 = vdwg.mxu0
        %2396 = vmatpush.bf16.msra.mxu0 %v2321
        %2397 = vmatpush.bf16.msra.mxu0 %v2319
        %2398 = vmatpush.bf16.msra.mxu0 %v2317
        %2399 = vmatpush.bf16.msra.mxu0 %v2315
        %2400 = vmatpush.bf16.msra.mxu0 %v2313
        %2401 = vmatpush.bf16.msra.mxu0 %v2311
        %2402 = vmatpush.bf16.msra.mxu0 %v2309
        %2403 = vmatpush.bf16.msra.mxu0 %v2307
        %2404 = vmatmul.bf16.gmra.mxu0 %v2175
        %v2405 = vpop.f32.mrf.mxu0
        %v2406 = vadd.f32 0.0, %v2405
        %v2407 = vpop.f32.mrf.mxu0
        %2408 = vdwg.mxu0
        %2409 = vmatpush.bf16.msra.mxu0 %v2337
        %2410 = vmatpush.bf16.msra.mxu0 %v2335
        %2411 = vmatpush.bf16.msra.mxu0 %v2333
        %2412 = vmatpush.bf16.msra.mxu0 %v2331
        %2413 = vmatpush.bf16.msra.mxu0 %v2329
        %2414 = vmatpush.bf16.msra.mxu0 %v2327
        %2415 = vmatpush.bf16.msra.mxu0 %v2325
        %2416 = vmatpush.bf16.msra.mxu0 %v2323
        %2417 = vmatmul.bf16.gmra.mxu0 %v2176
        %v2418 = vpop.f32.mrf.mxu0
        %v2419 = vadd.f32 %v2406, %v2418
        %v2420 = vpop.f32.mrf.mxu0
        %2421 = vdwg.mxu0
        %v2454 = vunpack.c.l.b16 %v2098
        %v2455 = vunpack.c.h.b16 %v2098
        %v2456 = vunpack.c.l.b16 %v2099
        %v2457 = vunpack.c.h.b16 %v2099
        %v2458 = vunpack.c.l.b16 %v2100
        %v2459 = vunpack.c.h.b16 %v2100
        %v2460 = vunpack.c.l.b16 %v2101
        %v2461 = vunpack.c.h.b16 %v2101
        %v2462 = vunpack.c.l.b16 %v2102
        %v2463 = vunpack.c.h.b16 %v2102
        %v2464 = vunpack.c.l.b16 %v2103
        %v2465 = vunpack.c.h.b16 %v2103
        %v2466 = vunpack.c.l.b16 %v2104
        %v2467 = vunpack.c.h.b16 %v2104
        %v2468 = vunpack.c.l.b16 %v2105
        %v2469 = vunpack.c.h.b16 %v2105
        %v2470 = vunpack.c.l.b16 %v2106
        %v2471 = vunpack.c.h.b16 %v2106
        %v2472 = vunpack.c.l.b16 %v2107
        %v2473 = vunpack.c.h.b16 %v2107
        %v2474 = vunpack.c.l.b16 %v2108
        %v2475 = vunpack.c.h.b16 %v2108
        %v2476 = vunpack.c.l.b16 %v2109
        %v2477 = vunpack.c.h.b16 %v2109
        %v2478 = vunpack.c.l.b16 %v2110
        %v2479 = vunpack.c.h.b16 %v2110
        %v2480 = vunpack.c.l.b16 %v2111
        %v2481 = vunpack.c.h.b16 %v2111
        %v2482 = vunpack.c.l.b16 %v2112
        %v2483 = vunpack.c.h.b16 %v2112
        %v2484 = vunpack.c.l.b16 %v2113
        %v2485 = vunpack.c.h.b16 %v2113
        %v2486 = vunpack.c.l.b16 %v2114
        %v2487 = vunpack.c.h.b16 %v2114
        %v2488 = vunpack.c.l.b16 %v2115
        %v2489 = vunpack.c.h.b16 %v2115
        %v2490 = vunpack.c.l.b16 %v2116
        %v2491 = vunpack.c.h.b16 %v2116
        %v2492 = vunpack.c.l.b16 %v2117
        %v2493 = vunpack.c.h.b16 %v2117
        %v2494 = vunpack.c.l.b16 %v2118
        %v2495 = vunpack.c.h.b16 %v2118
        %v2496 = vunpack.c.l.b16 %v2119
        %v2497 = vunpack.c.h.b16 %v2119
        %v2498 = vunpack.c.l.b16 %v2120
        %v2499 = vunpack.c.h.b16 %v2120
        %v2500 = vunpack.c.l.b16 %v2121
        %v2501 = vunpack.c.h.b16 %v2121
        %v2502 = vunpack.c.l.b16 %v2122
        %v2503 = vunpack.c.h.b16 %v2122
        %v2504 = vunpack.c.l.b16 %v2123
        %v2505 = vunpack.c.h.b16 %v2123
        %v2506 = vunpack.c.l.b16 %v2124
        %v2507 = vunpack.c.h.b16 %v2124
        %v2508 = vunpack.c.l.b16 %v2125
        %v2509 = vunpack.c.h.b16 %v2125
        %v2510 = vunpack.c.l.b16 %v2126
        %v2511 = vunpack.c.h.b16 %v2126
        %v2512 = vunpack.c.l.b16 %v2127
        %v2513 = vunpack.c.h.b16 %v2127
        %v2514 = vunpack.c.l.b16 %v2128
        %v2515 = vunpack.c.h.b16 %v2128
        %v2516 = vunpack.c.l.b16 %v2129
        %v2517 = vunpack.c.h.b16 %v2129
        %v2518 = vpack.c.b16 %v2456, %v2454
        %v2519 = vpack.c.b16 %v2457, %v2455
        %v2520 = vpack.c.b16 %v2460, %v2458
        %v2521 = vpack.c.b16 %v2461, %v2459
        %v2522 = vpack.c.b16 %v2464, %v2462
        %v2523 = vpack.c.b16 %v2465, %v2463
        %v2524 = vpack.c.b16 %v2468, %v2466
        %v2525 = vpack.c.b16 %v2469, %v2467
        %v2526 = vpack.c.b16 %v2472, %v2470
        %v2527 = vpack.c.b16 %v2473, %v2471
        %v2528 = vpack.c.b16 %v2476, %v2474
        %v2529 = vpack.c.b16 %v2477, %v2475
        %v2530 = vpack.c.b16 %v2480, %v2478
        %v2531 = vpack.c.b16 %v2481, %v2479
        %v2532 = vpack.c.b16 %v2484, %v2482
        %v2533 = vpack.c.b16 %v2485, %v2483
        %v2534 = vpack.c.b16 %v2488, %v2486
        %v2535 = vpack.c.b16 %v2489, %v2487
        %v2536 = vpack.c.b16 %v2492, %v2490
        %v2537 = vpack.c.b16 %v2493, %v2491
        %v2538 = vpack.c.b16 %v2496, %v2494
        %v2539 = vpack.c.b16 %v2497, %v2495
        %v2540 = vpack.c.b16 %v2500, %v2498
        %v2541 = vpack.c.b16 %v2501, %v2499
        %v2542 = vpack.c.b16 %v2504, %v2502
        %v2543 = vpack.c.b16 %v2505, %v2503
        %v2544 = vpack.c.b16 %v2508, %v2506
        %v2545 = vpack.c.b16 %v2509, %v2507
        %v2546 = vpack.c.b16 %v2512, %v2510
        %v2547 = vpack.c.b16 %v2513, %v2511
        %v2548 = vpack.c.b16 %v2516, %v2514
        %v2549 = vpack.c.b16 %v2517, %v2515
        %2582 = vmatpush.bf16.msra.mxu0 %v2532
        %2583 = vmatpush.bf16.msra.mxu0 %v2530
        %2584 = vmatpush.bf16.msra.mxu0 %v2528
        %2585 = vmatpush.bf16.msra.mxu0 %v2526
        %2586 = vmatpush.bf16.msra.mxu0 %v2524
        %2587 = vmatpush.bf16.msra.mxu0 %v2522
        %2588 = vmatpush.bf16.msra.mxu0 %v2520
        %2589 = vmatpush.bf16.msra.mxu0 %v2518
        %2590 = vmatmul.bf16.gmra.mxu0 %v2096
        %v2591 = vpop.f32.mrf.mxu0
        %v2592 = vadd.f32 %v2393, %v2591
        %v2593 = vpop.f32.mrf.mxu0
        %2594 = vdwg.mxu0
        %2595 = vmatpush.bf16.msra.mxu0 %v2548
        %2596 = vmatpush.bf16.msra.mxu0 %v2546
        %2597 = vmatpush.bf16.msra.mxu0 %v2544
        %2598 = vmatpush.bf16.msra.mxu0 %v2542
        %2599 = vmatpush.bf16.msra.mxu0 %v2540
        %2600 = vmatpush.bf16.msra.mxu0 %v2538
        %2601 = vmatpush.bf16.msra.mxu0 %v2536
        %2602 = vmatpush.bf16.msra.mxu0 %v2534
        %2603 = vmatmul.bf16.gmra.mxu0 %v2097
        %v2604 = vpop.f32.mrf.mxu0
        %v2605 = vadd.f32 %v2592, %v2604
        %v2606 = vpop.f32.mrf.mxu0
        %2607 = vdwg.mxu0
        %2608 = vmatpush.bf16.msra.mxu0 %v2533
        %2609 = vmatpush.bf16.msra.mxu0 %v2531
        %2610 = vmatpush.bf16.msra.mxu0 %v2529
        %2611 = vmatpush.bf16.msra.mxu0 %v2527
        %2612 = vmatpush.bf16.msra.mxu0 %v2525
        %2613 = vmatpush.bf16.msra.mxu0 %v2523
        %2614 = vmatpush.bf16.msra.mxu0 %v2521
        %2615 = vmatpush.bf16.msra.mxu0 %v2519
        %2616 = vmatmul.bf16.gmra.mxu0 %v2096
        %v2617 = vpop.f32.mrf.mxu0
        %v2618 = vadd.f32 %v2419, %v2617
        %v2619 = vpop.f32.mrf.mxu0
        %2620 = vdwg.mxu0
        %2621 = vmatpush.bf16.msra.mxu0 %v2549
        %2622 = vmatpush.bf16.msra.mxu0 %v2547
        %2623 = vmatpush.bf16.msra.mxu0 %v2545
        %2624 = vmatpush.bf16.msra.mxu0 %v2543
        %2625 = vmatpush.bf16.msra.mxu0 %v2541
        %2626 = vmatpush.bf16.msra.mxu0 %v2539
        %2627 = vmatpush.bf16.msra.mxu0 %v2537
        %2628 = vmatpush.bf16.msra.mxu0 %v2535
        %2629 = vmatmul.bf16.gmra.mxu0 %v2097
        %v2630 = vpop.f32.mrf.mxu0
        %v2631 = vadd.f32 %v2618, %v2630
        %v2632 = vpop.f32.mrf.mxu0
        %2633 = vdwg.mxu0
        %s2634 = scalar_lea.vmem [#allocation6], 8
        %v2635 = vld [vmem:[%s2634] sm:$0xf]
        %v2637 = vsel %vm2052, %v2635, 0
        %2639 = vmatpush.msra.mxu0 0.0
        %2640 = vmatpush.msra.mxu0 0.0
        %2641 = vmatpush.msra.mxu0 0.0
        %2642 = vmatpush.msra.mxu0 0.0
        %2643 = vmatpush.msra.mxu0 0.0
        %2644 = vmatpush.msra.mxu0 0.0
        %2645 = vmatpush.msra.mxu0 0.0
        %2646 = vmatpush.msra.mxu0 0.0
        %2647 = vmatpush.msra.mxu0 0.0
        %2648 = vmatpush.msra.mxu0 0.0
        %2649 = vmatpush.msra.mxu0 0.0
        %2650 = vmatpush.msra.mxu0 0.0
        %2651 = vmatpush.msra.mxu0 0.0
        %2652 = vmatpush.msra.mxu0 0.0
        %2653 = vmatpush.msra.mxu0 0.0
        %2654 = vmatpush.msra.mxu0 %v2049
        %2655 = vmatmul.f32.gmra.mxu0 %v2637
        %v2656 = vpop.f32.mrf.mxu0
        %v2657 = vadd.f32 0.0, %v2656
        %2658 = vdwg.mxu0
        %2659 = vmatpush.msra.mxu0 0.0
        %2660 = vmatpush.msra.mxu0 0.0
        %2661 = vmatpush.msra.mxu0 0.0
        %2662 = vmatpush.msra.mxu0 0.0
        %2663 = vmatpush.msra.mxu0 0.0
        %2664 = vmatpush.msra.mxu0 0.0
        %2665 = vmatpush.msra.mxu0 0.0
        %2666 = vmatpush.msra.mxu0 0.0
        %2667 = vmatpush.msra.mxu0 0.0
        %2668 = vmatpush.msra.mxu0 0.0
        %2669 = vmatpush.msra.mxu0 0.0
        %2670 = vmatpush.msra.mxu0 0.0
        %2671 = vmatpush.msra.mxu0 0.0
        %2672 = vmatpush.msra.mxu0 0.0
        %2673 = vmatpush.msra.mxu0 0.0
        %2674 = vmatpush.msra.mxu0 %v2050
        %2675 = vmatmul.f32.gmra.mxu0 %v2637
        %v2676 = vpop.f32.mrf.mxu0
        %v2677 = vadd.f32 0.0, %v2676
        %2678 = vdwg.mxu0
        %v2679 = vpack.c.bf16 %v2657, %v2657
        %v2680 = vpack.c.bf16 %v2677, %v2677
        %s2681 = scalar_lea.vmem %s8, 512
        %v2682 = vld [vmem:[%s2681] sm:$0xff]
        %v2683 = vld [vmem:[%s2681 + $0x8] sm:$0xff]
        %v2684 = vld [vmem:[%s2681 + $0x10] sm:$0xff]
        %v2685 = vld [vmem:[%s2681 + $0x18] sm:$0xff]
        %v2686 = vld [vmem:[%s2681 + $0x20] sm:$0xff]
        %v2687 = vld [vmem:[%s2681 + $0x28] sm:$0xff]
        %v2688 = vld [vmem:[%s2681 + $0x30] sm:$0xff]
        %v2689 = vld [vmem:[%s2681 + $0x38] sm:$0xff]
        %v2690 = vld [vmem:[%s2681 + $0x40] sm:$0xff]
        %v2691 = vld [vmem:[%s2681 + $0x48] sm:$0xff]
        %v2692 = vld [vmem:[%s2681 + $0x50] sm:$0xff]
        %v2693 = vld [vmem:[%s2681 + $0x58] sm:$0xff]
        %v2694 = vld [vmem:[%s2681 + $0x60] sm:$0xff]
        %v2695 = vld [vmem:[%s2681 + $0x68] sm:$0xff]
        %v2696 = vld [vmem:[%s2681 + $0x70] sm:$0xff]
        %v2697 = vld [vmem:[%s2681 + $0x78] sm:$0xff]
        %v2698 = vld [vmem:[%s2681 + $0x80] sm:$0xff]
        %v2699 = vld [vmem:[%s2681 + $0x88] sm:$0xff]
        %v2700 = vld [vmem:[%s2681 + $0x90] sm:$0xff]
        %v2701 = vld [vmem:[%s2681 + $0x98] sm:$0xff]
        %v2702 = vld [vmem:[%s2681 + $0xa0] sm:$0xff]
        %v2703 = vld [vmem:[%s2681 + $0xa8] sm:$0xff]
        %v2704 = vld [vmem:[%s2681 + $0xb0] sm:$0xff]
        %v2705 = vld [vmem:[%s2681 + $0xb8] sm:$0xff]
        %v2706 = vld [vmem:[%s2681 + $0xc0] sm:$0xff]
        %v2707 = vld [vmem:[%s2681 + $0xc8] sm:$0xff]
        %v2708 = vld [vmem:[%s2681 + $0xd0] sm:$0xff]
        %v2709 = vld [vmem:[%s2681 + $0xd8] sm:$0xff]
        %v2710 = vld [vmem:[%s2681 + $0xe0] sm:$0xff]
        %v2711 = vld [vmem:[%s2681 + $0xe8] sm:$0xff]
        %v2712 = vld [vmem:[%s2681 + $0xf0] sm:$0xff]
        %v2713 = vld [vmem:[%s2681 + $0xf8] sm:$0xff]
        %v2746 = vunpack.c.l.b16 %v2682
        %v2747 = vunpack.c.h.b16 %v2682
        %v2748 = vunpack.c.l.b16 %v2683
        %v2749 = vunpack.c.h.b16 %v2683
        %v2750 = vunpack.c.l.b16 %v2684
        %v2751 = vunpack.c.h.b16 %v2684
        %v2752 = vunpack.c.l.b16 %v2685
        %v2753 = vunpack.c.h.b16 %v2685
        %v2754 = vunpack.c.l.b16 %v2686
        %v2755 = vunpack.c.h.b16 %v2686
        %v2756 = vunpack.c.l.b16 %v2687
        %v2757 = vunpack.c.h.b16 %v2687
        %v2758 = vunpack.c.l.b16 %v2688
        %v2759 = vunpack.c.h.b16 %v2688
        %v2760 = vunpack.c.l.b16 %v2689
        %v2761 = vunpack.c.h.b16 %v2689
        %v2762 = vunpack.c.l.b16 %v2690
        %v2763 = vunpack.c.h.b16 %v2690
        %v2764 = vunpack.c.l.b16 %v2691
        %v2765 = vunpack.c.h.b16 %v2691
        %v2766 = vunpack.c.l.b16 %v2692
        %v2767 = vunpack.c.h.b16 %v2692
        %v2768 = vunpack.c.l.b16 %v2693
        %v2769 = vunpack.c.h.b16 %v2693
        %v2770 = vunpack.c.l.b16 %v2694
        %v2771 = vunpack.c.h.b16 %v2694
        %v2772 = vunpack.c.l.b16 %v2695
        %v2773 = vunpack.c.h.b16 %v2695
        %v2774 = vunpack.c.l.b16 %v2696
        %v2775 = vunpack.c.h.b16 %v2696
        %v2776 = vunpack.c.l.b16 %v2697
        %v2777 = vunpack.c.h.b16 %v2697
        %v2778 = vunpack.c.l.b16 %v2698
        %v2779 = vunpack.c.h.b16 %v2698
        %v2780 = vunpack.c.l.b16 %v2699
        %v2781 = vunpack.c.h.b16 %v2699
        %v2782 = vunpack.c.l.b16 %v2700
        %v2783 = vunpack.c.h.b16 %v2700
        %v2784 = vunpack.c.l.b16 %v2701
        %v2785 = vunpack.c.h.b16 %v2701
        %v2786 = vunpack.c.l.b16 %v2702
        %v2787 = vunpack.c.h.b16 %v2702
        %v2788 = vunpack.c.l.b16 %v2703
        %v2789 = vunpack.c.h.b16 %v2703
        %v2790 = vunpack.c.l.b16 %v2704
        %v2791 = vunpack.c.h.b16 %v2704
        %v2792 = vunpack.c.l.b16 %v2705
        %v2793 = vunpack.c.h.b16 %v2705
        %v2794 = vunpack.c.l.b16 %v2706
        %v2795 = vunpack.c.h.b16 %v2706
        %v2796 = vunpack.c.l.b16 %v2707
        %v2797 = vunpack.c.h.b16 %v2707
        %v2798 = vunpack.c.l.b16 %v2708
        %v2799 = vunpack.c.h.b16 %v2708
        %v2800 = vunpack.c.l.b16 %v2709
        %v2801 = vunpack.c.h.b16 %v2709
        %v2802 = vunpack.c.l.b16 %v2710
        %v2803 = vunpack.c.h.b16 %v2710
        %v2804 = vunpack.c.l.b16 %v2711
        %v2805 = vunpack.c.h.b16 %v2711
        %v2806 = vunpack.c.l.b16 %v2712
        %v2807 = vunpack.c.h.b16 %v2712
        %v2808 = vunpack.c.l.b16 %v2713
        %v2809 = vunpack.c.h.b16 %v2713
        %v2810 = vpack.c.b16 %v2748, %v2746
        %v2811 = vpack.c.b16 %v2749, %v2747
        %v2812 = vpack.c.b16 %v2752, %v2750
        %v2813 = vpack.c.b16 %v2753, %v2751
        %v2814 = vpack.c.b16 %v2756, %v2754
        %v2815 = vpack.c.b16 %v2757, %v2755
        %v2816 = vpack.c.b16 %v2760, %v2758
        %v2817 = vpack.c.b16 %v2761, %v2759
        %v2818 = vpack.c.b16 %v2764, %v2762
        %v2819 = vpack.c.b16 %v2765, %v2763
        %v2820 = vpack.c.b16 %v2768, %v2766
        %v2821 = vpack.c.b16 %v2769, %v2767
        %v2822 = vpack.c.b16 %v2772, %v2770
        %v2823 = vpack.c.b16 %v2773, %v2771
        %v2824 = vpack.c.b16 %v2776, %v2774
        %v2825 = vpack.c.b16 %v2777, %v2775
        %v2826 = vpack.c.b16 %v2780, %v2778
        %v2827 = vpack.c.b16 %v2781, %v2779
        %v2828 = vpack.c.b16 %v2784, %v2782
        %v2829 = vpack.c.b16 %v2785, %v2783
        %v2830 = vpack.c.b16 %v2788, %v2786
        %v2831 = vpack.c.b16 %v2789, %v2787
        %v2832 = vpack.c.b16 %v2792, %v2790
        %v2833 = vpack.c.b16 %v2793, %v2791
        %v2834 = vpack.c.b16 %v2796, %v2794
        %v2835 = vpack.c.b16 %v2797, %v2795
        %v2836 = vpack.c.b16 %v2800, %v2798
        %v2837 = vpack.c.b16 %v2801, %v2799
        %v2838 = vpack.c.b16 %v2804, %v2802
        %v2839 = vpack.c.b16 %v2805, %v2803
        %v2840 = vpack.c.b16 %v2808, %v2806
        %v2841 = vpack.c.b16 %v2809, %v2807
        %2874 = vmatpush.bf16.msra.mxu0 %v2824
        %2875 = vmatpush.bf16.msra.mxu0 %v2822
        %2876 = vmatpush.bf16.msra.mxu0 %v2820
        %2877 = vmatpush.bf16.msra.mxu0 %v2818
        %2878 = vmatpush.bf16.msra.mxu0 %v2816
        %2879 = vmatpush.bf16.msra.mxu0 %v2814
        %2880 = vmatpush.bf16.msra.mxu0 %v2812
        %2881 = vmatpush.bf16.msra.mxu0 %v2810
        %2882 = vmatmul.bf16.gmra.mxu0 %v2679
        %v2883 = vpop.f32.mrf.mxu0
        %v2884 = vadd.f32 0.0, %v2883
        %v2885 = vpop.f32.mrf.mxu0
        %2886 = vdwg.mxu0
        %2887 = vmatpush.bf16.msra.mxu0 %v2840
        %2888 = vmatpush.bf16.msra.mxu0 %v2838
        %2889 = vmatpush.bf16.msra.mxu0 %v2836
        %2890 = vmatpush.bf16.msra.mxu0 %v2834
        %2891 = vmatpush.bf16.msra.mxu0 %v2832
        %2892 = vmatpush.bf16.msra.mxu0 %v2830
        %2893 = vmatpush.bf16.msra.mxu0 %v2828
        %2894 = vmatpush.bf16.msra.mxu0 %v2826
        %2895 = vmatmul.bf16.gmra.mxu0 %v2680
        %v2896 = vpop.f32.mrf.mxu0
        %v2897 = vadd.f32 %v2884, %v2896
        %v2898 = vpop.f32.mrf.mxu0
        %2899 = vdwg.mxu0
        %2900 = vmatpush.bf16.msra.mxu0 %v2825
        %2901 = vmatpush.bf16.msra.mxu0 %v2823
        %2902 = vmatpush.bf16.msra.mxu0 %v2821
        %2903 = vmatpush.bf16.msra.mxu0 %v2819
        %2904 = vmatpush.bf16.msra.mxu0 %v2817
        %2905 = vmatpush.bf16.msra.mxu0 %v2815
        %2906 = vmatpush.bf16.msra.mxu0 %v2813
        %2907 = vmatpush.bf16.msra.mxu0 %v2811
        %2908 = vmatmul.bf16.gmra.mxu0 %v2679
        %v2909 = vpop.f32.mrf.mxu0
        %v2910 = vadd.f32 0.0, %v2909
        %v2911 = vpop.f32.mrf.mxu0
        %2912 = vdwg.mxu0
        %2913 = vmatpush.bf16.msra.mxu0 %v2841
        %2914 = vmatpush.bf16.msra.mxu0 %v2839
        %2915 = vmatpush.bf16.msra.mxu0 %v2837
        %2916 = vmatpush.bf16.msra.mxu0 %v2835
        %2917 = vmatpush.bf16.msra.mxu0 %v2833
        %2918 = vmatpush.bf16.msra.mxu0 %v2831
        %2919 = vmatpush.bf16.msra.mxu0 %v2829
        %2920 = vmatpush.bf16.msra.mxu0 %v2827
        %2921 = vmatmul.bf16.gmra.mxu0 %v2680
        %v2922 = vpop.f32.mrf.mxu0
        %v2923 = vadd.f32 %v2910, %v2922
        %v2924 = vpop.f32.mrf.mxu0
        %2925 = vdwg.mxu0
        %v2926 = vadd.f32 %v2605, %v2897
        %v2927 = vadd.f32 %v2631, %v2923
        %v2928 = vld [vmem:[#allocation7] sm:$0x3]
        %v2930 = vperm.slane %v2928, 0
        %v2931 = vperm.slane %v2928, 1
        %v2934 = vadd.f32 %v2926, %v2930
        %v2935 = vadd.f32 %v2927, %v2931
        %v2936 = vmax.f32 %v2934, 0.0
        %v2937 = vmax.f32 %v2935, 0.0
        %v2938 = vpack.c.bf16 %v2936, %v2936
        %v2939 = vpack.c.bf16 %v2937, %v2937
        %v2940 = vld [vmem:[#allocation9] sm:$0xff]
        %v2941 = vld [vmem:[#allocation9 + $0x8] sm:$0xff]
        %v2942 = vld [vmem:[#allocation9 + $0x10] sm:$0xff]
        %v2943 = vld [vmem:[#allocation9 + $0x18] sm:$0xff]
        %v2944 = vld [vmem:[#allocation9 + $0x20] sm:$0xff]
        %v2945 = vld [vmem:[#allocation9 + $0x28] sm:$0xff]
        %v2946 = vld [vmem:[#allocation9 + $0x30] sm:$0xff]
        %v2947 = vld [vmem:[#allocation9 + $0x38] sm:$0xff]
        %v2948 = vld [vmem:[#allocation9 + $0x40] sm:$0xff]
        %v2949 = vld [vmem:[#allocation9 + $0x48] sm:$0xff]
        %v2950 = vld [vmem:[#allocation9 + $0x50] sm:$0xff]
        %v2951 = vld [vmem:[#allocation9 + $0x58] sm:$0xff]
        %v2952 = vld [vmem:[#allocation9 + $0x60] sm:$0xff]
        %v2953 = vld [vmem:[#allocation9 + $0x68] sm:$0xff]
        %v2954 = vld [vmem:[#allocation9 + $0x70] sm:$0xff]
        %v2955 = vld [vmem:[#allocation9 + $0x78] sm:$0xff]
        %v2956 = vld [vmem:[#allocation9 + $0x80] sm:$0xff]
        %v2957 = vld [vmem:[#allocation9 + $0x88] sm:$0xff]
        %v2958 = vld [vmem:[#allocation9 + $0x90] sm:$0xff]
        %v2959 = vld [vmem:[#allocation9 + $0x98] sm:$0xff]
        %v2960 = vld [vmem:[#allocation9 + $0xa0] sm:$0xff]
        %v2961 = vld [vmem:[#allocation9 + $0xa8] sm:$0xff]
        %v2962 = vld [vmem:[#allocation9 + $0xb0] sm:$0xff]
        %v2963 = vld [vmem:[#allocation9 + $0xb8] sm:$0xff]
        %v2964 = vld [vmem:[#allocation9 + $0xc0] sm:$0xff]
        %v2965 = vld [vmem:[#allocation9 + $0xc8] sm:$0xff]
        %v2966 = vld [vmem:[#allocation9 + $0xd0] sm:$0xff]
        %v2967 = vld [vmem:[#allocation9 + $0xd8] sm:$0xff]
        %v2968 = vld [vmem:[#allocation9 + $0xe0] sm:$0xff]
        %v2969 = vld [vmem:[#allocation9 + $0xe8] sm:$0xff]
        %v2970 = vld [vmem:[#allocation9 + $0xf0] sm:$0xff]
        %v2971 = vld [vmem:[#allocation9 + $0xf8] sm:$0xff]
        %v3004 = vunpack.c.l.b16 %v2940
        %v3005 = vunpack.c.h.b16 %v2940
        %v3006 = vunpack.c.l.b16 %v2941
        %v3007 = vunpack.c.h.b16 %v2941
        %v3008 = vunpack.c.l.b16 %v2942
        %v3009 = vunpack.c.h.b16 %v2942
        %v3010 = vunpack.c.l.b16 %v2943
        %v3011 = vunpack.c.h.b16 %v2943
        %v3012 = vunpack.c.l.b16 %v2944
        %v3013 = vunpack.c.h.b16 %v2944
        %v3014 = vunpack.c.l.b16 %v2945
        %v3015 = vunpack.c.h.b16 %v2945
        %v3016 = vunpack.c.l.b16 %v2946
        %v3017 = vunpack.c.h.b16 %v2946
        %v3018 = vunpack.c.l.b16 %v2947
        %v3019 = vunpack.c.h.b16 %v2947
        %v3020 = vunpack.c.l.b16 %v2948
        %v3021 = vunpack.c.h.b16 %v2948
        %v3022 = vunpack.c.l.b16 %v2949
        %v3023 = vunpack.c.h.b16 %v2949
        %v3024 = vunpack.c.l.b16 %v2950
        %v3025 = vunpack.c.h.b16 %v2950
        %v3026 = vunpack.c.l.b16 %v2951
        %v3027 = vunpack.c.h.b16 %v2951
        %v3028 = vunpack.c.l.b16 %v2952
        %v3029 = vunpack.c.h.b16 %v2952
        %v3030 = vunpack.c.l.b16 %v2953
        %v3031 = vunpack.c.h.b16 %v2953
        %v3032 = vunpack.c.l.b16 %v2954
        %v3033 = vunpack.c.h.b16 %v2954
        %v3034 = vunpack.c.l.b16 %v2955
        %v3035 = vunpack.c.h.b16 %v2955
        %v3036 = vunpack.c.l.b16 %v2956
        %v3037 = vunpack.c.h.b16 %v2956
        %v3038 = vunpack.c.l.b16 %v2957
        %v3039 = vunpack.c.h.b16 %v2957
        %v3040 = vunpack.c.l.b16 %v2958
        %v3041 = vunpack.c.h.b16 %v2958
        %v3042 = vunpack.c.l.b16 %v2959
        %v3043 = vunpack.c.h.b16 %v2959
        %v3044 = vunpack.c.l.b16 %v2960
        %v3045 = vunpack.c.h.b16 %v2960
        %v3046 = vunpack.c.l.b16 %v2961
        %v3047 = vunpack.c.h.b16 %v2961
        %v3048 = vunpack.c.l.b16 %v2962
        %v3049 = vunpack.c.h.b16 %v2962
        %v3050 = vunpack.c.l.b16 %v2963
        %v3051 = vunpack.c.h.b16 %v2963
        %v3052 = vunpack.c.l.b16 %v2964
        %v3053 = vunpack.c.h.b16 %v2964
        %v3054 = vunpack.c.l.b16 %v2965
        %v3055 = vunpack.c.h.b16 %v2965
        %v3056 = vunpack.c.l.b16 %v2966
        %v3057 = vunpack.c.h.b16 %v2966
        %v3058 = vunpack.c.l.b16 %v2967
        %v3059 = vunpack.c.h.b16 %v2967
        %v3060 = vunpack.c.l.b16 %v2968
        %v3061 = vunpack.c.h.b16 %v2968
        %v3062 = vunpack.c.l.b16 %v2969
        %v3063 = vunpack.c.h.b16 %v2969
        %v3064 = vunpack.c.l.b16 %v2970
        %v3065 = vunpack.c.h.b16 %v2970
        %v3066 = vunpack.c.l.b16 %v2971
        %v3067 = vunpack.c.h.b16 %v2971
        %v3068 = vpack.c.b16 %v3006, %v3004
        %v3069 = vpack.c.b16 %v3007, %v3005
        %v3070 = vpack.c.b16 %v3010, %v3008
        %v3071 = vpack.c.b16 %v3011, %v3009
        %v3072 = vpack.c.b16 %v3014, %v3012
        %v3073 = vpack.c.b16 %v3015, %v3013
        %v3074 = vpack.c.b16 %v3018, %v3016
        %v3075 = vpack.c.b16 %v3019, %v3017
        %v3076 = vpack.c.b16 %v3022, %v3020
        %v3077 = vpack.c.b16 %v3023, %v3021
        %v3078 = vpack.c.b16 %v3026, %v3024
        %v3079 = vpack.c.b16 %v3027, %v3025
        %v3080 = vpack.c.b16 %v3030, %v3028
        %v3081 = vpack.c.b16 %v3031, %v3029
        %v3082 = vpack.c.b16 %v3034, %v3032
        %v3083 = vpack.c.b16 %v3035, %v3033
        %v3084 = vpack.c.b16 %v3038, %v3036
        %v3085 = vpack.c.b16 %v3039, %v3037
        %v3086 = vpack.c.b16 %v3042, %v3040
        %v3087 = vpack.c.b16 %v3043, %v3041
        %v3088 = vpack.c.b16 %v3046, %v3044
        %v3089 = vpack.c.b16 %v3047, %v3045
        %v3090 = vpack.c.b16 %v3050, %v3048
        %v3091 = vpack.c.b16 %v3051, %v3049
        %v3092 = vpack.c.b16 %v3054, %v3052
        %v3093 = vpack.c.b16 %v3055, %v3053
        %v3094 = vpack.c.b16 %v3058, %v3056
        %v3095 = vpack.c.b16 %v3059, %v3057
        %v3096 = vpack.c.b16 %v3062, %v3060
        %v3097 = vpack.c.b16 %v3063, %v3061
        %v3098 = vpack.c.b16 %v3066, %v3064
        %v3099 = vpack.c.b16 %v3067, %v3065
        %3132 = vmatpush.bf16.msra.mxu0 %v3082
        %3133 = vmatpush.bf16.msra.mxu0 %v3080
        %3134 = vmatpush.bf16.msra.mxu0 %v3078
        %3135 = vmatpush.bf16.msra.mxu0 %v3076
        %3136 = vmatpush.bf16.msra.mxu0 %v3074
        %3137 = vmatpush.bf16.msra.mxu0 %v3072
        %3138 = vmatpush.bf16.msra.mxu0 %v3070
        %3139 = vmatpush.bf16.msra.mxu0 %v3068
        %3140 = vmatmul.bf16.gmra.mxu0 %v2938
        %v3141 = vpop.f32.mrf.mxu0
        %v3142 = vadd.f32 0.0, %v3141
        %v3143 = vpop.f32.mrf.mxu0
        %3144 = vdwg.mxu0
        %3145 = vmatpush.bf16.msra.mxu0 %v3098
        %3146 = vmatpush.bf16.msra.mxu0 %v3096
        %3147 = vmatpush.bf16.msra.mxu0 %v3094
        %3148 = vmatpush.bf16.msra.mxu0 %v3092
        %3149 = vmatpush.bf16.msra.mxu0 %v3090
        %3150 = vmatpush.bf16.msra.mxu0 %v3088
        %3151 = vmatpush.bf16.msra.mxu0 %v3086
        %3152 = vmatpush.bf16.msra.mxu0 %v3084
        %3153 = vmatmul.bf16.gmra.mxu0 %v2939
        %v3154 = vpop.f32.mrf.mxu0
        %v3155 = vadd.f32 %v3142, %v3154
        %v3156 = vpop.f32.mrf.mxu0
        %3157 = vdwg.mxu0
        %3158 = vmatpush.bf16.msra.mxu0 %v3083
        %3159 = vmatpush.bf16.msra.mxu0 %v3081
        %3160 = vmatpush.bf16.msra.mxu0 %v3079
        %3161 = vmatpush.bf16.msra.mxu0 %v3077
        %3162 = vmatpush.bf16.msra.mxu0 %v3075
        %3163 = vmatpush.bf16.msra.mxu0 %v3073
        %3164 = vmatpush.bf16.msra.mxu0 %v3071
        %3165 = vmatpush.bf16.msra.mxu0 %v3069
        %3166 = vmatmul.bf16.gmra.mxu0 %v2938
        %v3167 = vpop.f32.mrf.mxu0
        %v3168 = vadd.f32 0.0, %v3167
        %v3169 = vpop.f32.mrf.mxu0
        %3170 = vdwg.mxu0
        %3171 = vmatpush.bf16.msra.mxu0 %v3099
        %3172 = vmatpush.bf16.msra.mxu0 %v3097
        %3173 = vmatpush.bf16.msra.mxu0 %v3095
        %3174 = vmatpush.bf16.msra.mxu0 %v3093
        %3175 = vmatpush.bf16.msra.mxu0 %v3091
        %3176 = vmatpush.bf16.msra.mxu0 %v3089
        %3177 = vmatpush.bf16.msra.mxu0 %v3087
        %3178 = vmatpush.bf16.msra.mxu0 %v3085
        %3179 = vmatmul.bf16.gmra.mxu0 %v2939
        %v3180 = vpop.f32.mrf.mxu0
        %v3181 = vadd.f32 %v3168, %v3180
        %v3182 = vpop.f32.mrf.mxu0
        %3183 = vdwg.mxu0
        %v3184 = vld [vmem:[%s10] sm:$0xff]
        %s3185 = scalar_lea.vmem [#allocation9], 256
        %v3186 = vld [vmem:[%s3185] sm:$0xff]
        %v3187 = vld [vmem:[%s3185 + $0x8] sm:$0xff]
        %v3188 = vld [vmem:[%s3185 + $0x10] sm:$0xff]
        %v3189 = vld [vmem:[%s3185 + $0x18] sm:$0xff]
        %v3190 = vld [vmem:[%s3185 + $0x20] sm:$0xff]
        %v3191 = vld [vmem:[%s3185 + $0x28] sm:$0xff]
        %v3192 = vld [vmem:[%s3185 + $0x30] sm:$0xff]
        %v3193 = vld [vmem:[%s3185 + $0x38] sm:$0xff]
        %v3194 = vld [vmem:[%s3185 + $0x40] sm:$0xff]
        %v3195 = vld [vmem:[%s3185 + $0x48] sm:$0xff]
        %v3196 = vld [vmem:[%s3185 + $0x50] sm:$0xff]
        %v3197 = vld [vmem:[%s3185 + $0x58] sm:$0xff]
        %v3198 = vld [vmem:[%s3185 + $0x60] sm:$0xff]
        %v3199 = vld [vmem:[%s3185 + $0x68] sm:$0xff]
        %v3200 = vld [vmem:[%s3185 + $0x70] sm:$0xff]
        %v3201 = vld [vmem:[%s3185 + $0x78] sm:$0xff]
        %v3202 = vld [vmem:[%s3185 + $0x80] sm:$0xff]
        %v3203 = vld [vmem:[%s3185 + $0x88] sm:$0xff]
        %v3204 = vld [vmem:[%s3185 + $0x90] sm:$0xff]
        %v3205 = vld [vmem:[%s3185 + $0x98] sm:$0xff]
        %v3206 = vld [vmem:[%s3185 + $0xa0] sm:$0xff]
        %v3207 = vld [vmem:[%s3185 + $0xa8] sm:$0xff]
        %v3208 = vld [vmem:[%s3185 + $0xb0] sm:$0xff]
        %v3209 = vld [vmem:[%s3185 + $0xb8] sm:$0xff]
        %v3210 = vld [vmem:[%s3185 + $0xc0] sm:$0xff]
        %v3211 = vld [vmem:[%s3185 + $0xc8] sm:$0xff]
        %v3212 = vld [vmem:[%s3185 + $0xd0] sm:$0xff]
        %v3213 = vld [vmem:[%s3185 + $0xd8] sm:$0xff]
        %v3214 = vld [vmem:[%s3185 + $0xe0] sm:$0xff]
        %v3215 = vld [vmem:[%s3185 + $0xe8] sm:$0xff]
        %v3216 = vld [vmem:[%s3185 + $0xf0] sm:$0xff]
        %v3217 = vld [vmem:[%s3185 + $0xf8] sm:$0xff]
        %v3250 = vunpack.c.l.b16 %v3186
        %v3251 = vunpack.c.h.b16 %v3186
        %v3252 = vunpack.c.l.b16 %v3187
        %v3253 = vunpack.c.h.b16 %v3187
        %v3254 = vunpack.c.l.b16 %v3188
        %v3255 = vunpack.c.h.b16 %v3188
        %v3256 = vunpack.c.l.b16 %v3189
        %v3257 = vunpack.c.h.b16 %v3189
        %v3258 = vunpack.c.l.b16 %v3190
        %v3259 = vunpack.c.h.b16 %v3190
        %v3260 = vunpack.c.l.b16 %v3191
        %v3261 = vunpack.c.h.b16 %v3191
        %v3262 = vunpack.c.l.b16 %v3192
        %v3263 = vunpack.c.h.b16 %v3192
        %v3264 = vunpack.c.l.b16 %v3193
        %v3265 = vunpack.c.h.b16 %v3193
        %v3266 = vunpack.c.l.b16 %v3194
        %v3267 = vunpack.c.h.b16 %v3194
        %v3268 = vunpack.c.l.b16 %v3195
        %v3269 = vunpack.c.h.b16 %v3195
        %v3270 = vunpack.c.l.b16 %v3196
        %v3271 = vunpack.c.h.b16 %v3196
        %v3272 = vunpack.c.l.b16 %v3197
        %v3273 = vunpack.c.h.b16 %v3197
        %v3274 = vunpack.c.l.b16 %v3198
        %v3275 = vunpack.c.h.b16 %v3198
        %v3276 = vunpack.c.l.b16 %v3199
        %v3277 = vunpack.c.h.b16 %v3199
        %v3278 = vunpack.c.l.b16 %v3200
        %v3279 = vunpack.c.h.b16 %v3200
        %v3280 = vunpack.c.l.b16 %v3201
        %v3281 = vunpack.c.h.b16 %v3201
        %v3282 = vunpack.c.l.b16 %v3202
        %v3283 = vunpack.c.h.b16 %v3202
        %v3284 = vunpack.c.l.b16 %v3203
        %v3285 = vunpack.c.h.b16 %v3203
        %v3286 = vunpack.c.l.b16 %v3204
        %v3287 = vunpack.c.h.b16 %v3204
        %v3288 = vunpack.c.l.b16 %v3205
        %v3289 = vunpack.c.h.b16 %v3205
        %v3290 = vunpack.c.l.b16 %v3206
        %v3291 = vunpack.c.h.b16 %v3206
        %v3292 = vunpack.c.l.b16 %v3207
        %v3293 = vunpack.c.h.b16 %v3207
        %v3294 = vunpack.c.l.b16 %v3208
        %v3295 = vunpack.c.h.b16 %v3208
        %v3296 = vunpack.c.l.b16 %v3209
        %v3297 = vunpack.c.h.b16 %v3209
        %v3298 = vunpack.c.l.b16 %v3210
        %v3299 = vunpack.c.h.b16 %v3210
        %v3300 = vunpack.c.l.b16 %v3211
        %v3301 = vunpack.c.h.b16 %v3211
        %v3302 = vunpack.c.l.b16 %v3212
        %v3303 = vunpack.c.h.b16 %v3212
        %v3304 = vunpack.c.l.b16 %v3213
        %v3305 = vunpack.c.h.b16 %v3213
        %v3306 = vunpack.c.l.b16 %v3214
        %v3307 = vunpack.c.h.b16 %v3214
        %v3308 = vunpack.c.l.b16 %v3215
        %v3309 = vunpack.c.h.b16 %v3215
        %v3310 = vunpack.c.l.b16 %v3216
        %v3311 = vunpack.c.h.b16 %v3216
        %v3312 = vunpack.c.l.b16 %v3217
        %v3313 = vunpack.c.h.b16 %v3217
        %v3314 = vpack.c.b16 %v3252, %v3250
        %v3315 = vpack.c.b16 %v3253, %v3251
        %v3316 = vpack.c.b16 %v3256, %v3254
        %v3317 = vpack.c.b16 %v3257, %v3255
        %v3318 = vpack.c.b16 %v3260, %v3258
        %v3319 = vpack.c.b16 %v3261, %v3259
        %v3320 = vpack.c.b16 %v3264, %v3262
        %v3321 = vpack.c.b16 %v3265, %v3263
        %v3322 = vpack.c.b16 %v3268, %v3266
        %v3323 = vpack.c.b16 %v3269, %v3267
        %v3324 = vpack.c.b16 %v3272, %v3270
        %v3325 = vpack.c.b16 %v3273, %v3271
        %v3326 = vpack.c.b16 %v3276, %v3274
        %v3327 = vpack.c.b16 %v3277, %v3275
        %v3328 = vpack.c.b16 %v3280, %v3278
        %v3329 = vpack.c.b16 %v3281, %v3279
        %v3330 = vpack.c.b16 %v3284, %v3282
        %v3331 = vpack.c.b16 %v3285, %v3283
        %v3332 = vpack.c.b16 %v3288, %v3286
        %v3333 = vpack.c.b16 %v3289, %v3287
        %v3334 = vpack.c.b16 %v3292, %v3290
        %v3335 = vpack.c.b16 %v3293, %v3291
        %v3336 = vpack.c.b16 %v3296, %v3294
        %v3337 = vpack.c.b16 %v3297, %v3295
        %v3338 = vpack.c.b16 %v3300, %v3298
        %v3339 = vpack.c.b16 %v3301, %v3299
        %v3340 = vpack.c.b16 %v3304, %v3302
        %v3341 = vpack.c.b16 %v3305, %v3303
        %v3342 = vpack.c.b16 %v3308, %v3306
        %v3343 = vpack.c.b16 %v3309, %v3307
        %v3344 = vpack.c.b16 %v3312, %v3310
        %v3345 = vpack.c.b16 %v3313, %v3311
        %3378 = vmatpush.bf16.msra.mxu0 %v3328
        %3379 = vmatpush.bf16.msra.mxu0 %v3326
        %3380 = vmatpush.bf16.msra.mxu0 %v3324
        %3381 = vmatpush.bf16.msra.mxu0 %v3322
        %3382 = vmatpush.bf16.msra.mxu0 %v3320
        %3383 = vmatpush.bf16.msra.mxu0 %v3318
        %3384 = vmatpush.bf16.msra.mxu0 %v3316
        %3385 = vmatpush.bf16.msra.mxu0 %v3314
        %3386 = vmatmul.bf16.gmra.mxu0 %v2938
        %v3387 = vpop.f32.mrf.mxu0
        %v3388 = vadd.f32 0.0, %v3387
        %v3389 = vpop.f32.mrf.mxu0
        %3390 = vdwg.mxu0
        %3391 = vmatpush.bf16.msra.mxu0 %v3344
        %3392 = vmatpush.bf16.msra.mxu0 %v3342
        %3393 = vmatpush.bf16.msra.mxu0 %v3340
        %3394 = vmatpush.bf16.msra.mxu0 %v3338
        %3395 = vmatpush.bf16.msra.mxu0 %v3336
        %3396 = vmatpush.bf16.msra.mxu0 %v3334
        %3397 = vmatpush.bf16.msra.mxu0 %v3332
        %3398 = vmatpush.bf16.msra.mxu0 %v3330
        %3399 = vmatmul.bf16.gmra.mxu0 %v2939
        %v3400 = vpop.f32.mrf.mxu0
        %v3401 = vadd.f32 %v3388, %v3400
        %v3402 = vpop.f32.mrf.mxu0
        %3403 = vdwg.mxu0
        %3404 = vmatpush.bf16.msra.mxu0 %v3329
        %3405 = vmatpush.bf16.msra.mxu0 %v3327
        %3406 = vmatpush.bf16.msra.mxu0 %v3325
        %3407 = vmatpush.bf16.msra.mxu0 %v3323
        %3408 = vmatpush.bf16.msra.mxu0 %v3321
        %3409 = vmatpush.bf16.msra.mxu0 %v3319
        %3410 = vmatpush.bf16.msra.mxu0 %v3317
        %3411 = vmatpush.bf16.msra.mxu0 %v3315
        %3412 = vmatmul.bf16.gmra.mxu0 %v2938
        %v3413 = vpop.f32.mrf.mxu0
        %v3414 = vadd.f32 0.0, %v3413
        %v3415 = vpop.f32.mrf.mxu0
        %3416 = vdwg.mxu0
        %3417 = vmatpush.bf16.msra.mxu0 %v3345
        %3418 = vmatpush.bf16.msra.mxu0 %v3343
        %3419 = vmatpush.bf16.msra.mxu0 %v3341
        %3420 = vmatpush.bf16.msra.mxu0 %v3339
        %3421 = vmatpush.bf16.msra.mxu0 %v3337
        %3422 = vmatpush.bf16.msra.mxu0 %v3335
        %3423 = vmatpush.bf16.msra.mxu0 %v3333
        %3424 = vmatpush.bf16.msra.mxu0 %v3331
        %3425 = vmatmul.bf16.gmra.mxu0 %v2939
        %v3426 = vpop.f32.mrf.mxu0
        %v3427 = vadd.f32 %v3414, %v3426
        %v3428 = vpop.f32.mrf.mxu0
        %3429 = vdwg.mxu0
        %s3430 = scalar_lea.vmem %s10, 8
        %v3431 = vld [vmem:[%s3430] sm:$0xff]
        %vm3432 = vcmask 31744
        %v3434 = vsel %vm3432, %v3431, 0
        %vm3436 = vcmask 1043456
        %v3438 = vsel %vm3436, %v3401, 0
        %v3441 = vsel %vm3436, %v3427, 0
        %3443 = vmatpush.msra.mxu0 0.0
        %3444 = vmatpush.msra.mxu0 0.0
        %3445 = vmatpush.msra.mxu0 0.0
        %3446 = vmatpush.msra.mxu0 0.0
        %3447 = vmatpush.msra.mxu0 0.0
        %3448 = vmatpush.msra.mxu0 0.0
        %3449 = vmatpush.msra.mxu0 0.0
        %3450 = vmatpush.msra.mxu0 0.0
        %3451 = vmatpush.msra.mxu0 0.0
        %3452 = vmatpush.msra.mxu0 0.0
        %3453 = vmatpush.msra.mxu0 0.0
        %3454 = vmatpush.msra.mxu0 0.0
        %3455 = vmatpush.msra.mxu0 0.0
        %3456 = vmatpush.msra.mxu0 0.0
        %3457 = vmatpush.msra.mxu0 0.0
        %3458 = vmatpush.msra.mxu0 %v3438
        %3459 = vmatmul.f32.gmra.mxu0 %v3434
        %v3460 = vpop.f32.mrf.mxu0
        %v3461 = vadd.f32 0.0, %v3460
        %3462 = vdwg.mxu0
        %3463 = vmatpush.msra.mxu0 0.0
        %3464 = vmatpush.msra.mxu0 0.0
        %3465 = vmatpush.msra.mxu0 0.0
        %3466 = vmatpush.msra.mxu0 0.0
        %3467 = vmatpush.msra.mxu0 0.0
        %3468 = vmatpush.msra.mxu0 0.0
        %3469 = vmatpush.msra.mxu0 0.0
        %3470 = vmatpush.msra.mxu0 0.0
        %3471 = vmatpush.msra.mxu0 0.0
        %3472 = vmatpush.msra.mxu0 0.0
        %3473 = vmatpush.msra.mxu0 0.0
        %3474 = vmatpush.msra.mxu0 0.0
        %3475 = vmatpush.msra.mxu0 0.0
        %3476 = vmatpush.msra.mxu0 0.0
        %3477 = vmatpush.msra.mxu0 0.0
        %3478 = vmatpush.msra.mxu0 %v3441
        %3479 = vmatmul.f32.gmra.mxu0 %v3434
        %v3480 = vpop.f32.mrf.mxu0
        %v3481 = vadd.f32 0.0, %v3480
        %3482 = vdwg.mxu0
        %v3484 = vsel %vm3432, %v3184, 0
        %v3487 = vsel %vm3436, %v3155, 0
        %v3490 = vsel %vm3436, %v3181, 0
        %3492 = vmatpush.msra.mxu0 0.0
        %3493 = vmatpush.msra.mxu0 0.0
        %3494 = vmatpush.msra.mxu0 0.0
        %3495 = vmatpush.msra.mxu0 0.0
        %3496 = vmatpush.msra.mxu0 0.0
        %3497 = vmatpush.msra.mxu0 0.0
        %3498 = vmatpush.msra.mxu0 0.0
        %3499 = vmatpush.msra.mxu0 0.0
        %3500 = vmatpush.msra.mxu0 0.0
        %3501 = vmatpush.msra.mxu0 0.0
        %3502 = vmatpush.msra.mxu0 0.0
        %3503 = vmatpush.msra.mxu0 0.0
        %3504 = vmatpush.msra.mxu0 0.0
        %3505 = vmatpush.msra.mxu0 0.0
        %3506 = vmatpush.msra.mxu0 0.0
        %3507 = vmatpush.msra.mxu0 %v3487
        %3508 = vmatmul.f32.gmra.mxu0 %v3484
        %v3509 = vpop.f32.mrf.mxu0
        %v3510 = vadd.f32 %v3461, %v3509
        %3511 = vdwg.mxu0
        %3512 = vmatpush.msra.mxu0 0.0
        %3513 = vmatpush.msra.mxu0 0.0
        %3514 = vmatpush.msra.mxu0 0.0
        %3515 = vmatpush.msra.mxu0 0.0
        %3516 = vmatpush.msra.mxu0 0.0
        %3517 = vmatpush.msra.mxu0 0.0
        %3518 = vmatpush.msra.mxu0 0.0
        %3519 = vmatpush.msra.mxu0 0.0
        %3520 = vmatpush.msra.mxu0 0.0
        %3521 = vmatpush.msra.mxu0 0.0
        %3522 = vmatpush.msra.mxu0 0.0
        %3523 = vmatpush.msra.mxu0 0.0
        %3524 = vmatpush.msra.mxu0 0.0
        %3525 = vmatpush.msra.mxu0 0.0
        %3526 = vmatpush.msra.mxu0 0.0
        %3527 = vmatpush.msra.mxu0 %v3490
        %3528 = vmatmul.f32.gmra.mxu0 %v3484
        %v3529 = vpop.f32.mrf.mxu0
        %v3530 = vadd.f32 %v3481, %v3529
        %3531 = vdwg.mxu0
        %s3532 = scalar_lea.vmem [#allocation9], 512
        %v3533 = vld [vmem:[%s3532] sm:$0xff]
        %v3534 = vld [vmem:[%s3532 + $0x8] sm:$0xff]
        %v3535 = vld [vmem:[%s3532 + $0x10] sm:$0xff]
        %v3536 = vld [vmem:[%s3532 + $0x18] sm:$0xff]
        %v3537 = vld [vmem:[%s3532 + $0x20] sm:$0xff]
        %v3538 = vld [vmem:[%s3532 + $0x28] sm:$0xff]
        %v3539 = vld [vmem:[%s3532 + $0x30] sm:$0xff]
        %v3540 = vld [vmem:[%s3532 + $0x38] sm:$0xff]
        %v3541 = vld [vmem:[%s3532 + $0x40] sm:$0xff]
        %v3542 = vld [vmem:[%s3532 + $0x48] sm:$0xff]
        %v3543 = vld [vmem:[%s3532 + $0x50] sm:$0xff]
        %v3544 = vld [vmem:[%s3532 + $0x58] sm:$0xff]
        %v3545 = vld [vmem:[%s3532 + $0x60] sm:$0xff]
        %v3546 = vld [vmem:[%s3532 + $0x68] sm:$0xff]
        %v3547 = vld [vmem:[%s3532 + $0x70] sm:$0xff]
        %v3548 = vld [vmem:[%s3532 + $0x78] sm:$0xff]
        %v3549 = vld [vmem:[%s3532 + $0x80] sm:$0xff]
        %v3550 = vld [vmem:[%s3532 + $0x88] sm:$0xff]
        %v3551 = vld [vmem:[%s3532 + $0x90] sm:$0xff]
        %v3552 = vld [vmem:[%s3532 + $0x98] sm:$0xff]
        %v3553 = vld [vmem:[%s3532 + $0xa0] sm:$0xff]
        %v3554 = vld [vmem:[%s3532 + $0xa8] sm:$0xff]
        %v3555 = vld [vmem:[%s3532 + $0xb0] sm:$0xff]
        %v3556 = vld [vmem:[%s3532 + $0xb8] sm:$0xff]
        %v3557 = vld [vmem:[%s3532 + $0xc0] sm:$0xff]
        %v3558 = vld [vmem:[%s3532 + $0xc8] sm:$0xff]
        %v3559 = vld [vmem:[%s3532 + $0xd0] sm:$0xff]
        %v3560 = vld [vmem:[%s3532 + $0xd8] sm:$0xff]
        %v3561 = vld [vmem:[%s3532 + $0xe0] sm:$0xff]
        %v3562 = vld [vmem:[%s3532 + $0xe8] sm:$0xff]
        %v3563 = vld [vmem:[%s3532 + $0xf0] sm:$0xff]
        %v3564 = vld [vmem:[%s3532 + $0xf8] sm:$0xff]
        %v3597 = vunpack.c.l.b16 %v3533
        %v3598 = vunpack.c.h.b16 %v3533
        %v3599 = vunpack.c.l.b16 %v3534
        %v3600 = vunpack.c.h.b16 %v3534
        %v3601 = vunpack.c.l.b16 %v3535
        %v3602 = vunpack.c.h.b16 %v3535
        %v3603 = vunpack.c.l.b16 %v3536
        %v3604 = vunpack.c.h.b16 %v3536
        %v3605 = vunpack.c.l.b16 %v3537
        %v3606 = vunpack.c.h.b16 %v3537
        %v3607 = vunpack.c.l.b16 %v3538
        %v3608 = vunpack.c.h.b16 %v3538
        %v3609 = vunpack.c.l.b16 %v3539
        %v3610 = vunpack.c.h.b16 %v3539
        %v3611 = vunpack.c.l.b16 %v3540
        %v3612 = vunpack.c.h.b16 %v3540
        %v3613 = vunpack.c.l.b16 %v3541
        %v3614 = vunpack.c.h.b16 %v3541
        %v3615 = vunpack.c.l.b16 %v3542
        %v3616 = vunpack.c.h.b16 %v3542
        %v3617 = vunpack.c.l.b16 %v3543
        %v3618 = vunpack.c.h.b16 %v3543
        %v3619 = vunpack.c.l.b16 %v3544
        %v3620 = vunpack.c.h.b16 %v3544
        %v3621 = vunpack.c.l.b16 %v3545
        %v3622 = vunpack.c.h.b16 %v3545
        %v3623 = vunpack.c.l.b16 %v3546
        %v3624 = vunpack.c.h.b16 %v3546
        %v3625 = vunpack.c.l.b16 %v3547
        %v3626 = vunpack.c.h.b16 %v3547
        %v3627 = vunpack.c.l.b16 %v3548
        %v3628 = vunpack.c.h.b16 %v3548
        %v3629 = vunpack.c.l.b16 %v3549
        %v3630 = vunpack.c.h.b16 %v3549
        %v3631 = vunpack.c.l.b16 %v3550
        %v3632 = vunpack.c.h.b16 %v3550
        %v3633 = vunpack.c.l.b16 %v3551
        %v3634 = vunpack.c.h.b16 %v3551
        %v3635 = vunpack.c.l.b16 %v3552
        %v3636 = vunpack.c.h.b16 %v3552
        %v3637 = vunpack.c.l.b16 %v3553
        %v3638 = vunpack.c.h.b16 %v3553
        %v3639 = vunpack.c.l.b16 %v3554
        %v3640 = vunpack.c.h.b16 %v3554
        %v3641 = vunpack.c.l.b16 %v3555
        %v3642 = vunpack.c.h.b16 %v3555
        %v3643 = vunpack.c.l.b16 %v3556
        %v3644 = vunpack.c.h.b16 %v3556
        %v3645 = vunpack.c.l.b16 %v3557
        %v3646 = vunpack.c.h.b16 %v3557
        %v3647 = vunpack.c.l.b16 %v3558
        %v3648 = vunpack.c.h.b16 %v3558
        %v3649 = vunpack.c.l.b16 %v3559
        %v3650 = vunpack.c.h.b16 %v3559
        %v3651 = vunpack.c.l.b16 %v3560
        %v3652 = vunpack.c.h.b16 %v3560
        %v3653 = vunpack.c.l.b16 %v3561
        %v3654 = vunpack.c.h.b16 %v3561
        %v3655 = vunpack.c.l.b16 %v3562
        %v3656 = vunpack.c.h.b16 %v3562
        %v3657 = vunpack.c.l.b16 %v3563
        %v3658 = vunpack.c.h.b16 %v3563
        %v3659 = vunpack.c.l.b16 %v3564
        %v3660 = vunpack.c.h.b16 %v3564
        %v3661 = vpack.c.b16 %v3599, %v3597
        %v3662 = vpack.c.b16 %v3600, %v3598
        %v3663 = vpack.c.b16 %v3603, %v3601
        %v3664 = vpack.c.b16 %v3604, %v3602
        %v3665 = vpack.c.b16 %v3607, %v3605
        %v3666 = vpack.c.b16 %v3608, %v3606
        %v3667 = vpack.c.b16 %v3611, %v3609
        %v3668 = vpack.c.b16 %v3612, %v3610
        %v3669 = vpack.c.b16 %v3615, %v3613
        %v3670 = vpack.c.b16 %v3616, %v3614
        %v3671 = vpack.c.b16 %v3619, %v3617
        %v3672 = vpack.c.b16 %v3620, %v3618
        %v3673 = vpack.c.b16 %v3623, %v3621
        %v3674 = vpack.c.b16 %v3624, %v3622
        %v3675 = vpack.c.b16 %v3627, %v3625
        %v3676 = vpack.c.b16 %v3628, %v3626
        %v3677 = vpack.c.b16 %v3631, %v3629
        %v3678 = vpack.c.b16 %v3632, %v3630
        %v3679 = vpack.c.b16 %v3635, %v3633
        %v3680 = vpack.c.b16 %v3636, %v3634
        %v3681 = vpack.c.b16 %v3639, %v3637
        %v3682 = vpack.c.b16 %v3640, %v3638
        %v3683 = vpack.c.b16 %v3643, %v3641
        %v3684 = vpack.c.b16 %v3644, %v3642
        %v3685 = vpack.c.b16 %v3647, %v3645
        %v3686 = vpack.c.b16 %v3648, %v3646
        %v3687 = vpack.c.b16 %v3651, %v3649
        %v3688 = vpack.c.b16 %v3652, %v3650
        %v3689 = vpack.c.b16 %v3655, %v3653
        %v3690 = vpack.c.b16 %v3656, %v3654
        %v3691 = vpack.c.b16 %v3659, %v3657
        %v3692 = vpack.c.b16 %v3660, %v3658
        %3725 = vmatpush.bf16.msra.mxu0 %v3675
        %3726 = vmatpush.bf16.msra.mxu0 %v3673
        %3727 = vmatpush.bf16.msra.mxu0 %v3671
        %3728 = vmatpush.bf16.msra.mxu0 %v3669
        %3729 = vmatpush.bf16.msra.mxu0 %v3667
        %3730 = vmatpush.bf16.msra.mxu0 %v3665
        %3731 = vmatpush.bf16.msra.mxu0 %v3663
        %3732 = vmatpush.bf16.msra.mxu0 %v3661
        %3733 = vmatmul.bf16.gmra.mxu0 %v2938
        %v3734 = vpop.f32.mrf.mxu0
        %v3735 = vadd.f32 0.0, %v3734
        %v3736 = vpop.f32.mrf.mxu0
        %3737 = vdwg.mxu0
        %3738 = vmatpush.bf16.msra.mxu0 %v3691
        %3739 = vmatpush.bf16.msra.mxu0 %v3689
        %3740 = vmatpush.bf16.msra.mxu0 %v3687
        %3741 = vmatpush.bf16.msra.mxu0 %v3685
        %3742 = vmatpush.bf16.msra.mxu0 %v3683
        %3743 = vmatpush.bf16.msra.mxu0 %v3681
        %3744 = vmatpush.bf16.msra.mxu0 %v3679
        %3745 = vmatpush.bf16.msra.mxu0 %v3677
        %3746 = vmatmul.bf16.gmra.mxu0 %v2939
        %v3747 = vpop.f32.mrf.mxu0
        %v3748 = vadd.f32 %v3735, %v3747
        %v3749 = vpop.f32.mrf.mxu0
        %3750 = vdwg.mxu0
        %3751 = vmatpush.bf16.msra.mxu0 %v3676
        %3752 = vmatpush.bf16.msra.mxu0 %v3674
        %3753 = vmatpush.bf16.msra.mxu0 %v3672
        %3754 = vmatpush.bf16.msra.mxu0 %v3670
        %3755 = vmatpush.bf16.msra.mxu0 %v3668
        %3756 = vmatpush.bf16.msra.mxu0 %v3666
        %3757 = vmatpush.bf16.msra.mxu0 %v3664
        %3758 = vmatpush.bf16.msra.mxu0 %v3662
        %3759 = vmatmul.bf16.gmra.mxu0 %v2938
        %v3760 = vpop.f32.mrf.mxu0
        %v3761 = vadd.f32 0.0, %v3760
        %v3762 = vpop.f32.mrf.mxu0
        %3763 = vdwg.mxu0
        %3764 = vmatpush.bf16.msra.mxu0 %v3692
        %3765 = vmatpush.bf16.msra.mxu0 %v3690
        %3766 = vmatpush.bf16.msra.mxu0 %v3688
        %3767 = vmatpush.bf16.msra.mxu0 %v3686
        %3768 = vmatpush.bf16.msra.mxu0 %v3684
        %3769 = vmatpush.bf16.msra.mxu0 %v3682
        %3770 = vmatpush.bf16.msra.mxu0 %v3680
        %3771 = vmatpush.bf16.msra.mxu0 %v3678
        %3772 = vmatmul.bf16.gmra.mxu0 %v2939
        %v3773 = vpop.f32.mrf.mxu0
        %v3774 = vadd.f32 %v3761, %v3773
        %v3775 = vpop.f32.mrf.mxu0
        %3776 = vdwg.mxu0
        %s3777 = scalar_lea.vmem %s10, 16
        %v3778 = vld [vmem:[%s3777] sm:$0xff]
        %v3780 = vsel %vm3432, %v3778, 0
        %v3783 = vsel %vm3436, %v3748, 0
        %v3786 = vsel %vm3436, %v3774, 0
        %3788 = vmatpush.msra.mxu0 0.0
        %3789 = vmatpush.msra.mxu0 0.0
        %3790 = vmatpush.msra.mxu0 0.0
        %3791 = vmatpush.msra.mxu0 0.0
        %3792 = vmatpush.msra.mxu0 0.0
        %3793 = vmatpush.msra.mxu0 0.0
        %3794 = vmatpush.msra.mxu0 0.0
        %3795 = vmatpush.msra.mxu0 0.0
        %3796 = vmatpush.msra.mxu0 0.0
        %3797 = vmatpush.msra.mxu0 0.0
        %3798 = vmatpush.msra.mxu0 0.0
        %3799 = vmatpush.msra.mxu0 0.0
        %3800 = vmatpush.msra.mxu0 0.0
        %3801 = vmatpush.msra.mxu0 0.0
        %3802 = vmatpush.msra.mxu0 0.0
        %3803 = vmatpush.msra.mxu0 %v3783
        %3804 = vmatmul.f32.gmra.mxu0 %v3780
        %v3805 = vpop.f32.mrf.mxu0
        %v3806 = vadd.f32 0.0, %v3805
        %3807 = vdwg.mxu0
        %3808 = vmatpush.msra.mxu0 0.0
        %3809 = vmatpush.msra.mxu0 0.0
        %3810 = vmatpush.msra.mxu0 0.0
        %3811 = vmatpush.msra.mxu0 0.0
        %3812 = vmatpush.msra.mxu0 0.0
        %3813 = vmatpush.msra.mxu0 0.0
        %3814 = vmatpush.msra.mxu0 0.0
        %3815 = vmatpush.msra.mxu0 0.0
        %3816 = vmatpush.msra.mxu0 0.0
        %3817 = vmatpush.msra.mxu0 0.0
        %3818 = vmatpush.msra.mxu0 0.0
        %3819 = vmatpush.msra.mxu0 0.0
        %3820 = vmatpush.msra.mxu0 0.0
        %3821 = vmatpush.msra.mxu0 0.0
        %3822 = vmatpush.msra.mxu0 0.0
        %3823 = vmatpush.msra.mxu0 %v3786
        %3824 = vmatmul.f32.gmra.mxu0 %v3780
        %v3825 = vpop.f32.mrf.mxu0
        %v3826 = vadd.f32 0.0, %v3825
        %3827 = vdwg.mxu0
        %v3828 = vadd.f32 %v3510, %v3806
        %v3829 = vadd.f32 %v3530, %v3826
        %v3830 = vld [vmem:[#allocation10] sm:$0x3]
        %v3832 = vperm.slane %v3830, 0
        %v3833 = vperm.slane %v3830, 1
        %v3836 = vadd.f32 %v3828, %v3832
        %v3837 = vadd.f32 %v3829, %v3833
        %v3838 = vmax.f32 %v3836, 0.0
        %v3839 = vmax.f32 %v3837, 0.0
        %v3840 = vpack.c.bf16 %v3838, %v3838
        %v3841 = vpack.c.bf16 %v3839, %v3839
        %v3842 = vld [vmem:[#allocation12] sm:$0xff]
        %v3843 = vld [vmem:[#allocation12 + $0x8] sm:$0xff]
        %v3844 = vld [vmem:[#allocation12 + $0x10] sm:$0xff]
        %v3845 = vld [vmem:[#allocation12 + $0x18] sm:$0xff]
        %v3846 = vld [vmem:[#allocation12 + $0x20] sm:$0xff]
        %v3847 = vld [vmem:[#allocation12 + $0x28] sm:$0xff]
        %v3848 = vld [vmem:[#allocation12 + $0x30] sm:$0xff]
        %v3849 = vld [vmem:[#allocation12 + $0x38] sm:$0xff]
        %v3850 = vld [vmem:[#allocation12 + $0x40] sm:$0xff]
        %v3851 = vld [vmem:[#allocation12 + $0x48] sm:$0xff]
        %v3852 = vld [vmem:[#allocation12 + $0x50] sm:$0xff]
        %v3853 = vld [vmem:[#allocation12 + $0x58] sm:$0xff]
        %v3854 = vld [vmem:[#allocation12 + $0x60] sm:$0xff]
        %v3855 = vld [vmem:[#allocation12 + $0x68] sm:$0xff]
        %v3856 = vld [vmem:[#allocation12 + $0x70] sm:$0xff]
        %v3857 = vld [vmem:[#allocation12 + $0x78] sm:$0xff]
        %v3858 = vld [vmem:[#allocation12 + $0x80] sm:$0xff]
        %v3859 = vld [vmem:[#allocation12 + $0x88] sm:$0xff]
        %v3860 = vld [vmem:[#allocation12 + $0x90] sm:$0xff]
        %v3861 = vld [vmem:[#allocation12 + $0x98] sm:$0xff]
        %v3862 = vld [vmem:[#allocation12 + $0xa0] sm:$0xff]
        %v3863 = vld [vmem:[#allocation12 + $0xa8] sm:$0xff]
        %v3864 = vld [vmem:[#allocation12 + $0xb0] sm:$0xff]
        %v3865 = vld [vmem:[#allocation12 + $0xb8] sm:$0xff]
        %v3866 = vld [vmem:[#allocation12 + $0xc0] sm:$0xff]
        %v3867 = vld [vmem:[#allocation12 + $0xc8] sm:$0xff]
        %v3868 = vld [vmem:[#allocation12 + $0xd0] sm:$0xff]
        %v3869 = vld [vmem:[#allocation12 + $0xd8] sm:$0xff]
        %v3870 = vld [vmem:[#allocation12 + $0xe0] sm:$0xff]
        %v3871 = vld [vmem:[#allocation12 + $0xe8] sm:$0xff]
        %v3872 = vld [vmem:[#allocation12 + $0xf0] sm:$0xff]
        %v3873 = vld [vmem:[#allocation12 + $0xf8] sm:$0xff]
        %v3906 = vunpack.c.l.b16 %v3842
        %v3907 = vunpack.c.h.b16 %v3842
        %v3908 = vunpack.c.l.b16 %v3843
        %v3909 = vunpack.c.h.b16 %v3843
        %v3910 = vunpack.c.l.b16 %v3844
        %v3911 = vunpack.c.h.b16 %v3844
        %v3912 = vunpack.c.l.b16 %v3845
        %v3913 = vunpack.c.h.b16 %v3845
        %v3914 = vunpack.c.l.b16 %v3846
        %v3915 = vunpack.c.h.b16 %v3846
        %v3916 = vunpack.c.l.b16 %v3847
        %v3917 = vunpack.c.h.b16 %v3847
        %v3918 = vunpack.c.l.b16 %v3848
        %v3919 = vunpack.c.h.b16 %v3848
        %v3920 = vunpack.c.l.b16 %v3849
        %v3921 = vunpack.c.h.b16 %v3849
        %v3922 = vunpack.c.l.b16 %v3850
        %v3923 = vunpack.c.h.b16 %v3850
        %v3924 = vunpack.c.l.b16 %v3851
        %v3925 = vunpack.c.h.b16 %v3851
        %v3926 = vunpack.c.l.b16 %v3852
        %v3927 = vunpack.c.h.b16 %v3852
        %v3928 = vunpack.c.l.b16 %v3853
        %v3929 = vunpack.c.h.b16 %v3853
        %v3930 = vunpack.c.l.b16 %v3854
        %v3931 = vunpack.c.h.b16 %v3854
        %v3932 = vunpack.c.l.b16 %v3855
        %v3933 = vunpack.c.h.b16 %v3855
        %v3934 = vunpack.c.l.b16 %v3856
        %v3935 = vunpack.c.h.b16 %v3856
        %v3936 = vunpack.c.l.b16 %v3857
        %v3937 = vunpack.c.h.b16 %v3857
        %v3938 = vunpack.c.l.b16 %v3858
        %v3939 = vunpack.c.h.b16 %v3858
        %v3940 = vunpack.c.l.b16 %v3859
        %v3941 = vunpack.c.h.b16 %v3859
        %v3942 = vunpack.c.l.b16 %v3860
        %v3943 = vunpack.c.h.b16 %v3860
        %v3944 = vunpack.c.l.b16 %v3861
        %v3945 = vunpack.c.h.b16 %v3861
        %v3946 = vunpack.c.l.b16 %v3862
        %v3947 = vunpack.c.h.b16 %v3862
        %v3948 = vunpack.c.l.b16 %v3863
        %v3949 = vunpack.c.h.b16 %v3863
        %v3950 = vunpack.c.l.b16 %v3864
        %v3951 = vunpack.c.h.b16 %v3864
        %v3952 = vunpack.c.l.b16 %v3865
        %v3953 = vunpack.c.h.b16 %v3865
        %v3954 = vunpack.c.l.b16 %v3866
        %v3955 = vunpack.c.h.b16 %v3866
        %v3956 = vunpack.c.l.b16 %v3867
        %v3957 = vunpack.c.h.b16 %v3867
        %v3958 = vunpack.c.l.b16 %v3868
        %v3959 = vunpack.c.h.b16 %v3868
        %v3960 = vunpack.c.l.b16 %v3869
        %v3961 = vunpack.c.h.b16 %v3869
        %v3962 = vunpack.c.l.b16 %v3870
        %v3963 = vunpack.c.h.b16 %v3870
        %v3964 = vunpack.c.l.b16 %v3871
        %v3965 = vunpack.c.h.b16 %v3871
        %v3966 = vunpack.c.l.b16 %v3872
        %v3967 = vunpack.c.h.b16 %v3872
        %v3968 = vunpack.c.l.b16 %v3873
        %v3969 = vunpack.c.h.b16 %v3873
        %v3970 = vpack.c.b16 %v3908, %v3906
        %v3971 = vpack.c.b16 %v3909, %v3907
        %v3972 = vpack.c.b16 %v3912, %v3910
        %v3973 = vpack.c.b16 %v3913, %v3911
        %v3974 = vpack.c.b16 %v3916, %v3914
        %v3975 = vpack.c.b16 %v3917, %v3915
        %v3976 = vpack.c.b16 %v3920, %v3918
        %v3977 = vpack.c.b16 %v3921, %v3919
        %v3978 = vpack.c.b16 %v3924, %v3922
        %v3979 = vpack.c.b16 %v3925, %v3923
        %v3980 = vpack.c.b16 %v3928, %v3926
        %v3981 = vpack.c.b16 %v3929, %v3927
        %v3982 = vpack.c.b16 %v3932, %v3930
        %v3983 = vpack.c.b16 %v3933, %v3931
        %v3984 = vpack.c.b16 %v3936, %v3934
        %v3985 = vpack.c.b16 %v3937, %v3935
        %v3986 = vpack.c.b16 %v3940, %v3938
        %v3987 = vpack.c.b16 %v3941, %v3939
        %v3988 = vpack.c.b16 %v3944, %v3942
        %v3989 = vpack.c.b16 %v3945, %v3943
        %v3990 = vpack.c.b16 %v3948, %v3946
        %v3991 = vpack.c.b16 %v3949, %v3947
        %v3992 = vpack.c.b16 %v3952, %v3950
        %v3993 = vpack.c.b16 %v3953, %v3951
        %v3994 = vpack.c.b16 %v3956, %v3954
        %v3995 = vpack.c.b16 %v3957, %v3955
        %v3996 = vpack.c.b16 %v3960, %v3958
        %v3997 = vpack.c.b16 %v3961, %v3959
        %v3998 = vpack.c.b16 %v3964, %v3962
        %v3999 = vpack.c.b16 %v3965, %v3963
        %v4000 = vpack.c.b16 %v3968, %v3966
        %v4001 = vpack.c.b16 %v3969, %v3967
        %4034 = vmatpush.bf16.msra.mxu0 %v3984
        %4035 = vmatpush.bf16.msra.mxu0 %v3982
        %4036 = vmatpush.bf16.msra.mxu0 %v3980
        %4037 = vmatpush.bf16.msra.mxu0 %v3978
        %4038 = vmatpush.bf16.msra.mxu0 %v3976
        %4039 = vmatpush.bf16.msra.mxu0 %v3974
        %4040 = vmatpush.bf16.msra.mxu0 %v3972
        %4041 = vmatpush.bf16.msra.mxu0 %v3970
        %4042 = vmatmul.bf16.gmra.mxu0 %v3840
        %v4043 = vpop.f32.mrf.mxu0
        %v4044 = vadd.f32 0.0, %v4043
        %v4045 = vpop.f32.mrf.mxu0
        %4046 = vdwg.mxu0
        %4047 = vmatpush.bf16.msra.mxu0 %v4000
        %4048 = vmatpush.bf16.msra.mxu0 %v3998
        %4049 = vmatpush.bf16.msra.mxu0 %v3996
        %4050 = vmatpush.bf16.msra.mxu0 %v3994
        %4051 = vmatpush.bf16.msra.mxu0 %v3992
        %4052 = vmatpush.bf16.msra.mxu0 %v3990
        %4053 = vmatpush.bf16.msra.mxu0 %v3988
        %4054 = vmatpush.bf16.msra.mxu0 %v3986
        %4055 = vmatmul.bf16.gmra.mxu0 %v3841
        %v4056 = vpop.f32.mrf.mxu0
        %v4057 = vadd.f32 %v4044, %v4056
        %v4058 = vpop.f32.mrf.mxu0
        %4059 = vdwg.mxu0
        %4060 = vmatpush.bf16.msra.mxu0 %v3985
        %4061 = vmatpush.bf16.msra.mxu0 %v3983
        %4062 = vmatpush.bf16.msra.mxu0 %v3981
        %4063 = vmatpush.bf16.msra.mxu0 %v3979
        %4064 = vmatpush.bf16.msra.mxu0 %v3977
        %4065 = vmatpush.bf16.msra.mxu0 %v3975
        %4066 = vmatpush.bf16.msra.mxu0 %v3973
        %4067 = vmatpush.bf16.msra.mxu0 %v3971
        %4068 = vmatmul.bf16.gmra.mxu0 %v3840
        %v4069 = vpop.f32.mrf.mxu0
        %v4070 = vadd.f32 0.0, %v4069
        %v4071 = vpop.f32.mrf.mxu0
        %4072 = vdwg.mxu0
        %4073 = vmatpush.bf16.msra.mxu0 %v4001
        %4074 = vmatpush.bf16.msra.mxu0 %v3999
        %4075 = vmatpush.bf16.msra.mxu0 %v3997
        %4076 = vmatpush.bf16.msra.mxu0 %v3995
        %4077 = vmatpush.bf16.msra.mxu0 %v3993
        %4078 = vmatpush.bf16.msra.mxu0 %v3991
        %4079 = vmatpush.bf16.msra.mxu0 %v3989
        %4080 = vmatpush.bf16.msra.mxu0 %v3987
        %4081 = vmatmul.bf16.gmra.mxu0 %v3841
        %v4082 = vpop.f32.mrf.mxu0
        %v4083 = vadd.f32 %v4070, %v4082
        %v4084 = vpop.f32.mrf.mxu0
        %4085 = vdwg.mxu0
        %v4086 = vld [vmem:[%s13] sm:$0xff]
        %v4087 = vld [vmem:[%s13 + $0x8] sm:$0xff]
        %s4088 = scalar_lea.vmem [#allocation12], 256
        %v4089 = vld [vmem:[%s4088] sm:$0xff]
        %v4090 = vld [vmem:[%s4088 + $0x8] sm:$0xff]
        %v4091 = vld [vmem:[%s4088 + $0x10] sm:$0xff]
        %v4092 = vld [vmem:[%s4088 + $0x18] sm:$0xff]
        %v4093 = vld [vmem:[%s4088 + $0x20] sm:$0xff]
        %v4094 = vld [vmem:[%s4088 + $0x28] sm:$0xff]
        %v4095 = vld [vmem:[%s4088 + $0x30] sm:$0xff]
        %v4096 = vld [vmem:[%s4088 + $0x38] sm:$0xff]
        %v4097 = vld [vmem:[%s4088 + $0x40] sm:$0xff]
        %v4098 = vld [vmem:[%s4088 + $0x48] sm:$0xff]
        %v4099 = vld [vmem:[%s4088 + $0x50] sm:$0xff]
        %v4100 = vld [vmem:[%s4088 + $0x58] sm:$0xff]
        %v4101 = vld [vmem:[%s4088 + $0x60] sm:$0xff]
        %v4102 = vld [vmem:[%s4088 + $0x68] sm:$0xff]
        %v4103 = vld [vmem:[%s4088 + $0x70] sm:$0xff]
        %v4104 = vld [vmem:[%s4088 + $0x78] sm:$0xff]
        %v4105 = vld [vmem:[%s4088 + $0x80] sm:$0xff]
        %v4106 = vld [vmem:[%s4088 + $0x88] sm:$0xff]
        %v4107 = vld [vmem:[%s4088 + $0x90] sm:$0xff]
        %v4108 = vld [vmem:[%s4088 + $0x98] sm:$0xff]
        %v4109 = vld [vmem:[%s4088 + $0xa0] sm:$0xff]
        %v4110 = vld [vmem:[%s4088 + $0xa8] sm:$0xff]
        %v4111 = vld [vmem:[%s4088 + $0xb0] sm:$0xff]
        %v4112 = vld [vmem:[%s4088 + $0xb8] sm:$0xff]
        %v4113 = vld [vmem:[%s4088 + $0xc0] sm:$0xff]
        %v4114 = vld [vmem:[%s4088 + $0xc8] sm:$0xff]
        %v4115 = vld [vmem:[%s4088 + $0xd0] sm:$0xff]
        %v4116 = vld [vmem:[%s4088 + $0xd8] sm:$0xff]
        %v4117 = vld [vmem:[%s4088 + $0xe0] sm:$0xff]
        %v4118 = vld [vmem:[%s4088 + $0xe8] sm:$0xff]
        %v4119 = vld [vmem:[%s4088 + $0xf0] sm:$0xff]
        %v4120 = vld [vmem:[%s4088 + $0xf8] sm:$0xff]
        %v4153 = vunpack.c.l.b16 %v4089
        %v4154 = vunpack.c.h.b16 %v4089
        %v4155 = vunpack.c.l.b16 %v4090
        %v4156 = vunpack.c.h.b16 %v4090
        %v4157 = vunpack.c.l.b16 %v4091
        %v4158 = vunpack.c.h.b16 %v4091
        %v4159 = vunpack.c.l.b16 %v4092
        %v4160 = vunpack.c.h.b16 %v4092
        %v4161 = vunpack.c.l.b16 %v4093
        %v4162 = vunpack.c.h.b16 %v4093
        %v4163 = vunpack.c.l.b16 %v4094
        %v4164 = vunpack.c.h.b16 %v4094
        %v4165 = vunpack.c.l.b16 %v4095
        %v4166 = vunpack.c.h.b16 %v4095
        %v4167 = vunpack.c.l.b16 %v4096
        %v4168 = vunpack.c.h.b16 %v4096
        %v4169 = vunpack.c.l.b16 %v4097
        %v4170 = vunpack.c.h.b16 %v4097
        %v4171 = vunpack.c.l.b16 %v4098
        %v4172 = vunpack.c.h.b16 %v4098
        %v4173 = vunpack.c.l.b16 %v4099
        %v4174 = vunpack.c.h.b16 %v4099
        %v4175 = vunpack.c.l.b16 %v4100
        %v4176 = vunpack.c.h.b16 %v4100
        %v4177 = vunpack.c.l.b16 %v4101
        %v4178 = vunpack.c.h.b16 %v4101
        %v4179 = vunpack.c.l.b16 %v4102
        %v4180 = vunpack.c.h.b16 %v4102
        %v4181 = vunpack.c.l.b16 %v4103
        %v4182 = vunpack.c.h.b16 %v4103
        %v4183 = vunpack.c.l.b16 %v4104
        %v4184 = vunpack.c.h.b16 %v4104
        %v4185 = vunpack.c.l.b16 %v4105
        %v4186 = vunpack.c.h.b16 %v4105
        %v4187 = vunpack.c.l.b16 %v4106
        %v4188 = vunpack.c.h.b16 %v4106
        %v4189 = vunpack.c.l.b16 %v4107
        %v4190 = vunpack.c.h.b16 %v4107
        %v4191 = vunpack.c.l.b16 %v4108
        %v4192 = vunpack.c.h.b16 %v4108
        %v4193 = vunpack.c.l.b16 %v4109
        %v4194 = vunpack.c.h.b16 %v4109
        %v4195 = vunpack.c.l.b16 %v4110
        %v4196 = vunpack.c.h.b16 %v4110
        %v4197 = vunpack.c.l.b16 %v4111
        %v4198 = vunpack.c.h.b16 %v4111
        %v4199 = vunpack.c.l.b16 %v4112
        %v4200 = vunpack.c.h.b16 %v4112
        %v4201 = vunpack.c.l.b16 %v4113
        %v4202 = vunpack.c.h.b16 %v4113
        %v4203 = vunpack.c.l.b16 %v4114
        %v4204 = vunpack.c.h.b16 %v4114
        %v4205 = vunpack.c.l.b16 %v4115
        %v4206 = vunpack.c.h.b16 %v4115
        %v4207 = vunpack.c.l.b16 %v4116
        %v4208 = vunpack.c.h.b16 %v4116
        %v4209 = vunpack.c.l.b16 %v4117
        %v4210 = vunpack.c.h.b16 %v4117
        %v4211 = vunpack.c.l.b16 %v4118
        %v4212 = vunpack.c.h.b16 %v4118
        %v4213 = vunpack.c.l.b16 %v4119
        %v4214 = vunpack.c.h.b16 %v4119
        %v4215 = vunpack.c.l.b16 %v4120
        %v4216 = vunpack.c.h.b16 %v4120
        %v4217 = vpack.c.b16 %v4155, %v4153
        %v4218 = vpack.c.b16 %v4156, %v4154
        %v4219 = vpack.c.b16 %v4159, %v4157
        %v4220 = vpack.c.b16 %v4160, %v4158
        %v4221 = vpack.c.b16 %v4163, %v4161
        %v4222 = vpack.c.b16 %v4164, %v4162
        %v4223 = vpack.c.b16 %v4167, %v4165
        %v4224 = vpack.c.b16 %v4168, %v4166
        %v4225 = vpack.c.b16 %v4171, %v4169
        %v4226 = vpack.c.b16 %v4172, %v4170
        %v4227 = vpack.c.b16 %v4175, %v4173
        %v4228 = vpack.c.b16 %v4176, %v4174
        %v4229 = vpack.c.b16 %v4179, %v4177
        %v4230 = vpack.c.b16 %v4180, %v4178
        %v4231 = vpack.c.b16 %v4183, %v4181
        %v4232 = vpack.c.b16 %v4184, %v4182
        %v4233 = vpack.c.b16 %v4187, %v4185
        %v4234 = vpack.c.b16 %v4188, %v4186
        %v4235 = vpack.c.b16 %v4191, %v4189
        %v4236 = vpack.c.b16 %v4192, %v4190
        %v4237 = vpack.c.b16 %v4195, %v4193
        %v4238 = vpack.c.b16 %v4196, %v4194
        %v4239 = vpack.c.b16 %v4199, %v4197
        %v4240 = vpack.c.b16 %v4200, %v4198
        %v4241 = vpack.c.b16 %v4203, %v4201
        %v4242 = vpack.c.b16 %v4204, %v4202
        %v4243 = vpack.c.b16 %v4207, %v4205
        %v4244 = vpack.c.b16 %v4208, %v4206
        %v4245 = vpack.c.b16 %v4211, %v4209
        %v4246 = vpack.c.b16 %v4212, %v4210
        %v4247 = vpack.c.b16 %v4215, %v4213
        %v4248 = vpack.c.b16 %v4216, %v4214
        %4281 = vmatpush.bf16.msra.mxu0 %v4231
        %4282 = vmatpush.bf16.msra.mxu0 %v4229
        %4283 = vmatpush.bf16.msra.mxu0 %v4227
        %4284 = vmatpush.bf16.msra.mxu0 %v4225
        %4285 = vmatpush.bf16.msra.mxu0 %v4223
        %4286 = vmatpush.bf16.msra.mxu0 %v4221
        %4287 = vmatpush.bf16.msra.mxu0 %v4219
        %4288 = vmatpush.bf16.msra.mxu0 %v4217
        %4289 = vmatmul.bf16.gmra.mxu0 %v3840
        %v4290 = vpop.f32.mrf.mxu0
        %v4291 = vadd.f32 0.0, %v4290
        %v4292 = vpop.f32.mrf.mxu0
        %4293 = vdwg.mxu0
        %4294 = vmatpush.bf16.msra.mxu0 %v4247
        %4295 = vmatpush.bf16.msra.mxu0 %v4245
        %4296 = vmatpush.bf16.msra.mxu0 %v4243
        %4297 = vmatpush.bf16.msra.mxu0 %v4241
        %4298 = vmatpush.bf16.msra.mxu0 %v4239
        %4299 = vmatpush.bf16.msra.mxu0 %v4237
        %4300 = vmatpush.bf16.msra.mxu0 %v4235
        %4301 = vmatpush.bf16.msra.mxu0 %v4233
        %4302 = vmatmul.bf16.gmra.mxu0 %v3841
        %v4303 = vpop.f32.mrf.mxu0
        %v4304 = vadd.f32 %v4291, %v4303
        %v4305 = vpop.f32.mrf.mxu0
        %4306 = vdwg.mxu0
        %4307 = vmatpush.bf16.msra.mxu0 %v4232
        %4308 = vmatpush.bf16.msra.mxu0 %v4230
        %4309 = vmatpush.bf16.msra.mxu0 %v4228
        %4310 = vmatpush.bf16.msra.mxu0 %v4226
        %4311 = vmatpush.bf16.msra.mxu0 %v4224
        %4312 = vmatpush.bf16.msra.mxu0 %v4222
        %4313 = vmatpush.bf16.msra.mxu0 %v4220
        %4314 = vmatpush.bf16.msra.mxu0 %v4218
        %4315 = vmatmul.bf16.gmra.mxu0 %v3840
        %v4316 = vpop.f32.mrf.mxu0
        %v4317 = vadd.f32 0.0, %v4316
        %v4318 = vpop.f32.mrf.mxu0
        %4319 = vdwg.mxu0
        %4320 = vmatpush.bf16.msra.mxu0 %v4248
        %4321 = vmatpush.bf16.msra.mxu0 %v4246
        %4322 = vmatpush.bf16.msra.mxu0 %v4244
        %4323 = vmatpush.bf16.msra.mxu0 %v4242
        %4324 = vmatpush.bf16.msra.mxu0 %v4240
        %4325 = vmatpush.bf16.msra.mxu0 %v4238
        %4326 = vmatpush.bf16.msra.mxu0 %v4236
        %4327 = vmatpush.bf16.msra.mxu0 %v4234
        %4328 = vmatmul.bf16.gmra.mxu0 %v3841
        %v4329 = vpop.f32.mrf.mxu0
        %v4330 = vadd.f32 %v4317, %v4329
        %v4331 = vpop.f32.mrf.mxu0
        %4332 = vdwg.mxu0
        %s4333 = scalar_lea.vmem %s13, 16
        %v4334 = vld [vmem:[%s4333] sm:$0xff]
        %v4335 = vld [vmem:[%s4333 + $0x8] sm:$0xff]
        %v4337 = vsel %vm2052, %v4334, 0
        %v4340 = vsel %vm2052, %v4335, 0
        %4342 = vmatpush.msra.mxu0 0.0
        %4343 = vmatpush.msra.mxu0 0.0
        %4344 = vmatpush.msra.mxu0 0.0
        %4345 = vmatpush.msra.mxu0 0.0
        %4346 = vmatpush.msra.mxu0 0.0
        %4347 = vmatpush.msra.mxu0 0.0
        %4348 = vmatpush.msra.mxu0 0.0
        %4349 = vmatpush.msra.mxu0 0.0
        %4350 = vmatpush.msra.mxu0 0.0
        %4351 = vmatpush.msra.mxu0 0.0
        %4352 = vmatpush.msra.mxu0 0.0
        %4353 = vmatpush.msra.mxu0 0.0
        %4354 = vmatpush.msra.mxu0 0.0
        %4355 = vmatpush.msra.mxu0 0.0
        %4356 = vmatpush.msra.mxu0 0.0
        %4357 = vmatpush.msra.mxu0 %v4304
        %4358 = vmatmul.f32.gmra.mxu0 %v4337
        %v4359 = vpop.f32.mrf.mxu0
        %v4360 = vadd.f32 0.0, %v4359
        %4361 = vmatmul.f32.gmra.mxu0 %v4340
        %v4362 = vpop.f32.mrf.mxu0
        %v4363 = vadd.f32 0.0, %v4362
        %4364 = vdwg.mxu0
        %4365 = vmatpush.msra.mxu0 0.0
        %4366 = vmatpush.msra.mxu0 0.0
        %4367 = vmatpush.msra.mxu0 0.0
        %4368 = vmatpush.msra.mxu0 0.0
        %4369 = vmatpush.msra.mxu0 0.0
        %4370 = vmatpush.msra.mxu0 0.0
        %4371 = vmatpush.msra.mxu0 0.0
        %4372 = vmatpush.msra.mxu0 0.0
        %4373 = vmatpush.msra.mxu0 0.0
        %4374 = vmatpush.msra.mxu0 0.0
        %4375 = vmatpush.msra.mxu0 0.0
        %4376 = vmatpush.msra.mxu0 0.0
        %4377 = vmatpush.msra.mxu0 0.0
        %4378 = vmatpush.msra.mxu0 0.0
        %4379 = vmatpush.msra.mxu0 0.0
        %4380 = vmatpush.msra.mxu0 %v4330
        %4381 = vmatmul.f32.gmra.mxu0 %v4337
        %v4382 = vpop.f32.mrf.mxu0
        %v4383 = vadd.f32 0.0, %v4382
        %4384 = vmatmul.f32.gmra.mxu0 %v4340
        %v4385 = vpop.f32.mrf.mxu0
        %v4386 = vadd.f32 0.0, %v4385
        %4387 = vdwg.mxu0
        %v4389 = vsel %vm2052, %v4086, 0
        %v4392 = vsel %vm2052, %v4087, 0
        %4394 = vmatpush.msra.mxu0 0.0
        %4395 = vmatpush.msra.mxu0 0.0
        %4396 = vmatpush.msra.mxu0 0.0
        %4397 = vmatpush.msra.mxu0 0.0
        %4398 = vmatpush.msra.mxu0 0.0
        %4399 = vmatpush.msra.mxu0 0.0
        %4400 = vmatpush.msra.mxu0 0.0
        %4401 = vmatpush.msra.mxu0 0.0
        %4402 = vmatpush.msra.mxu0 0.0
        %4403 = vmatpush.msra.mxu0 0.0
        %4404 = vmatpush.msra.mxu0 0.0
        %4405 = vmatpush.msra.mxu0 0.0
        %4406 = vmatpush.msra.mxu0 0.0
        %4407 = vmatpush.msra.mxu0 0.0
        %4408 = vmatpush.msra.mxu0 0.0
        %4409 = vmatpush.msra.mxu0 %v4057
        %4410 = vmatmul.f32.gmra.mxu0 %v4389
        %v4411 = vpop.f32.mrf.mxu0
        %v4412 = vadd.f32 %v4360, %v4411
        %4413 = vmatmul.f32.gmra.mxu0 %v4392
        %v4414 = vpop.f32.mrf.mxu0
        %v4415 = vadd.f32 %v4363, %v4414
        %4416 = vdwg.mxu0
        %4417 = vmatpush.msra.mxu0 0.0
        %4418 = vmatpush.msra.mxu0 0.0
        %4419 = vmatpush.msra.mxu0 0.0
        %4420 = vmatpush.msra.mxu0 0.0
        %4421 = vmatpush.msra.mxu0 0.0
        %4422 = vmatpush.msra.mxu0 0.0
        %4423 = vmatpush.msra.mxu0 0.0
        %4424 = vmatpush.msra.mxu0 0.0
        %4425 = vmatpush.msra.mxu0 0.0
        %4426 = vmatpush.msra.mxu0 0.0
        %4427 = vmatpush.msra.mxu0 0.0
        %4428 = vmatpush.msra.mxu0 0.0
        %4429 = vmatpush.msra.mxu0 0.0
        %4430 = vmatpush.msra.mxu0 0.0
        %4431 = vmatpush.msra.mxu0 0.0
        %4432 = vmatpush.msra.mxu0 %v4083
        %4433 = vmatmul.f32.gmra.mxu0 %v4389
        %v4434 = vpop.f32.mrf.mxu0
        %v4435 = vadd.f32 %v4383, %v4434
        %4436 = vmatmul.f32.gmra.mxu0 %v4392
        %v4437 = vpop.f32.mrf.mxu0
        %v4438 = vadd.f32 %v4386, %v4437
        %4439 = vdwg.mxu0
        %s4440 = scalar_lea.vmem [#allocation12], 512
        %v4441 = vld [vmem:[%s4440] sm:$0xff]
        %v4442 = vld [vmem:[%s4440 + $0x8] sm:$0xff]
        %v4443 = vld [vmem:[%s4440 + $0x10] sm:$0xff]
        %v4444 = vld [vmem:[%s4440 + $0x18] sm:$0xff]
        %v4445 = vld [vmem:[%s4440 + $0x20] sm:$0xff]
        %v4446 = vld [vmem:[%s4440 + $0x28] sm:$0xff]
        %v4447 = vld [vmem:[%s4440 + $0x30] sm:$0xff]
        %v4448 = vld [vmem:[%s4440 + $0x38] sm:$0xff]
        %v4449 = vld [vmem:[%s4440 + $0x40] sm:$0xff]
        %v4450 = vld [vmem:[%s4440 + $0x48] sm:$0xff]
        %v4451 = vld [vmem:[%s4440 + $0x50] sm:$0xff]
        %v4452 = vld [vmem:[%s4440 + $0x58] sm:$0xff]
        %v4453 = vld [vmem:[%s4440 + $0x60] sm:$0xff]
        %v4454 = vld [vmem:[%s4440 + $0x68] sm:$0xff]
        %v4455 = vld [vmem:[%s4440 + $0x70] sm:$0xff]
        %v4456 = vld [vmem:[%s4440 + $0x78] sm:$0xff]
        %v4457 = vld [vmem:[%s4440 + $0x80] sm:$0xff]
        %v4458 = vld [vmem:[%s4440 + $0x88] sm:$0xff]
        %v4459 = vld [vmem:[%s4440 + $0x90] sm:$0xff]
        %v4460 = vld [vmem:[%s4440 + $0x98] sm:$0xff]
        %v4461 = vld [vmem:[%s4440 + $0xa0] sm:$0xff]
        %v4462 = vld [vmem:[%s4440 + $0xa8] sm:$0xff]
        %v4463 = vld [vmem:[%s4440 + $0xb0] sm:$0xff]
        %v4464 = vld [vmem:[%s4440 + $0xb8] sm:$0xff]
        %v4465 = vld [vmem:[%s4440 + $0xc0] sm:$0xff]
        %v4466 = vld [vmem:[%s4440 + $0xc8] sm:$0xff]
        %v4467 = vld [vmem:[%s4440 + $0xd0] sm:$0xff]
        %v4468 = vld [vmem:[%s4440 + $0xd8] sm:$0xff]
        %v4469 = vld [vmem:[%s4440 + $0xe0] sm:$0xff]
        %v4470 = vld [vmem:[%s4440 + $0xe8] sm:$0xff]
        %v4471 = vld [vmem:[%s4440 + $0xf0] sm:$0xff]
        %v4472 = vld [vmem:[%s4440 + $0xf8] sm:$0xff]
        %v4505 = vunpack.c.l.b16 %v4441
        %v4506 = vunpack.c.h.b16 %v4441
        %v4507 = vunpack.c.l.b16 %v4442
        %v4508 = vunpack.c.h.b16 %v4442
        %v4509 = vunpack.c.l.b16 %v4443
        %v4510 = vunpack.c.h.b16 %v4443
        %v4511 = vunpack.c.l.b16 %v4444
        %v4512 = vunpack.c.h.b16 %v4444
        %v4513 = vunpack.c.l.b16 %v4445
        %v4514 = vunpack.c.h.b16 %v4445
        %v4515 = vunpack.c.l.b16 %v4446
        %v4516 = vunpack.c.h.b16 %v4446
        %v4517 = vunpack.c.l.b16 %v4447
        %v4518 = vunpack.c.h.b16 %v4447
        %v4519 = vunpack.c.l.b16 %v4448
        %v4520 = vunpack.c.h.b16 %v4448
        %v4521 = vunpack.c.l.b16 %v4449
        %v4522 = vunpack.c.h.b16 %v4449
        %v4523 = vunpack.c.l.b16 %v4450
        %v4524 = vunpack.c.h.b16 %v4450
        %v4525 = vunpack.c.l.b16 %v4451
        %v4526 = vunpack.c.h.b16 %v4451
        %v4527 = vunpack.c.l.b16 %v4452
        %v4528 = vunpack.c.h.b16 %v4452
        %v4529 = vunpack.c.l.b16 %v4453
        %v4530 = vunpack.c.h.b16 %v4453
        %v4531 = vunpack.c.l.b16 %v4454
        %v4532 = vunpack.c.h.b16 %v4454
        %v4533 = vunpack.c.l.b16 %v4455
        %v4534 = vunpack.c.h.b16 %v4455
        %v4535 = vunpack.c.l.b16 %v4456
        %v4536 = vunpack.c.h.b16 %v4456
        %v4537 = vunpack.c.l.b16 %v4457
        %v4538 = vunpack.c.h.b16 %v4457
        %v4539 = vunpack.c.l.b16 %v4458
        %v4540 = vunpack.c.h.b16 %v4458
        %v4541 = vunpack.c.l.b16 %v4459
        %v4542 = vunpack.c.h.b16 %v4459
        %v4543 = vunpack.c.l.b16 %v4460
        %v4544 = vunpack.c.h.b16 %v4460
        %v4545 = vunpack.c.l.b16 %v4461
        %v4546 = vunpack.c.h.b16 %v4461
        %v4547 = vunpack.c.l.b16 %v4462
        %v4548 = vunpack.c.h.b16 %v4462
        %v4549 = vunpack.c.l.b16 %v4463
        %v4550 = vunpack.c.h.b16 %v4463
        %v4551 = vunpack.c.l.b16 %v4464
        %v4552 = vunpack.c.h.b16 %v4464
        %v4553 = vunpack.c.l.b16 %v4465
        %v4554 = vunpack.c.h.b16 %v4465
        %v4555 = vunpack.c.l.b16 %v4466
        %v4556 = vunpack.c.h.b16 %v4466
        %v4557 = vunpack.c.l.b16 %v4467
        %v4558 = vunpack.c.h.b16 %v4467
        %v4559 = vunpack.c.l.b16 %v4468
        %v4560 = vunpack.c.h.b16 %v4468
        %v4561 = vunpack.c.l.b16 %v4469
        %v4562 = vunpack.c.h.b16 %v4469
        %v4563 = vunpack.c.l.b16 %v4470
        %v4564 = vunpack.c.h.b16 %v4470
        %v4565 = vunpack.c.l.b16 %v4471
        %v4566 = vunpack.c.h.b16 %v4471
        %v4567 = vunpack.c.l.b16 %v4472
        %v4568 = vunpack.c.h.b16 %v4472
        %v4569 = vpack.c.b16 %v4507, %v4505
        %v4570 = vpack.c.b16 %v4508, %v4506
        %v4571 = vpack.c.b16 %v4511, %v4509
        %v4572 = vpack.c.b16 %v4512, %v4510
        %v4573 = vpack.c.b16 %v4515, %v4513
        %v4574 = vpack.c.b16 %v4516, %v4514
        %v4575 = vpack.c.b16 %v4519, %v4517
        %v4576 = vpack.c.b16 %v4520, %v4518
        %v4577 = vpack.c.b16 %v4523, %v4521
        %v4578 = vpack.c.b16 %v4524, %v4522
        %v4579 = vpack.c.b16 %v4527, %v4525
        %v4580 = vpack.c.b16 %v4528, %v4526
        %v4581 = vpack.c.b16 %v4531, %v4529
        %v4582 = vpack.c.b16 %v4532, %v4530
        %v4583 = vpack.c.b16 %v4535, %v4533
        %v4584 = vpack.c.b16 %v4536, %v4534
        %v4585 = vpack.c.b16 %v4539, %v4537
        %v4586 = vpack.c.b16 %v4540, %v4538
        %v4587 = vpack.c.b16 %v4543, %v4541
        %v4588 = vpack.c.b16 %v4544, %v4542
        %v4589 = vpack.c.b16 %v4547, %v4545
        %v4590 = vpack.c.b16 %v4548, %v4546
        %v4591 = vpack.c.b16 %v4551, %v4549
        %v4592 = vpack.c.b16 %v4552, %v4550
        %v4593 = vpack.c.b16 %v4555, %v4553
        %v4594 = vpack.c.b16 %v4556, %v4554
        %v4595 = vpack.c.b16 %v4559, %v4557
        %v4596 = vpack.c.b16 %v4560, %v4558
        %v4597 = vpack.c.b16 %v4563, %v4561
        %v4598 = vpack.c.b16 %v4564, %v4562
        %v4599 = vpack.c.b16 %v4567, %v4565
        %v4600 = vpack.c.b16 %v4568, %v4566
        %4633 = vmatpush.bf16.msra.mxu0 %v4583
        %4634 = vmatpush.bf16.msra.mxu0 %v4581
        %4635 = vmatpush.bf16.msra.mxu0 %v4579
        %4636 = vmatpush.bf16.msra.mxu0 %v4577
        %4637 = vmatpush.bf16.msra.mxu0 %v4575
        %4638 = vmatpush.bf16.msra.mxu0 %v4573
        %4639 = vmatpush.bf16.msra.mxu0 %v4571
        %4640 = vmatpush.bf16.msra.mxu0 %v4569
        %4641 = vmatmul.bf16.gmra.mxu0 %v3840
        %v4642 = vpop.f32.mrf.mxu0
        %v4643 = vadd.f32 0.0, %v4642
        %v4644 = vpop.f32.mrf.mxu0
        %4645 = vdwg.mxu0
        %4646 = vmatpush.bf16.msra.mxu0 %v4599
        %4647 = vmatpush.bf16.msra.mxu0 %v4597
        %4648 = vmatpush.bf16.msra.mxu0 %v4595
        %4649 = vmatpush.bf16.msra.mxu0 %v4593
        %4650 = vmatpush.bf16.msra.mxu0 %v4591
        %4651 = vmatpush.bf16.msra.mxu0 %v4589
        %4652 = vmatpush.bf16.msra.mxu0 %v4587
        %4653 = vmatpush.bf16.msra.mxu0 %v4585
        %4654 = vmatmul.bf16.gmra.mxu0 %v3841
        %v4655 = vpop.f32.mrf.mxu0
        %v4656 = vadd.f32 %v4643, %v4655
        %v4657 = vpop.f32.mrf.mxu0
        %4658 = vdwg.mxu0
        %4659 = vmatpush.bf16.msra.mxu0 %v4584
        %4660 = vmatpush.bf16.msra.mxu0 %v4582
        %4661 = vmatpush.bf16.msra.mxu0 %v4580
        %4662 = vmatpush.bf16.msra.mxu0 %v4578
        %4663 = vmatpush.bf16.msra.mxu0 %v4576
        %4664 = vmatpush.bf16.msra.mxu0 %v4574
        %4665 = vmatpush.bf16.msra.mxu0 %v4572
        %4666 = vmatpush.bf16.msra.mxu0 %v4570
        %4667 = vmatmul.bf16.gmra.mxu0 %v3840
        %v4668 = vpop.f32.mrf.mxu0
        %v4669 = vadd.f32 0.0, %v4668
        %v4670 = vpop.f32.mrf.mxu0
        %4671 = vdwg.mxu0
        %4672 = vmatpush.bf16.msra.mxu0 %v4600
        %4673 = vmatpush.bf16.msra.mxu0 %v4598
        %4674 = vmatpush.bf16.msra.mxu0 %v4596
        %4675 = vmatpush.bf16.msra.mxu0 %v4594
        %4676 = vmatpush.bf16.msra.mxu0 %v4592
        %4677 = vmatpush.bf16.msra.mxu0 %v4590
        %4678 = vmatpush.bf16.msra.mxu0 %v4588
        %4679 = vmatpush.bf16.msra.mxu0 %v4586
        %4680 = vmatmul.bf16.gmra.mxu0 %v3841
        %v4681 = vpop.f32.mrf.mxu0
        %v4682 = vadd.f32 %v4669, %v4681
        %v4683 = vpop.f32.mrf.mxu0
        %4684 = vdwg.mxu0
        %s4685 = scalar_lea.vmem %s13, 32
        %v4686 = vld [vmem:[%s4685] sm:$0xff]
        %v4687 = vld [vmem:[%s4685 + $0x8] sm:$0xff]
        %v4689 = vsel %vm2052, %v4686, 0
        %v4692 = vsel %vm2052, %v4687, 0
        %4694 = vmatpush.msra.mxu0 0.0
        %4695 = vmatpush.msra.mxu0 0.0
        %4696 = vmatpush.msra.mxu0 0.0
        %4697 = vmatpush.msra.mxu0 0.0
        %4698 = vmatpush.msra.mxu0 0.0
        %4699 = vmatpush.msra.mxu0 0.0
        %4700 = vmatpush.msra.mxu0 0.0
        %4701 = vmatpush.msra.mxu0 0.0
        %4702 = vmatpush.msra.mxu0 0.0
        %4703 = vmatpush.msra.mxu0 0.0
        %4704 = vmatpush.msra.mxu0 0.0
        %4705 = vmatpush.msra.mxu0 0.0
        %4706 = vmatpush.msra.mxu0 0.0
        %4707 = vmatpush.msra.mxu0 0.0
        %4708 = vmatpush.msra.mxu0 0.0
        %4709 = vmatpush.msra.mxu0 %v4656
        %4710 = vmatmul.f32.gmra.mxu0 %v4689
        %v4711 = vpop.f32.mrf.mxu0
        %v4712 = vadd.f32 0.0, %v4711
        %4713 = vmatmul.f32.gmra.mxu0 %v4692
        %v4714 = vpop.f32.mrf.mxu0
        %v4715 = vadd.f32 0.0, %v4714
        %4716 = vdwg.mxu0
        %4717 = vmatpush.msra.mxu0 0.0
        %4718 = vmatpush.msra.mxu0 0.0
        %4719 = vmatpush.msra.mxu0 0.0
        %4720 = vmatpush.msra.mxu0 0.0
        %4721 = vmatpush.msra.mxu0 0.0
        %4722 = vmatpush.msra.mxu0 0.0
        %4723 = vmatpush.msra.mxu0 0.0
        %4724 = vmatpush.msra.mxu0 0.0
        %4725 = vmatpush.msra.mxu0 0.0
        %4726 = vmatpush.msra.mxu0 0.0
        %4727 = vmatpush.msra.mxu0 0.0
        %4728 = vmatpush.msra.mxu0 0.0
        %4729 = vmatpush.msra.mxu0 0.0
        %4730 = vmatpush.msra.mxu0 0.0
        %4731 = vmatpush.msra.mxu0 0.0
        %4732 = vmatpush.msra.mxu0 %v4682
        %4733 = vmatmul.f32.gmra.mxu0 %v4689
        %v4734 = vpop.f32.mrf.mxu0
        %v4735 = vadd.f32 0.0, %v4734
        %4736 = vmatmul.f32.gmra.mxu0 %v4692
        %v4737 = vpop.f32.mrf.mxu0
        %v4738 = vadd.f32 0.0, %v4737
        %4739 = vdwg.mxu0
        %v4740 = vadd.f32 %v4412, %v4712
        %v4741 = vadd.f32 %v4435, %v4735
        %v4742 = vadd.f32 %v4415, %v4715
        %v4743 = vadd.f32 %v4438, %v4738
        %v4744 = vld [vmem:[#allocation13] sm:$0x3]
        %v4746 = vperm.slane %v4744, 0
        %v4747 = vperm.slane %v4744, 1
        %v4750 = vadd.f32 %v4740, %v4746
        %v4751 = vadd.f32 %v4741, %v4747
        %v4752 = vadd.f32 %v4742, %v4746
        %v4753 = vadd.f32 %v4743, %v4747
        %v4754 = vmax.f32 %v4750, 0.0
        %v4755 = vmax.f32 %v4751, 0.0
        %v4756 = vmax.f32 %v4752, 0.0
        %v4757 = vmax.f32 %v4753, 0.0
        %v4758 = vpack.c.bf16 %v4756, %v4754
        %v4759 = vpack.c.bf16 %v4757, %v4755
        %v4760 = vld [vmem:[%s17] sm:$0xf]
        %v4761 = vld [vmem:[%s17 + $0x4] sm:$0xf]
        %v4762 = vld [vmem:[%s17 + $0x8] sm:$0xf]
        %v4763 = vld [vmem:[%s17 + $0xc] sm:$0xf]
        %v4764 = vld [vmem:[%s17 + $0x10] sm:$0xf]
        %v4765 = vld [vmem:[%s17 + $0x14] sm:$0xf]
        %v4766 = vld [vmem:[%s17 + $0x18] sm:$0xf]
        %v4767 = vld [vmem:[%s17 + $0x1c] sm:$0xf]
        %v4768 = vld [vmem:[%s17 + $0x20] sm:$0xf]
        %v4769 = vld [vmem:[%s17 + $0x24] sm:$0xf]
        %v4770 = vld [vmem:[%s17 + $0x28] sm:$0xf]
        %v4771 = vld [vmem:[%s17 + $0x2c] sm:$0xf]
        %v4772 = vld [vmem:[%s17 + $0x30] sm:$0xf]
        %v4773 = vld [vmem:[%s17 + $0x34] sm:$0xf]
        %v4774 = vld [vmem:[%s17 + $0x38] sm:$0xf]
        %v4775 = vld [vmem:[%s17 + $0x3c] sm:$0xf]
        %v4776 = vld [vmem:[%s17 + $0x40] sm:$0xf]
        %v4777 = vld [vmem:[%s17 + $0x44] sm:$0xf]
        %v4778 = vld [vmem:[%s17 + $0x48] sm:$0xf]
        %v4779 = vld [vmem:[%s17 + $0x4c] sm:$0xf]
        %v4780 = vld [vmem:[%s17 + $0x50] sm:$0xf]
        %v4781 = vld [vmem:[%s17 + $0x54] sm:$0xf]
        %v4782 = vld [vmem:[%s17 + $0x58] sm:$0xf]
        %v4783 = vld [vmem:[%s17 + $0x5c] sm:$0xf]
        %v4784 = vld [vmem:[%s17 + $0x60] sm:$0xf]
        %v4785 = vld [vmem:[%s17 + $0x64] sm:$0xf]
        %v4786 = vld [vmem:[%s17 + $0x68] sm:$0xf]
        %v4787 = vld [vmem:[%s17 + $0x6c] sm:$0xf]
        %v4788 = vld [vmem:[%s17 + $0x70] sm:$0xf]
        %v4789 = vld [vmem:[%s17 + $0x74] sm:$0xf]
        %v4790 = vld [vmem:[%s17 + $0x78] sm:$0xf]
        %v4791 = vld [vmem:[%s17 + $0x7c] sm:$0xf]
        %v4824 = vunpack.c.l.b16 %v4760
        %v4825 = vunpack.c.l.b16 %v4761
        %v4826 = vunpack.c.l.b16 %v4762
        %v4827 = vunpack.c.l.b16 %v4763
        %v4828 = vunpack.c.l.b16 %v4764
        %v4829 = vunpack.c.l.b16 %v4765
        %v4830 = vunpack.c.l.b16 %v4766
        %v4831 = vunpack.c.l.b16 %v4767
        %v4832 = vunpack.c.l.b16 %v4768
        %v4833 = vunpack.c.l.b16 %v4769
        %v4834 = vunpack.c.l.b16 %v4770
        %v4835 = vunpack.c.l.b16 %v4771
        %v4836 = vunpack.c.l.b16 %v4772
        %v4837 = vunpack.c.l.b16 %v4773
        %v4838 = vunpack.c.l.b16 %v4774
        %v4839 = vunpack.c.l.b16 %v4775
        %v4840 = vunpack.c.l.b16 %v4776
        %v4841 = vunpack.c.l.b16 %v4777
        %v4842 = vunpack.c.l.b16 %v4778
        %v4843 = vunpack.c.l.b16 %v4779
        %v4844 = vunpack.c.l.b16 %v4780
        %v4845 = vunpack.c.l.b16 %v4781
        %v4846 = vunpack.c.l.b16 %v4782
        %v4847 = vunpack.c.l.b16 %v4783
        %v4848 = vunpack.c.l.b16 %v4784
        %v4849 = vunpack.c.l.b16 %v4785
        %v4850 = vunpack.c.l.b16 %v4786
        %v4851 = vunpack.c.l.b16 %v4787
        %v4852 = vunpack.c.l.b16 %v4788
        %v4853 = vunpack.c.l.b16 %v4789
        %v4854 = vunpack.c.l.b16 %v4790
        %v4855 = vunpack.c.l.b16 %v4791
        %v4856 = vpack.c.b16 %v4825, %v4824
        %v4857 = vpack.c.b16 %v4827, %v4826
        %v4858 = vpack.c.b16 %v4829, %v4828
        %v4859 = vpack.c.b16 %v4831, %v4830
        %v4860 = vpack.c.b16 %v4833, %v4832
        %v4861 = vpack.c.b16 %v4835, %v4834
        %v4862 = vpack.c.b16 %v4837, %v4836
        %v4863 = vpack.c.b16 %v4839, %v4838
        %v4864 = vpack.c.b16 %v4841, %v4840
        %v4865 = vpack.c.b16 %v4843, %v4842
        %v4866 = vpack.c.b16 %v4845, %v4844
        %v4867 = vpack.c.b16 %v4847, %v4846
        %v4868 = vpack.c.b16 %v4849, %v4848
        %v4869 = vpack.c.b16 %v4851, %v4850
        %v4870 = vpack.c.b16 %v4853, %v4852
        %v4871 = vpack.c.b16 %v4855, %v4854
        %4888 = vmatpush.bf16.msra.mxu0 %v4863
        %4889 = vmatpush.bf16.msra.mxu0 %v4862
        %4890 = vmatpush.bf16.msra.mxu0 %v4861
        %4891 = vmatpush.bf16.msra.mxu0 %v4860
        %4892 = vmatpush.bf16.msra.mxu0 %v4859
        %4893 = vmatpush.bf16.msra.mxu0 %v4858
        %4894 = vmatpush.bf16.msra.mxu0 %v4857
        %4895 = vmatpush.bf16.msra.mxu0 %v4856
        %4896 = vmatmul.bf16.gmra.mxu0 %v4758
        %v4897 = vpop.f32.mrf.mxu0
        %v4898 = vadd.f32 0.0, %v4897
        %v4899 = vpop.f32.mrf.mxu0
        %v4900 = vadd.f32 0.0, %v4899
        %4901 = vdwg.mxu0
        %4902 = vmatpush.bf16.msra.mxu0 %v4871
        %4903 = vmatpush.bf16.msra.mxu0 %v4870
        %4904 = vmatpush.bf16.msra.mxu0 %v4869
        %4905 = vmatpush.bf16.msra.mxu0 %v4868
        %4906 = vmatpush.bf16.msra.mxu0 %v4867
        %4907 = vmatpush.bf16.msra.mxu0 %v4866
        %4908 = vmatpush.bf16.msra.mxu0 %v4865
        %4909 = vmatpush.bf16.msra.mxu0 %v4864
        %4910 = vmatmul.bf16.gmra.mxu0 %v4759
        %v4911 = vpop.f32.mrf.mxu0
        %v4912 = vadd.f32 %v4898, %v4911
        %v4913 = vpop.f32.mrf.mxu0
        %v4914 = vadd.f32 %v4900, %v4913
        %4915 = vdwg.mxu0
        %v4916 = vld [vmem:[%s16] sm:$0xff]
        %v4917 = vld [vmem:[%s16 + $0x8] sm:$0xff]
        %v4918 = vld [vmem:[%s16 + $0x10] sm:$0xff]
        %v4919 = vld [vmem:[%s16 + $0x18] sm:$0xff]
        %s4920 = scalar_lea.vmem %s17, 128
        %v4921 = vld [vmem:[%s4920] sm:$0xf]
        %v4922 = vld [vmem:[%s4920 + $0x4] sm:$0xf]
        %v4923 = vld [vmem:[%s4920 + $0x8] sm:$0xf]
        %v4924 = vld [vmem:[%s4920 + $0xc] sm:$0xf]
        %v4925 = vld [vmem:[%s4920 + $0x10] sm:$0xf]
        %v4926 = vld [vmem:[%s4920 + $0x14] sm:$0xf]
        %v4927 = vld [vmem:[%s4920 + $0x18] sm:$0xf]
        %v4928 = vld [vmem:[%s4920 + $0x1c] sm:$0xf]
        %v4929 = vld [vmem:[%s4920 + $0x20] sm:$0xf]
        %v4930 = vld [vmem:[%s4920 + $0x24] sm:$0xf]
        %v4931 = vld [vmem:[%s4920 + $0x28] sm:$0xf]
        %v4932 = vld [vmem:[%s4920 + $0x2c] sm:$0xf]
        %v4933 = vld [vmem:[%s4920 + $0x30] sm:$0xf]
        %v4934 = vld [vmem:[%s4920 + $0x34] sm:$0xf]
        %v4935 = vld [vmem:[%s4920 + $0x38] sm:$0xf]
        %v4936 = vld [vmem:[%s4920 + $0x3c] sm:$0xf]
        %v4937 = vld [vmem:[%s4920 + $0x40] sm:$0xf]
        %v4938 = vld [vmem:[%s4920 + $0x44] sm:$0xf]
        %v4939 = vld [vmem:[%s4920 + $0x48] sm:$0xf]
        %v4940 = vld [vmem:[%s4920 + $0x4c] sm:$0xf]
        %v4941 = vld [vmem:[%s4920 + $0x50] sm:$0xf]
        %v4942 = vld [vmem:[%s4920 + $0x54] sm:$0xf]
        %v4943 = vld [vmem:[%s4920 + $0x58] sm:$0xf]
        %v4944 = vld [vmem:[%s4920 + $0x5c] sm:$0xf]
        %v4945 = vld [vmem:[%s4920 + $0x60] sm:$0xf]
        %v4946 = vld [vmem:[%s4920 + $0x64] sm:$0xf]
        %v4947 = vld [vmem:[%s4920 + $0x68] sm:$0xf]
        %v4948 = vld [vmem:[%s4920 + $0x6c] sm:$0xf]
        %v4949 = vld [vmem:[%s4920 + $0x70] sm:$0xf]
        %v4950 = vld [vmem:[%s4920 + $0x74] sm:$0xf]
        %v4951 = vld [vmem:[%s4920 + $0x78] sm:$0xf]
        %v4952 = vld [vmem:[%s4920 + $0x7c] sm:$0xf]
        %v4985 = vunpack.c.l.b16 %v4921
        %v4986 = vunpack.c.l.b16 %v4922
        %v4987 = vunpack.c.l.b16 %v4923
        %v4988 = vunpack.c.l.b16 %v4924
        %v4989 = vunpack.c.l.b16 %v4925
        %v4990 = vunpack.c.l.b16 %v4926
        %v4991 = vunpack.c.l.b16 %v4927
        %v4992 = vunpack.c.l.b16 %v4928
        %v4993 = vunpack.c.l.b16 %v4929
        %v4994 = vunpack.c.l.b16 %v4930
        %v4995 = vunpack.c.l.b16 %v4931
        %v4996 = vunpack.c.l.b16 %v4932
        %v4997 = vunpack.c.l.b16 %v4933
        %v4998 = vunpack.c.l.b16 %v4934
        %v4999 = vunpack.c.l.b16 %v4935
        %v5000 = vunpack.c.l.b16 %v4936
        %v5001 = vunpack.c.l.b16 %v4937
        %v5002 = vunpack.c.l.b16 %v4938
        %v5003 = vunpack.c.l.b16 %v4939
        %v5004 = vunpack.c.l.b16 %v4940
        %v5005 = vunpack.c.l.b16 %v4941
        %v5006 = vunpack.c.l.b16 %v4942
        %v5007 = vunpack.c.l.b16 %v4943
        %v5008 = vunpack.c.l.b16 %v4944
        %v5009 = vunpack.c.l.b16 %v4945
        %v5010 = vunpack.c.l.b16 %v4946
        %v5011 = vunpack.c.l.b16 %v4947
        %v5012 = vunpack.c.l.b16 %v4948
        %v5013 = vunpack.c.l.b16 %v4949
        %v5014 = vunpack.c.l.b16 %v4950
        %v5015 = vunpack.c.l.b16 %v4951
        %v5016 = vunpack.c.l.b16 %v4952
        %v5017 = vpack.c.b16 %v4986, %v4985
        %v5018 = vpack.c.b16 %v4988, %v4987
        %v5019 = vpack.c.b16 %v4990, %v4989
        %v5020 = vpack.c.b16 %v4992, %v4991
        %v5021 = vpack.c.b16 %v4994, %v4993
        %v5022 = vpack.c.b16 %v4996, %v4995
        %v5023 = vpack.c.b16 %v4998, %v4997
        %v5024 = vpack.c.b16 %v5000, %v4999
        %v5025 = vpack.c.b16 %v5002, %v5001
        %v5026 = vpack.c.b16 %v5004, %v5003
        %v5027 = vpack.c.b16 %v5006, %v5005
        %v5028 = vpack.c.b16 %v5008, %v5007
        %v5029 = vpack.c.b16 %v5010, %v5009
        %v5030 = vpack.c.b16 %v5012, %v5011
        %v5031 = vpack.c.b16 %v5014, %v5013
        %v5032 = vpack.c.b16 %v5016, %v5015
        %5049 = vmatpush.bf16.msra.mxu0 %v5024
        %5050 = vmatpush.bf16.msra.mxu0 %v5023
        %5051 = vmatpush.bf16.msra.mxu0 %v5022
        %5052 = vmatpush.bf16.msra.mxu0 %v5021
        %5053 = vmatpush.bf16.msra.mxu0 %v5020
        %5054 = vmatpush.bf16.msra.mxu0 %v5019
        %5055 = vmatpush.bf16.msra.mxu0 %v5018
        %5056 = vmatpush.bf16.msra.mxu0 %v5017
        %5057 = vmatmul.bf16.gmra.mxu0 %v4758
        %v5058 = vpop.f32.mrf.mxu0
        %v5059 = vadd.f32 0.0, %v5058
        %v5060 = vpop.f32.mrf.mxu0
        %v5061 = vadd.f32 0.0, %v5060
        %5062 = vdwg.mxu0
        %5063 = vmatpush.bf16.msra.mxu0 %v5032
        %5064 = vmatpush.bf16.msra.mxu0 %v5031
        %5065 = vmatpush.bf16.msra.mxu0 %v5030
        %5066 = vmatpush.bf16.msra.mxu0 %v5029
        %5067 = vmatpush.bf16.msra.mxu0 %v5028
        %5068 = vmatpush.bf16.msra.mxu0 %v5027
        %5069 = vmatpush.bf16.msra.mxu0 %v5026
        %5070 = vmatpush.bf16.msra.mxu0 %v5025
        %5071 = vmatmul.bf16.gmra.mxu0 %v4759
        %v5072 = vpop.f32.mrf.mxu0
        %v5073 = vadd.f32 %v5059, %v5072
        %v5074 = vpop.f32.mrf.mxu0
        %v5075 = vadd.f32 %v5061, %v5074
        %5076 = vdwg.mxu0
        %s5077 = scalar_lea.vmem %s16, 32
        %v5078 = vld [vmem:[%s5077] sm:$0xff]
        %v5079 = vld [vmem:[%s5077 + $0x8] sm:$0xff]
        %v5080 = vld [vmem:[%s5077 + $0x10] sm:$0xff]
        %v5081 = vld [vmem:[%s5077 + $0x18] sm:$0xff]
        %v5083 = vsel %vm1165, %v5078, 0
        %v5086 = vsel %vm1165, %v5079, 0
        %v5089 = vsel %vm1165, %v5080, 0
        %v5092 = vsel %vm1165, %v5081, 0
        %5094 = vmatpush.msra.mxu0 0.0
        %5095 = vmatpush.msra.mxu0 0.0
        %5096 = vmatpush.msra.mxu0 0.0
        %5097 = vmatpush.msra.mxu0 0.0
        %5098 = vmatpush.msra.mxu0 0.0
        %5099 = vmatpush.msra.mxu0 0.0
        %5100 = vmatpush.msra.mxu0 0.0
        %5101 = vmatpush.msra.mxu0 0.0
        %5102 = vmatpush.msra.mxu0 0.0
        %5103 = vmatpush.msra.mxu0 0.0
        %5104 = vmatpush.msra.mxu0 0.0
        %5105 = vmatpush.msra.mxu0 0.0
        %5106 = vmatpush.msra.mxu0 0.0
        %5107 = vmatpush.msra.mxu0 0.0
        %5108 = vmatpush.msra.mxu0 %v5075
        %5109 = vmatpush.msra.mxu0 %v5073
        %5110 = vmatmul.f32.gmra.mxu0 %v5083
        %v5111 = vpop.f32.mrf.mxu0
        %v5112 = vadd.f32 0.0, %v5111
        %5113 = vmatmul.f32.gmra.mxu0 %v5086
        %v5114 = vpop.f32.mrf.mxu0
        %v5115 = vadd.f32 0.0, %v5114
        %5116 = vmatmul.f32.gmra.mxu0 %v5089
        %v5117 = vpop.f32.mrf.mxu0
        %v5118 = vadd.f32 0.0, %v5117
        %5119 = vmatmul.f32.gmra.mxu0 %v5092
        %v5120 = vpop.f32.mrf.mxu0
        %v5121 = vadd.f32 0.0, %v5120
        %5122 = vdwg.mxu0
        %v5124 = vsel %vm1165, %v4916, 0
        %v5127 = vsel %vm1165, %v4917, 0
        %v5130 = vsel %vm1165, %v4918, 0
        %v5133 = vsel %vm1165, %v4919, 0
        %5135 = vmatpush.msra.mxu0 0.0
        %5136 = vmatpush.msra.mxu0 0.0
        %5137 = vmatpush.msra.mxu0 0.0
        %5138 = vmatpush.msra.mxu0 0.0
        %5139 = vmatpush.msra.mxu0 0.0
        %5140 = vmatpush.msra.mxu0 0.0
        %5141 = vmatpush.msra.mxu0 0.0
        %5142 = vmatpush.msra.mxu0 0.0
        %5143 = vmatpush.msra.mxu0 0.0
        %5144 = vmatpush.msra.mxu0 0.0
        %5145 = vmatpush.msra.mxu0 0.0
        %5146 = vmatpush.msra.mxu0 0.0
        %5147 = vmatpush.msra.mxu0 0.0
        %5148 = vmatpush.msra.mxu0 0.0
        %5149 = vmatpush.msra.mxu0 %v4914
        %5150 = vmatpush.msra.mxu0 %v4912
        %5151 = vmatmul.f32.gmra.mxu0 %v5124
        %v5152 = vpop.f32.mrf.mxu0
        %v5153 = vadd.f32 %v5112, %v5152
        %5154 = vmatmul.f32.gmra.mxu0 %v5127
        %v5155 = vpop.f32.mrf.mxu0
        %v5156 = vadd.f32 %v5115, %v5155
        %5157 = vmatmul.f32.gmra.mxu0 %v5130
        %v5158 = vpop.f32.mrf.mxu0
        %v5159 = vadd.f32 %v5118, %v5158
        %5160 = vmatmul.f32.gmra.mxu0 %v5133
        %v5161 = vpop.f32.mrf.mxu0
        %v5162 = vadd.f32 %v5121, %v5161
        %5163 = vdwg.mxu0
        %s5164 = scalar_lea.vmem %s17, 256
        %v5165 = vld [vmem:[%s5164] sm:$0xf]
        %v5166 = vld [vmem:[%s5164 + $0x4] sm:$0xf]
        %v5167 = vld [vmem:[%s5164 + $0x8] sm:$0xf]
        %v5168 = vld [vmem:[%s5164 + $0xc] sm:$0xf]
        %v5169 = vld [vmem:[%s5164 + $0x10] sm:$0xf]
        %v5170 = vld [vmem:[%s5164 + $0x14] sm:$0xf]
        %v5171 = vld [vmem:[%s5164 + $0x18] sm:$0xf]
        %v5172 = vld [vmem:[%s5164 + $0x1c] sm:$0xf]
        %v5173 = vld [vmem:[%s5164 + $0x20] sm:$0xf]
        %v5174 = vld [vmem:[%s5164 + $0x24] sm:$0xf]
        %v5175 = vld [vmem:[%s5164 + $0x28] sm:$0xf]
        %v5176 = vld [vmem:[%s5164 + $0x2c] sm:$0xf]
        %v5177 = vld [vmem:[%s5164 + $0x30] sm:$0xf]
        %v5178 = vld [vmem:[%s5164 + $0x34] sm:$0xf]
        %v5179 = vld [vmem:[%s5164 + $0x38] sm:$0xf]
        %v5180 = vld [vmem:[%s5164 + $0x3c] sm:$0xf]
        %v5181 = vld [vmem:[%s5164 + $0x40] sm:$0xf]
        %v5182 = vld [vmem:[%s5164 + $0x44] sm:$0xf]
        %v5183 = vld [vmem:[%s5164 + $0x48] sm:$0xf]
        %v5184 = vld [vmem:[%s5164 + $0x4c] sm:$0xf]
        %v5185 = vld [vmem:[%s5164 + $0x50] sm:$0xf]
        %v5186 = vld [vmem:[%s5164 + $0x54] sm:$0xf]
        %v5187 = vld [vmem:[%s5164 + $0x58] sm:$0xf]
        %v5188 = vld [vmem:[%s5164 + $0x5c] sm:$0xf]
        %v5189 = vld [vmem:[%s5164 + $0x60] sm:$0xf]
        %v5190 = vld [vmem:[%s5164 + $0x64] sm:$0xf]
        %v5191 = vld [vmem:[%s5164 + $0x68] sm:$0xf]
        %v5192 = vld [vmem:[%s5164 + $0x6c] sm:$0xf]
        %v5193 = vld [vmem:[%s5164 + $0x70] sm:$0xf]
        %v5194 = vld [vmem:[%s5164 + $0x74] sm:$0xf]
        %v5195 = vld [vmem:[%s5164 + $0x78] sm:$0xf]
        %v5196 = vld [vmem:[%s5164 + $0x7c] sm:$0xf]
        %v5229 = vunpack.c.l.b16 %v5165
        %v5230 = vunpack.c.l.b16 %v5166
        %v5231 = vunpack.c.l.b16 %v5167
        %v5232 = vunpack.c.l.b16 %v5168
        %v5233 = vunpack.c.l.b16 %v5169
        %v5234 = vunpack.c.l.b16 %v5170
        %v5235 = vunpack.c.l.b16 %v5171
        %v5236 = vunpack.c.l.b16 %v5172
        %v5237 = vunpack.c.l.b16 %v5173
        %v5238 = vunpack.c.l.b16 %v5174
        %v5239 = vunpack.c.l.b16 %v5175
        %v5240 = vunpack.c.l.b16 %v5176
        %v5241 = vunpack.c.l.b16 %v5177
        %v5242 = vunpack.c.l.b16 %v5178
        %v5243 = vunpack.c.l.b16 %v5179
        %v5244 = vunpack.c.l.b16 %v5180
        %v5245 = vunpack.c.l.b16 %v5181
        %v5246 = vunpack.c.l.b16 %v5182
        %v5247 = vunpack.c.l.b16 %v5183
        %v5248 = vunpack.c.l.b16 %v5184
        %v5249 = vunpack.c.l.b16 %v5185
        %v5250 = vunpack.c.l.b16 %v5186
        %v5251 = vunpack.c.l.b16 %v5187
        %v5252 = vunpack.c.l.b16 %v5188
        %v5253 = vunpack.c.l.b16 %v5189
        %v5254 = vunpack.c.l.b16 %v5190
        %v5255 = vunpack.c.l.b16 %v5191
        %v5256 = vunpack.c.l.b16 %v5192
        %v5257 = vunpack.c.l.b16 %v5193
        %v5258 = vunpack.c.l.b16 %v5194
        %v5259 = vunpack.c.l.b16 %v5195
        %v5260 = vunpack.c.l.b16 %v5196
        %v5261 = vpack.c.b16 %v5230, %v5229
        %v5262 = vpack.c.b16 %v5232, %v5231
        %v5263 = vpack.c.b16 %v5234, %v5233
        %v5264 = vpack.c.b16 %v5236, %v5235
        %v5265 = vpack.c.b16 %v5238, %v5237
        %v5266 = vpack.c.b16 %v5240, %v5239
        %v5267 = vpack.c.b16 %v5242, %v5241
        %v5268 = vpack.c.b16 %v5244, %v5243
        %v5269 = vpack.c.b16 %v5246, %v5245
        %v5270 = vpack.c.b16 %v5248, %v5247
        %v5271 = vpack.c.b16 %v5250, %v5249
        %v5272 = vpack.c.b16 %v5252, %v5251
        %v5273 = vpack.c.b16 %v5254, %v5253
        %v5274 = vpack.c.b16 %v5256, %v5255
        %v5275 = vpack.c.b16 %v5258, %v5257
        %v5276 = vpack.c.b16 %v5260, %v5259
        %5293 = vmatpush.bf16.msra.mxu0 %v5268
        %5294 = vmatpush.bf16.msra.mxu0 %v5267
        %5295 = vmatpush.bf16.msra.mxu0 %v5266
        %5296 = vmatpush.bf16.msra.mxu0 %v5265
        %5297 = vmatpush.bf16.msra.mxu0 %v5264
        %5298 = vmatpush.bf16.msra.mxu0 %v5263
        %5299 = vmatpush.bf16.msra.mxu0 %v5262
        %5300 = vmatpush.bf16.msra.mxu0 %v5261
        %5301 = vmatmul.bf16.gmra.mxu0 %v4758
        %v5302 = vpop.f32.mrf.mxu0
        %v5303 = vadd.f32 0.0, %v5302
        %v5304 = vpop.f32.mrf.mxu0
        %v5305 = vadd.f32 0.0, %v5304
        %5306 = vdwg.mxu0
        %5307 = vmatpush.bf16.msra.mxu0 %v5276
        %5308 = vmatpush.bf16.msra.mxu0 %v5275
        %5309 = vmatpush.bf16.msra.mxu0 %v5274
        %5310 = vmatpush.bf16.msra.mxu0 %v5273
        %5311 = vmatpush.bf16.msra.mxu0 %v5272
        %5312 = vmatpush.bf16.msra.mxu0 %v5271
        %5313 = vmatpush.bf16.msra.mxu0 %v5270
        %5314 = vmatpush.bf16.msra.mxu0 %v5269
        %5315 = vmatmul.bf16.gmra.mxu0 %v4759
        %v5316 = vpop.f32.mrf.mxu0
        %v5317 = vadd.f32 %v5303, %v5316
        %v5318 = vpop.f32.mrf.mxu0
        %v5319 = vadd.f32 %v5305, %v5318
        %5320 = vdwg.mxu0
        %s5321 = scalar_lea.vmem %s16, 64
        %v5322 = vld [vmem:[%s5321] sm:$0xff]
        %v5323 = vld [vmem:[%s5321 + $0x8] sm:$0xff]
        %v5324 = vld [vmem:[%s5321 + $0x10] sm:$0xff]
        %v5325 = vld [vmem:[%s5321 + $0x18] sm:$0xff]
        %v5327 = vsel %vm1165, %v5322, 0
        %v5330 = vsel %vm1165, %v5323, 0
        %v5333 = vsel %vm1165, %v5324, 0
        %v5336 = vsel %vm1165, %v5325, 0
        %5338 = vmatpush.msra.mxu0 0.0
        %5339 = vmatpush.msra.mxu0 0.0
        %5340 = vmatpush.msra.mxu0 0.0
        %5341 = vmatpush.msra.mxu0 0.0
        %5342 = vmatpush.msra.mxu0 0.0
        %5343 = vmatpush.msra.mxu0 0.0
        %5344 = vmatpush.msra.mxu0 0.0
        %5345 = vmatpush.msra.mxu0 0.0
        %5346 = vmatpush.msra.mxu0 0.0
        %5347 = vmatpush.msra.mxu0 0.0
        %5348 = vmatpush.msra.mxu0 0.0
        %5349 = vmatpush.msra.mxu0 0.0
        %5350 = vmatpush.msra.mxu0 0.0
        %5351 = vmatpush.msra.mxu0 0.0
        %5352 = vmatpush.msra.mxu0 %v5319
        %5353 = vmatpush.msra.mxu0 %v5317
        %5354 = vmatmul.f32.gmra.mxu0 %v5327
        %v5355 = vpop.f32.mrf.mxu0
        %v5356 = vadd.f32 0.0, %v5355
        %5357 = vmatmul.f32.gmra.mxu0 %v5330
        %v5358 = vpop.f32.mrf.mxu0
        %v5359 = vadd.f32 0.0, %v5358
        %5360 = vmatmul.f32.gmra.mxu0 %v5333
        %v5361 = vpop.f32.mrf.mxu0
        %v5362 = vadd.f32 0.0, %v5361
        %5363 = vmatmul.f32.gmra.mxu0 %v5336
        %v5364 = vpop.f32.mrf.mxu0
        %v5365 = vadd.f32 0.0, %v5364
        %5366 = vdwg.mxu0
        %v5367 = vadd.f32 %v5153, %v5356
        %v5368 = vadd.f32 %v5156, %v5359
        %v5369 = vadd.f32 %v5159, %v5362
        %v5370 = vadd.f32 %v5162, %v5365
        %v5371 = vld [vmem:[%s18] sm:$0x1]
        %v5373 = vperm.slane %v5371, 0
        %v5375 = vadd.f32 %v5367, %v5373
        %v5376 = vadd.f32 %v5368, %v5373
        %v5377 = vadd.f32 %v5369, %v5373
        %v5378 = vadd.f32 %v5370, %v5373
        %v5379 = vsub.f32 0.0, %v5375
        %v5380 = vsub.f32 0.0, %v5376
        %v5381 = vsub.f32 0.0, %v5377
        %v5382 = vsub.f32 0.0, %v5378
        %v5383 = vmul.f32 %v5379, 1.442695
        %v5384 = vpow.pop %v5383
        %v5385 = vmul.f32 %v5380, 1.442695
        %v5386 = vpow.pop %v5385
        %v5387 = vmul.f32 %v5381, 1.442695
        %v5388 = vpow.pop %v5387
        %v5389 = vmul.f32 %v5382, 1.442695
        %v5390 = vpow.pop %v5389
        %v5391 = vadd.f32 %v5384, 1.0
        %v5392 = vadd.f32 %v5386, 1.0
        %v5393 = vadd.f32 %v5388, 1.0
        %v5394 = vadd.f32 %v5390, 1.0
        %v5395 = vrcp.pop %v5391
        %v5396 = vmul.f32 %v5391, %v5395
        %v5397 = vsub.f32 1.0, %v5396
        %v5398 = vmul.f32 %v5395, %v5397
        %v5399 = vadd.f32 %v5395, %v5398
        %vm5400 = vweird.f32 %v5391
        %vm5401 = vweird.f32 %v5395
        %vm5402 = vmor %vm5400, %vm5401
        %v5403 = vsel %vm5402, %v5395, %v5399
        %v5404 = vand.u32 2147483647, %v5391
        %vm5405 = vcmp.eq.f32.partialorder %v5404, 8.507059e+37
        %v5406 = vand.u32 %v5391, 2147483648
        %v5407 = vor.u32 1.1754944e-38, %v5406
        %v5408 = vsel %vm5405, %v5407, %v5403
        %v5409 = vmul.f32 1.0, %v5408
        %v5410 = vrcp.pop %v5392
        %v5411 = vmul.f32 %v5392, %v5410
        %v5412 = vsub.f32 1.0, %v5411
        %v5413 = vmul.f32 %v5410, %v5412
        %v5414 = vadd.f32 %v5410, %v5413
        %vm5415 = vweird.f32 %v5392
        %vm5416 = vweird.f32 %v5410
        %vm5417 = vmor %vm5415, %vm5416
        %v5418 = vsel %vm5417, %v5410, %v5414
        %v5419 = vand.u32 2147483647, %v5392
        %vm5420 = vcmp.eq.f32.partialorder %v5419, 8.507059e+37
        %v5421 = vand.u32 %v5392, 2147483648
        %v5422 = vor.u32 1.1754944e-38, %v5421
        %v5423 = vsel %vm5420, %v5422, %v5418
        %v5424 = vmul.f32 1.0, %v5423
        %v5425 = vrcp.pop %v5393
        %v5426 = vmul.f32 %v5393, %v5425
        %v5427 = vsub.f32 1.0, %v5426
        %v5428 = vmul.f32 %v5425, %v5427
        %v5429 = vadd.f32 %v5425, %v5428
        %vm5430 = vweird.f32 %v5393
        %vm5431 = vweird.f32 %v5425
        %vm5432 = vmor %vm5430, %vm5431
        %v5433 = vsel %vm5432, %v5425, %v5429
        %v5434 = vand.u32 2147483647, %v5393
        %vm5435 = vcmp.eq.f32.partialorder %v5434, 8.507059e+37
        %v5436 = vand.u32 %v5393, 2147483648
        %v5437 = vor.u32 1.1754944e-38, %v5436
        %v5438 = vsel %vm5435, %v5437, %v5433
        %v5439 = vmul.f32 1.0, %v5438
        %v5440 = vrcp.pop %v5394
        %v5441 = vmul.f32 %v5394, %v5440
        %v5442 = vsub.f32 1.0, %v5441
        %v5443 = vmul.f32 %v5440, %v5442
        %v5444 = vadd.f32 %v5440, %v5443
        %vm5445 = vweird.f32 %v5394
        %vm5446 = vweird.f32 %v5440
        %vm5447 = vmor %vm5445, %vm5446
        %v5448 = vsel %vm5447, %v5440, %v5444
        %v5449 = vand.u32 2147483647, %v5394
        %vm5450 = vcmp.eq.f32.partialorder %v5449, 8.507059e+37
        %v5451 = vand.u32 %v5394, 2147483648
        %v5452 = vor.u32 1.1754944e-38, %v5451
        %v5453 = vsel %vm5450, %v5452, %v5448
        %v5454 = vmul.f32 1.0, %v5453
        %5455 = vst.msk [vmem:[%s729] sm:$0xff] %vm886, %v5409
        %5456 = vst.msk [vmem:[%s729 + $0x8] sm:$0xff] %vm886, %v5424
        %5457 = vst.msk [vmem:[%s729 + $0x10] sm:$0xff] %vm886, %v5439
        %5458 = vst.msk [vmem:[%s729 + $0x18] sm:$0xff] %vm886, %v5454
        %p5459 = scmp.lt.s32.totalorder %s35, 1
        %s5460 = scalar_select %p5459, %s35, 1
        %s5461 = smul.addr %s5460, 4
        %s5462 = smul.addr %s5461, 8
        %s5463 = scalar_lea.vmem %s19, %s5462
        // Predicated region
        $region129: #{autoencoder2_forward.1} parent=95 // pred_check
          %p5464 = pneg %p457
        $region130: #{autoencoder2_forward.1} parent=95 // pred_check_branch
          %5466 = sbr.rel (%p5464) target = $region132
        $region131: #{autoencoder2_forward.1} parent=95 // pred_region
          _
        $region132: #{autoencoder2_forward.1} parent=95 // pred_fallthru
          _
      $region96: #{autoencoder2_forward.1} parent=5 // pred_fallthru
        _
      %p5467 = scmp.le.s32.totalorder 2, %s30
      // Predicated region
      $region133: #{autoencoder2_forward.1} parent=5 // pred_check
        %p5468 = pneg %p5467
      $region134: #{autoencoder2_forward.1} parent=5 // pred_check_branch
        %5470 = sbr.rel (%p5468) target = $region136
      $region135: #{autoencoder2_forward.1} parent=5 // pred_region
        %s5471 = ssub.s32 %s30, 2
        // Predicated region
        $region137: #{autoencoder2_forward.1} parent=135 // pred_check
          %p5472 = pneg %p463
        $region138: #{autoencoder2_forward.1} parent=135 // pred_check_branch
          %5474 = sbr.rel (%p5472) target = $region140
        $region139: #{autoencoder2_forward.1} parent=135 // pred_region
          %p5475 = scmp.lt.s32.totalorder %s36, 1
          %s5476 = scalar_select %p5475, %s36, 1
          %s5477 = smul.addr %s5476, 4
          %s5478 = smul.addr %s5477, 8
          %s5479 = scalar_lea.vmem %s19, %s5478
        $region140: #{autoencoder2_forward.1} parent=135 // pred_fallthru
          _
      $region136: #{autoencoder2_forward.1} parent=5 // pred_fallthru
        _
    $region6: #{autoencoder2_forward.1} parent=1 // loop_footer
      %s34 = sadd.s32 1, %s30
    $region7: #{autoencoder2_forward.1} parent=1 // loop_footer_branch
      %29 = sbr.rel target = $region3
    $region8: #{autoencoder2_forward.1} parent=1 // loop_exit
      _
    %5480 = vsyncpa [#allocation3], 1
    %s5481 = scalar_lea.sflag [#allocation3], 1
    %5482 = vsyncpa %s5481, 1
    %5483 = vsyncpa [#allocation5], 1
    %5484 = vsyncpa [#allocation8], 1
    %5485 = vsyncpa [#allocation11], 1
    %5486 = vsyncpa [#allocation14], 1

</llo_original>
